<compile_context>
chip_gen: v6e
topology: v6e:2x2x1
jax: 0.10.0
libtpu: 0.0.40
codegen_flags: <defaults>
</compile_context>

<pallas_src>
import math
import jax
import jax.numpy as jnp
from jax.experimental import pallas as pl
from jax.experimental.pallas import tpu as pltpu

B, S, D, H, DFF = 2, 8, 32, 4, 64   # batch, seq, embedding_dim, heads, d_ff
DK = D // H
R = B * S                            # batch folded into rows
EPS = 1e-6
NEG_INF = -1000000000.0


# ------------------------- in-kernel helpers (pure jnp, traced) -------------------------

def _layernorm(x, alpha, bias):
    # torch: mean over last dim; std with Bessel correction; alpha*(x-mean)/(std+eps)+bias
    mean = jnp.mean(x, axis=-1, keepdims=True)
    var = jnp.sum((x - mean) ** 2, axis=-1, keepdims=True) / (x.shape[-1] - 1)
    return alpha * (x - mean) / (jnp.sqrt(var) + EPS) + bias


def _mha(xq, xkv, mask, w_qkv, wo_h, b_row):
    """Multi-head attention over the batch-folded slab.

    xq, xkv : (R, D)  query / key-value streams (rows 0..S-1 = batch 0, ...)
    mask    : (B, S, S) or (B, 1, S)   (1 = keep, 0 = mask)
    w_qkv   : (D, 3D)  fused [Wq | Wk | Wv]
    wo_h    : (H, DK, D)  output projection, pre-reshaped per head
    b_row   : (1, 4D)  fused [bq | bk | bv | bo]
    """
    b_o = b_row[:, 3 * D:]
    if xq is xkv:
        # self-attention: single fused QKV matmul
        qkv = jnp.dot(xq, w_qkv, preferred_element_type=jnp.float32) + b_row[:, :3 * D]
        q2, k2, v2 = qkv[:, :D], qkv[:, D:2 * D], qkv[:, 2 * D:]
    else:
        # cross-attention: Q from decoder stream, fused K|V from encoder stream
        q2 = jnp.dot(xq, w_qkv[:, :D], preferred_element_type=jnp.float32) + b_row[:, :D]
        kv = jnp.dot(xkv, w_qkv[:, D:], preferred_element_type=jnp.float32) + b_row[:, D:3 * D]
        k2, v2 = kv[:, :D], kv[:, D:]

    # head-major views built from static lane slices (no in-kernel reshape/transpose)
    qh_all = jnp.stack([q2[:, h * DK:(h + 1) * DK] for h in range(H)], axis=0)  # (H, R, DK)
    kh_all = jnp.stack([k2[:, h * DK:(h + 1) * DK] for h in range(H)], axis=0)
    vh_all = jnp.stack([v2[:, h * DK:(h + 1) * DK] for h in range(H)], axis=0)

    scale = 1.0 / math.sqrt(DK)
    outs = []
    for bi in range(B):                      # static loop, B = 2 (attention is per-batch)
        r0 = bi * S
        qh = qh_all[:, r0:r0 + S, :]         # (H, S, DK)
        kh = kh_all[:, r0:r0 + S, :]
        vh = vh_all[:, r0:r0 + S, :]
        s = jnp.einsum('hqd,hkd->hqk', qh, kh,
                       preferred_element_type=jnp.float32) * scale      # (H, S, S)
        mb = mask[bi]                        # (S, S) or (1, S)
        s = jnp.where(mb[None] == 0.0, NEG_INF, s)
        s = s - jnp.max(s, axis=-1, keepdims=True)
        e = jnp.exp(s)
        p = e / jnp.sum(e, axis=-1, keepdims=True)
        ctx = jnp.einsum('hqk,hkd->hqd', p, vh,
                         preferred_element_type=jnp.float32)            # (H, S, DK)
        # output projection: sum_h ctx_h @ Wo_h  ==  concat(heads) @ Wo
        ob = jnp.einsum('hqd,hde->hqe', ctx, wo_h,
                        preferred_element_type=jnp.float32)             # (H, S, D)
        outs.append(jnp.sum(ob, axis=0))                                # (S, D)
    return jnp.concatenate(outs, axis=0) + b_o                          # (R, D)


# --------------------------------- the Pallas kernel -------------------------------------

def decoder_block_kernel(
    x_ref, enc_ref, tgt_ref, src_ref,
    ln_ref, attn_w_ref, attn_wo_ref, attn_b_ref,
    ff_w1_ref, ff_w2_ref, ff_b_ref,
    out_ref,
):
    x = x_ref[...]            # (R, D)   decoder stream, batch folded into rows
    enc = enc_ref[...]        # (R, D)   encoder output
    tgt = tgt_ref[...]        # (B, S, S)
    src = src_ref[...]        # (B, 1, S)
    ln = ln_ref[...]          # (6, D)   [a0;b0;a1;b1;a2;b2]
    attn_w = attn_w_ref[...]  # (2, D, 3D)
    attn_wo = attn_wo_ref[...]  # (2, H, DK, D)
    attn_b = attn_b_ref[...]  # (2, 4D)

    # --- residual 1: self-attention (pre-norm) ---
    xn = _layernorm(x, ln[0:1, :], ln[1:2, :])
    x = x + _mha(xn, xn, tgt, attn_w[0], attn_wo[0], attn_b[0:1, :])

    # --- residual 2: cross-attention (pre-norm) ---
    xn = _layernorm(x, ln[2:3, :], ln[3:4, :])
    x = x + _mha(xn, enc, src, attn_w[1], attn_wo[1], attn_b[1:2, :])

    # --- residual 3: feed-forward (pre-norm) ---
    xn = _layernorm(x, ln[4:5, :], ln[5:6, :])
    h = jnp.dot(xn, ff_w1_ref[...], preferred_element_type=jnp.float32) + ff_b_ref[:, :DFF]
    h = jnp.maximum(h, 0.0)
    x = x + jnp.dot(h, ff_w2_ref[...], preferred_element_type=jnp.float32) + ff_b_ref[:, DFF:]

    out_ref[...] = x


# --------------------------------- wrapper -------------------------------------

def decoder_block(x, enc, tgt_mask, src_mask, packed):
    """x, enc: (B,S,D). tgt_mask: (B,S,S). src_mask: (B,1,S). packed: 7 packed param arrays."""
    x2 = x.reshape(R, D)       # fold batch into rows (host-side, free)
    enc2 = enc.reshape(R, D)
    inputs = [x2, enc2, tgt_mask, src_mask] + list(packed)

    def full(a):
        nd = a.ndim
        return pl.BlockSpec(a.shape, lambda i, _nd=nd: (0,) * _nd)

    out = pl.pallas_call(
        decoder_block_kernel,
        out_shape=jax.ShapeDtypeStruct((R, D), jnp.float32),
        grid_spec=pltpu.PrefetchScalarGridSpec(
            num_scalar_prefetch=0,
            grid=(1,),                        # single grid step: whole problem in VMEM
            in_specs=[full(a) for a in inputs],
            out_specs=pl.BlockSpec((R, D), lambda i: (0, 0)),
        ),
        compiler_params=pltpu.CompilerParams(dimension_semantics=("arbitrary",)),
    )(*inputs)
    return out.reshape(B, S, D)


# --------------------------------- pure-JAX reference ---------------------------

def reference(x, enc, tgt_mask, src_mask, raw):
    (ln0_a, ln0_b,
     sa_wq, sa_bq, sa_wk, sa_bk, sa_wv, sa_bv, sa_wo, sa_bo,
     ln1_a, ln1_b,
     ca_wq, ca_bq, ca_wk, ca_bk, ca_wv, ca_bv, ca_wo, ca_bo,
     ln2_a, ln2_b,
     ff_w1, ff_b1, ff_w2, ff_b2) = raw

    def ln(t, a, b):
        mean = jnp.mean(t, axis=-1, keepdims=True)
        var = jnp.sum((t - mean) ** 2, axis=-1, keepdims=True) / (t.shape[-1] - 1)
        return a * (t - mean) / (jnp.sqrt(var) + EPS) + b

    def mha(q_in, kv_in, mask, wq, bq, wk, bk, wv, bv, wo, bo):
        q = q_in @ wq + bq
        k = kv_in @ wk + bk
        v = kv_in @ wv + bv
        q = q.reshape(B, S, H, DK).transpose(0, 2, 1, 3)
        k = k.reshape(B, S, H, DK).transpose(0, 2, 1, 3)
        v = v.reshape(B, S, H, DK).transpose(0, 2, 1, 3)
        s = (q @ jnp.swapaxes(k, -1, -2)) / math.sqrt(DK)
        s = jnp.where(mask[:, None] == 0.0, NEG_INF, s)
        p = jax.nn.softmax(s, axis=-1)
        o = (p @ v).transpose(0, 2, 1, 3).reshape(B, S, D)
        return o @ wo + bo

    xx = x
    xn = ln(xx, ln0_a, ln0_b)
    xx = xx + mha(xn, xn, tgt_mask, sa_wq, sa_bq, sa_wk, sa_bk, sa_wv, sa_bv, sa_wo, sa_bo)
    xn = ln(xx, ln1_a, ln1_b)
    xx = xx + mha(xn, enc, src_mask, ca_wq, ca_bq, ca_wk, ca_bk, ca_wv, ca_bv, ca_wo, ca_bo)
    xn = ln(xx, ln2_a, ln2_b)
    xx = xx + (jnp.maximum(xn @ ff_w1 + ff_b1, 0.0) @ ff_w2 + ff_b2)
    return xx


# --------------------------------- main ------------------------------------------

if __name__ == "__main__":
    key = jax.random.PRNGKey(0)
    ks = jax.random.split(key, 40)

    def nrm(k, shape, scale=0.1):
        return jax.random.normal(k, shape, jnp.float32) * scale

    # Raw per-layer parameters (linear weights stored (in, out); biases / LN params (1, feat)).
    raw = [
        1.0 + nrm(ks[22], (1, D)), nrm(ks[23], (1, D)),      # ln0 alpha / bias
        nrm(ks[0], (D, D)), nrm(ks[1], (1, D)),              # self-attn wq / bq
        nrm(ks[2], (D, D)), nrm(ks[3], (1, D)),              # wk / bk
        nrm(ks[4], (D, D)), nrm(ks[5], (1, D)),              # wv / bv
        nrm(ks[6], (D, D)), nrm(ks[7], (1, D)),              # wo / bo
        1.0 + nrm(ks[24], (1, D)), nrm(ks[25], (1, D)),      # ln1 alpha / bias
        nrm(ks[8], (D, D)), nrm(ks[9], (1, D)),              # cross-attn wq / bq
        nrm(ks[10], (D, D)), nrm(ks[11], (1, D)),            # wk / bk
        nrm(ks[12], (D, D)), nrm(ks[13], (1, D)),            # wv / bv
        nrm(ks[14], (D, D)), nrm(ks[15], (1, D)),            # wo / bo
        1.0 + nrm(ks[26], (1, D)), nrm(ks[27], (1, D)),      # ln2 alpha / bias
        nrm(ks[16], (D, DFF)), nrm(ks[17], (1, DFF)),        # ffn w1 / b1
        nrm(ks[18], (DFF, D)), nrm(ks[19], (1, D)),          # ffn w2 / b2
    ]
    (ln0_a, ln0_b,
     sa_wq, sa_bq, sa_wk, sa_bk, sa_wv, sa_bv, sa_wo, sa_bo,
     ln1_a, ln1_b,
     ca_wq, ca_bq, ca_wk, ca_bk, ca_wv, ca_bv, ca_wo, ca_bo,
     ln2_a, ln2_b,
     ff_w1, ff_b1, ff_w2, ff_b2) = raw

    # ---- pack parameters into a handful of kernel inputs (host-side, free) ----
    ln_ab = jnp.concatenate([ln0_a, ln0_b, ln1_a, ln1_b, ln2_a, ln2_b], axis=0)     # (6, D)
    attn_w = jnp.stack([jnp.concatenate([sa_wq, sa_wk, sa_wv], axis=1),
                        jnp.concatenate([ca_wq, ca_wk, ca_wv], axis=1)], axis=0)    # (2, D, 3D)
    attn_wo_h = jnp.stack([sa_wo.reshape(H, DK, D),
                           ca_wo.reshape(H, DK, D)], axis=0)                        # (2, H, DK, D)
    attn_b = jnp.concatenate([jnp.concatenate([sa_bq, sa_bk, sa_bv, sa_bo], axis=1),
                              jnp.concatenate([ca_bq, ca_bk, ca_bv, ca_bo], axis=1)],
                             axis=0)                                                # (2, 4D)
    ff_b = jnp.concatenate([ff_b1, ff_b2], axis=1)                                  # (1, DFF+D)
    packed = [ln_ab, attn_w, attn_wo_h, attn_b, ff_w1, ff_w2, ff_b]

    x = jax.random.normal(ks[20], (B, S, D), jnp.float32)
    enc = jax.random.normal(ks[21], (B, S, D), jnp.float32)

    # tgt_mask: causal (B, S, S); src_mask: all-ones (B, 1, S)  (1 = keep, 0 = mask)
    causal = jnp.tril(jnp.ones((S, S), jnp.float32))
    tgt_mask = jnp.broadcast_to(causal, (B, S, S))
    src_mask = jnp.ones((B, 1, S), jnp.float32)

    out = decoder_block(x, enc, tgt_mask, src_mask, packed)
    out = jax.block_until_ready(out)

    ref = reference(x, enc, tgt_mask, src_mask, raw)
    assert out.shape == (B, S, D)
    assert jnp.allclose(out, ref, atol=2e-4, rtol=2e-4), "mismatch vs pure-JAX reference"

    print("KERNEL_OK")
</pallas_src>

<mosaic_0001>
module attributes {stable_mosaic.version = 11 : i64} {
  func.func @decoder_block_kernel(%arg0: i32, %arg1: memref<16x32xf32, #tpu.memory_space<vmem>>, %arg2: memref<16x32xf32, #tpu.memory_space<vmem>>, %arg3: memref<2x8x8xf32, #tpu.memory_space<vmem>>, %arg4: memref<2x1x8xf32, #tpu.memory_space<vmem>>, %arg5: memref<6x32xf32, #tpu.memory_space<vmem>>, %arg6: memref<2x32x96xf32, #tpu.memory_space<vmem>>, %arg7: memref<2x4x8x32xf32, #tpu.memory_space<vmem>>, %arg8: memref<2x128xf32, #tpu.memory_space<vmem>>, %arg9: memref<32x64xf32, #tpu.memory_space<vmem>>, %arg10: memref<64x32xf32, #tpu.memory_space<vmem>>, %arg11: memref<1x96xf32, #tpu.memory_space<vmem>>, %arg12: memref<16x32xf32, #tpu.memory_space<vmem>>) attributes {dimension_semantics = [#tpu.dimension_semantics<arbitrary>], iteration_bounds = array<i64: 1>, scalar_prefetch = 0 : i64, scratch_operands = 0 : i64, tpu.core_type = #tpu.core_type<tc>, window_params = [{pipeline_mode = #tpu.pipeline_mode<synchronous>, transform_indices = @transform_0, window_bounds = array<i64: 16, 32>}, {pipeline_mode = #tpu.pipeline_mode<synchronous>, transform_indices = @transform_1, window_bounds = array<i64: 16, 32>}, {pipeline_mode = #tpu.pipeline_mode<synchronous>, transform_indices = @transform_2, window_bounds = array<i64: 2, 8, 8>}, {pipeline_mode = #tpu.pipeline_mode<synchronous>, transform_indices = @transform_3, window_bounds = array<i64: 2, 1, 8>}, {pipeline_mode = #tpu.pipeline_mode<synchronous>, transform_indices = @transform_4, window_bounds = array<i64: 6, 32>}, {pipeline_mode = #tpu.pipeline_mode<synchronous>, transform_indices = @transform_5, window_bounds = array<i64: 2, 32, 96>}, {pipeline_mode = #tpu.pipeline_mode<synchronous>, transform_indices = @transform_6, window_bounds = array<i64: 2, 4, 8, 32>}, {pipeline_mode = #tpu.pipeline_mode<synchronous>, transform_indices = @transform_7, window_bounds = array<i64: 2, 128>}, {pipeline_mode = #tpu.pipeline_mode<synchronous>, transform_indices = @transform_8, window_bounds = array<i64: 32, 64>}, {pipeline_mode = #tpu.pipeline_mode<synchronous>, transform_indices = @transform_9, window_bounds = array<i64: 64, 32>}, {pipeline_mode = #tpu.pipeline_mode<synchronous>, transform_indices = @transform_10, window_bounds = array<i64: 1, 96>}, {pipeline_mode = #tpu.pipeline_mode<synchronous>, transform_indices = @transform_11, window_bounds = array<i64: 16, 32>}]} {
    %c0 = arith.constant 0 : index
    %c0_0 = arith.constant 0 : index
    %0 = vector.load %arg1[%c0, %c0_0] : memref<16x32xf32, #tpu.memory_space<vmem>>, vector<16x32xf32>
    %c0_1 = arith.constant 0 : index
    %c0_2 = arith.constant 0 : index
    %1 = vector.load %arg2[%c0_1, %c0_2] : memref<16x32xf32, #tpu.memory_space<vmem>>, vector<16x32xf32>
    %c0_3 = arith.constant 0 : index
    %c0_4 = arith.constant 0 : index
    %c0_5 = arith.constant 0 : index
    %2 = vector.load %arg3[%c0_3, %c0_4, %c0_5] : memref<2x8x8xf32, #tpu.memory_space<vmem>>, vector<2x8x8xf32>
    %c0_6 = arith.constant 0 : index
    %c0_7 = arith.constant 0 : index
    %c0_8 = arith.constant 0 : index
    %3 = vector.load %arg4[%c0_6, %c0_7, %c0_8] : memref<2x1x8xf32, #tpu.memory_space<vmem>>, vector<2x1x8xf32>
    %c0_9 = arith.constant 0 : index
    %c0_10 = arith.constant 0 : index
    %4 = vector.load %arg5[%c0_9, %c0_10] : memref<6x32xf32, #tpu.memory_space<vmem>>, vector<6x32xf32>
    %c0_11 = arith.constant 0 : index
    %c0_12 = arith.constant 0 : index
    %c0_13 = arith.constant 0 : index
    %5 = vector.load %arg6[%c0_11, %c0_12, %c0_13] : memref<2x32x96xf32, #tpu.memory_space<vmem>>, vector<2x32x96xf32>
    %c0_14 = arith.constant 0 : index
    %c0_15 = arith.constant 0 : index
    %c0_16 = arith.constant 0 : index
    %c0_17 = arith.constant 0 : index
    %6 = vector.load %arg7[%c0_14, %c0_15, %c0_16, %c0_17] : memref<2x4x8x32xf32, #tpu.memory_space<vmem>>, vector<2x4x8x32xf32>
    %c0_18 = arith.constant 0 : index
    %c0_19 = arith.constant 0 : index
    %7 = vector.load %arg8[%c0_18, %c0_19] : memref<2x128xf32, #tpu.memory_space<vmem>>, vector<2x128xf32>
    %8 = vector.extract_strided_slice %4 {offsets = [0, 0], sizes = [1, 32], strides = [1, 1]} : vector<6x32xf32> to vector<1x32xf32>
    %9 = vector.extract_strided_slice %4 {offsets = [1, 0], sizes = [1, 32], strides = [1, 1]} : vector<6x32xf32> to vector<1x32xf32>
    %cst = arith.constant dense<0.000000e+00> : vector<16xf32>
    %10 = vector.multi_reduction <add>, %0, %cst [1] : vector<16x32xf32> to vector<16xf32>
    %11 = vector.shape_cast %10 : vector<16xf32> to vector<16x1xf32>
    %cst_20 = arith.constant 3.200000e+01 : f32
    %12 = vector.broadcast %cst_20 : f32 to vector<16x1xf32>
    %13 = arith.divf %11, %12 : vector<16x1xf32>
    %14 = vector.broadcast %13 : vector<16x1xf32> to vector<16x32xf32>
    %15 = arith.subf %0, %14 : vector<16x32xf32>
    %16 = arith.mulf %15, %15 : vector<16x32xf32>
    %cst_21 = arith.constant dense<0.000000e+00> : vector<16xf32>
    %17 = vector.multi_reduction <add>, %16, %cst_21 [1] : vector<16x32xf32> to vector<16xf32>
    %18 = vector.shape_cast %17 : vector<16xf32> to vector<16x1xf32>
    %cst_22 = arith.constant 3.100000e+01 : f32
    %19 = vector.broadcast %cst_22 : f32 to vector<16x1xf32>
    %20 = arith.divf %18, %19 : vector<16x1xf32>
    %21 = vector.broadcast %13 : vector<16x1xf32> to vector<16x32xf32>
    %22 = arith.subf %0, %21 : vector<16x32xf32>
    %23 = vector.broadcast %8 : vector<1x32xf32> to vector<16x32xf32>
    %24 = arith.mulf %23, %22 : vector<16x32xf32>
    %25 = math.sqrt %20 : vector<16x1xf32>
    %cst_23 = arith.constant 9.99999997E-7 : f32
    %26 = vector.broadcast %cst_23 : f32 to vector<16x1xf32>
    %27 = arith.addf %25, %26 : vector<16x1xf32>
    %28 = vector.broadcast %27 : vector<16x1xf32> to vector<16x32xf32>
    %29 = arith.divf %24, %28 : vector<16x32xf32>
    %30 = vector.broadcast %9 : vector<1x32xf32> to vector<16x32xf32>
    %31 = arith.addf %29, %30 : vector<16x32xf32>
    %32 = vector.extract_strided_slice %5 {offsets = [0, 0, 0], sizes = [1, 32, 96], strides = [1, 1, 1]} : vector<2x32x96xf32> to vector<1x32x96xf32>
    %33 = vector.shape_cast %32 : vector<1x32x96xf32> to vector<32x96xf32>
    %34 = vector.extract_strided_slice %6 {offsets = [0, 0, 0, 0], sizes = [1, 4, 8, 32], strides = [1, 1, 1, 1]} : vector<2x4x8x32xf32> to vector<1x4x8x32xf32>
    %35 = vector.shape_cast %34 : vector<1x4x8x32xf32> to vector<4x8x32xf32>
    %36 = vector.extract_strided_slice %7 {offsets = [0, 0], sizes = [1, 128], strides = [1, 1]} : vector<2x128xf32> to vector<1x128xf32>
    %37 = vector.extract_strided_slice %36 {offsets = [0, 96], sizes = [1, 32], strides = [1, 1]} : vector<1x128xf32> to vector<1x32xf32>
    %cst_24 = arith.constant dense<0.000000e+00> : vector<16x96xf32>
    %38 = tpu.matmul %31, %33, %cst_24 {dimension_numbers = #tpu.dot_dimension_numbers<[1], [0], [0], [1], [0, 0, 1, 1], [], []>} : vector<16x32xf32>, vector<32x96xf32>, vector<16x96xf32> -> vector<16x96xf32>
    %39 = vector.extract_strided_slice %36 {offsets = [0, 0], sizes = [1, 96], strides = [1, 1]} : vector<1x128xf32> to vector<1x96xf32>
    %40 = vector.broadcast %39 : vector<1x96xf32> to vector<16x96xf32>
    %41 = arith.addf %38, %40 : vector<16x96xf32>
    %42 = vector.extract_strided_slice %41 {offsets = [0, 0], sizes = [16, 32], strides = [1, 1]} : vector<16x96xf32> to vector<16x32xf32>
    %43 = vector.extract_strided_slice %41 {offsets = [0, 32], sizes = [16, 32], strides = [1, 1]} : vector<16x96xf32> to vector<16x32xf32>
    %44 = vector.extract_strided_slice %41 {offsets = [0, 64], sizes = [16, 32], strides = [1, 1]} : vector<16x96xf32> to vector<16x32xf32>
    %45 = vector.extract_strided_slice %42 {offsets = [0, 0], sizes = [16, 8], strides = [1, 1]} : vector<16x32xf32> to vector<16x8xf32>
    %46 = vector.extract_strided_slice %42 {offsets = [0, 8], sizes = [16, 8], strides = [1, 1]} : vector<16x32xf32> to vector<16x8xf32>
    %47 = vector.extract_strided_slice %42 {offsets = [0, 16], sizes = [16, 8], strides = [1, 1]} : vector<16x32xf32> to vector<16x8xf32>
    %48 = vector.extract_strided_slice %42 {offsets = [0, 24], sizes = [16, 8], strides = [1, 1]} : vector<16x32xf32> to vector<16x8xf32>
    %49 = vector.shape_cast %45 : vector<16x8xf32> to vector<1x16x8xf32>
    %50 = vector.shape_cast %46 : vector<16x8xf32> to vector<1x16x8xf32>
    %51 = vector.shape_cast %47 : vector<16x8xf32> to vector<1x16x8xf32>
    %52 = vector.shape_cast %48 : vector<16x8xf32> to vector<1x16x8xf32>
    %53 = tpu.concatenate %49, %50, %51, %52 in 0 : vector<1x16x8xf32>, vector<1x16x8xf32>, vector<1x16x8xf32>, vector<1x16x8xf32> -> vector<4x16x8xf32>
    %54 = vector.extract_strided_slice %43 {offsets = [0, 0], sizes = [16, 8], strides = [1, 1]} : vector<16x32xf32> to vector<16x8xf32>
    %55 = vector.extract_strided_slice %43 {offsets = [0, 8], sizes = [16, 8], strides = [1, 1]} : vector<16x32xf32> to vector<16x8xf32>
    %56 = vector.extract_strided_slice %43 {offsets = [0, 16], sizes = [16, 8], strides = [1, 1]} : vector<16x32xf32> to vector<16x8xf32>
    %57 = vector.extract_strided_slice %43 {offsets = [0, 24], sizes = [16, 8], strides = [1, 1]} : vector<16x32xf32> to vector<16x8xf32>
    %58 = vector.shape_cast %54 : vector<16x8xf32> to vector<1x16x8xf32>
    %59 = vector.shape_cast %55 : vector<16x8xf32> to vector<1x16x8xf32>
    %60 = vector.shape_cast %56 : vector<16x8xf32> to vector<1x16x8xf32>
    %61 = vector.shape_cast %57 : vector<16x8xf32> to vector<1x16x8xf32>
    %62 = tpu.concatenate %58, %59, %60, %61 in 0 : vector<1x16x8xf32>, vector<1x16x8xf32>, vector<1x16x8xf32>, vector<1x16x8xf32> -> vector<4x16x8xf32>
    %63 = vector.extract_strided_slice %44 {offsets = [0, 0], sizes = [16, 8], strides = [1, 1]} : vector<16x32xf32> to vector<16x8xf32>
    %64 = vector.extract_strided_slice %44 {offsets = [0, 8], sizes = [16, 8], strides = [1, 1]} : vector<16x32xf32> to vector<16x8xf32>
    %65 = vector.extract_strided_slice %44 {offsets = [0, 16], sizes = [16, 8], strides = [1, 1]} : vector<16x32xf32> to vector<16x8xf32>
    %66 = vector.extract_strided_slice %44 {offsets = [0, 24], sizes = [16, 8], strides = [1, 1]} : vector<16x32xf32> to vector<16x8xf32>
    %67 = vector.shape_cast %63 : vector<16x8xf32> to vector<1x16x8xf32>
    %68 = vector.shape_cast %64 : vector<16x8xf32> to vector<1x16x8xf32>
    %69 = vector.shape_cast %65 : vector<16x8xf32> to vector<1x16x8xf32>
    %70 = vector.shape_cast %66 : vector<16x8xf32> to vector<1x16x8xf32>
    %71 = tpu.concatenate %67, %68, %69, %70 in 0 : vector<1x16x8xf32>, vector<1x16x8xf32>, vector<1x16x8xf32>, vector<1x16x8xf32> -> vector<4x16x8xf32>
    %72 = vector.extract_strided_slice %53 {offsets = [0, 0, 0], sizes = [4, 8, 8], strides = [1, 1, 1]} : vector<4x16x8xf32> to vector<4x8x8xf32>
    %73 = vector.extract_strided_slice %62 {offsets = [0, 0, 0], sizes = [4, 8, 8], strides = [1, 1, 1]} : vector<4x16x8xf32> to vector<4x8x8xf32>
    %74 = vector.extract_strided_slice %71 {offsets = [0, 0, 0], sizes = [4, 8, 8], strides = [1, 1, 1]} : vector<4x16x8xf32> to vector<4x8x8xf32>
    "tpu.trace_start"() <{level = 10 : i32, message = "hqd,hkd->hqk"}> : () -> ()
    %cst_25 = arith.constant dense<0.000000e+00> : vector<4x8x8xf32>
    %75 = tpu.matmul %72, %73, %cst_25 {dimension_numbers = #tpu.dot_dimension_numbers<[2], [2], [1], [1], [0, 0, 0, 1, 1, 1], [0], [0]>} : vector<4x8x8xf32>, vector<4x8x8xf32>, vector<4x8x8xf32> -> vector<4x8x8xf32>
    "tpu.trace_stop"() : () -> ()
    %cst_26 = arith.constant 0.353553385 : f32
    %76 = vector.broadcast %cst_26 : f32 to vector<4x8x8xf32>
    %77 = arith.mulf %75, %76 : vector<4x8x8xf32>
    %78 = vector.extract_strided_slice %2 {offsets = [0, 0, 0], sizes = [1, 8, 8], strides = [1, 1, 1]} : vector<2x8x8xf32> to vector<1x8x8xf32>
    %79 = vector.shape_cast %78 : vector<1x8x8xf32> to vector<8x8xf32>
    %80 = vector.shape_cast %79 : vector<8x8xf32> to vector<1x8x8xf32>
    %cst_27 = arith.constant 0.000000e+00 : f32
    %81 = vector.broadcast %cst_27 : f32 to vector<1x8x8xf32>
    %82 = arith.cmpf oeq, %80, %81 : vector<1x8x8xf32>
    %cst_28 = arith.constant -1.000000e+09 : f32
    %83 = vector.shape_cast %82 : vector<1x8x8xi1> to vector<1x8x8xi1>
    %84 = vector.broadcast %83 : vector<1x8x8xi1> to vector<4x8x8xi1>
    %85 = vector.broadcast %cst_28 : f32 to vector<4x8x8xf32>
    %86 = arith.select %84, %85, %77 : vector<4x8x8xi1>, vector<4x8x8xf32>
    %cst_29 = arith.constant dense<0xFF800000> : vector<4x8xf32>
    %87 = vector.multi_reduction <maximumf>, %86, %cst_29 [2] : vector<4x8x8xf32> to vector<4x8xf32>
    %88 = vector.shape_cast %87 : vector<4x8xf32> to vector<4x8x1xf32>
    %89 = vector.broadcast %88 : vector<4x8x1xf32> to vector<4x8x8xf32>
    %90 = arith.subf %86, %89 : vector<4x8x8xf32>
    %91 = math.exp %90 : vector<4x8x8xf32>
    %cst_30 = arith.constant dense<0.000000e+00> : vector<4x8xf32>
    %92 = vector.multi_reduction <add>, %91, %cst_30 [2] : vector<4x8x8xf32> to vector<4x8xf32>
    %93 = vector.shape_cast %92 : vector<4x8xf32> to vector<4x8x1xf32>
    %94 = vector.broadcast %93 : vector<4x8x1xf32> to vector<4x8x8xf32>
    %95 = arith.divf %91, %94 : vector<4x8x8xf32>
    "tpu.trace_start"() <{level = 10 : i32, message = "hqk,hkd->hqd"}> : () -> ()
    %cst_31 = arith.constant dense<0.000000e+00> : vector<4x8x8xf32>
    %96 = tpu.matmul %95, %74, %cst_31 {dimension_numbers = #tpu.dot_dimension_numbers<[2], [1], [1], [2], [0, 0, 0, 1, 1, 2], [0], [0]>} : vector<4x8x8xf32>, vector<4x8x8xf32>, vector<4x8x8xf32> -> vector<4x8x8xf32>
    "tpu.trace_stop"() : () -> ()
    "tpu.trace_start"() <{level = 10 : i32, message = "hqd,hde->hqe"}> : () -> ()
    %cst_32 = arith.constant dense<0.000000e+00> : vector<4x8x32xf32>
    %97 = tpu.matmul %96, %35, %cst_32 {dimension_numbers = #tpu.dot_dimension_numbers<[2], [1], [1], [2], [0, 0, 0, 1, 1, 2], [0], [0]>} : vector<4x8x8xf32>, vector<4x8x32xf32>, vector<4x8x32xf32> -> vector<4x8x32xf32>
    "tpu.trace_stop"() : () -> ()
    %cst_33 = arith.constant dense<0.000000e+00> : vector<8x32xf32>
    %98 = vector.multi_reduction <add>, %97, %cst_33 [0] : vector<4x8x32xf32> to vector<8x32xf32>
    %99 = vector.extract_strided_slice %53 {offsets = [0, 8, 0], sizes = [4, 8, 8], strides = [1, 1, 1]} : vector<4x16x8xf32> to vector<4x8x8xf32>
    %100 = vector.extract_strided_slice %62 {offsets = [0, 8, 0], sizes = [4, 8, 8], strides = [1, 1, 1]} : vector<4x16x8xf32> to vector<4x8x8xf32>
    %101 = vector.extract_strided_slice %71 {offsets = [0, 8, 0], sizes = [4, 8, 8], strides = [1, 1, 1]} : vector<4x16x8xf32> to vector<4x8x8xf32>
    "tpu.trace_start"() <{level = 10 : i32, message = "hqd,hkd->hqk"}> : () -> ()
    %cst_34 = arith.constant dense<0.000000e+00> : vector<4x8x8xf32>
    %102 = tpu.matmul %99, %100, %cst_34 {dimension_numbers = #tpu.dot_dimension_numbers<[2], [2], [1], [1], [0, 0, 0, 1, 1, 1], [0], [0]>} : vector<4x8x8xf32>, vector<4x8x8xf32>, vector<4x8x8xf32> -> vector<4x8x8xf32>
    "tpu.trace_stop"() : () -> ()
    %cst_35 = arith.constant 0.353553385 : f32
    %103 = vector.broadcast %cst_35 : f32 to vector<4x8x8xf32>
    %104 = arith.mulf %102, %103 : vector<4x8x8xf32>
    %105 = vector.extract_strided_slice %2 {offsets = [1, 0, 0], sizes = [1, 8, 8], strides = [1, 1, 1]} : vector<2x8x8xf32> to vector<1x8x8xf32>
    %106 = vector.shape_cast %105 : vector<1x8x8xf32> to vector<8x8xf32>
    %107 = vector.shape_cast %106 : vector<8x8xf32> to vector<1x8x8xf32>
    %cst_36 = arith.constant 0.000000e+00 : f32
    %108 = vector.broadcast %cst_36 : f32 to vector<1x8x8xf32>
    %109 = arith.cmpf oeq, %107, %108 : vector<1x8x8xf32>
    %cst_37 = arith.constant -1.000000e+09 : f32
    %110 = vector.shape_cast %109 : vector<1x8x8xi1> to vector<1x8x8xi1>
    %111 = vector.broadcast %110 : vector<1x8x8xi1> to vector<4x8x8xi1>
    %112 = vector.broadcast %cst_37 : f32 to vector<4x8x8xf32>
    %113 = arith.select %111, %112, %104 : vector<4x8x8xi1>, vector<4x8x8xf32>
    %cst_38 = arith.constant dense<0xFF800000> : vector<4x8xf32>
    %114 = vector.multi_reduction <maximumf>, %113, %cst_38 [2] : vector<4x8x8xf32> to vector<4x8xf32>
    %115 = vector.shape_cast %114 : vector<4x8xf32> to vector<4x8x1xf32>
    %116 = vector.broadcast %115 : vector<4x8x1xf32> to vector<4x8x8xf32>
    %117 = arith.subf %113, %116 : vector<4x8x8xf32>
    %118 = math.exp %117 : vector<4x8x8xf32>
    %cst_39 = arith.constant dense<0.000000e+00> : vector<4x8xf32>
    %119 = vector.multi_reduction <add>, %118, %cst_39 [2] : vector<4x8x8xf32> to vector<4x8xf32>
    %120 = vector.shape_cast %119 : vector<4x8xf32> to vector<4x8x1xf32>
    %121 = vector.broadcast %120 : vector<4x8x1xf32> to vector<4x8x8xf32>
    %122 = arith.divf %118, %121 : vector<4x8x8xf32>
    "tpu.trace_start"() <{level = 10 : i32, message = "hqk,hkd->hqd"}> : () -> ()
    %cst_40 = arith.constant dense<0.000000e+00> : vector<4x8x8xf32>
    %123 = tpu.matmul %122, %101, %cst_40 {dimension_numbers = #tpu.dot_dimension_numbers<[2], [1], [1], [2], [0, 0, 0, 1, 1, 2], [0], [0]>} : vector<4x8x8xf32>, vector<4x8x8xf32>, vector<4x8x8xf32> -> vector<4x8x8xf32>
    "tpu.trace_stop"() : () -> ()
    "tpu.trace_start"() <{level = 10 : i32, message = "hqd,hde->hqe"}> : () -> ()
    %cst_41 = arith.constant dense<0.000000e+00> : vector<4x8x32xf32>
    %124 = tpu.matmul %123, %35, %cst_41 {dimension_numbers = #tpu.dot_dimension_numbers<[2], [1], [1], [2], [0, 0, 0, 1, 1, 2], [0], [0]>} : vector<4x8x8xf32>, vector<4x8x32xf32>, vector<4x8x32xf32> -> vector<4x8x32xf32>
    "tpu.trace_stop"() : () -> ()
    %cst_42 = arith.constant dense<0.000000e+00> : vector<8x32xf32>
    %125 = vector.multi_reduction <add>, %124, %cst_42 [0] : vector<4x8x32xf32> to vector<8x32xf32>
    %126 = tpu.concatenate %98, %125 in 0 : vector<8x32xf32>, vector<8x32xf32> -> vector<16x32xf32>
    %127 = vector.broadcast %37 : vector<1x32xf32> to vector<16x32xf32>
    %128 = arith.addf %126, %127 : vector<16x32xf32>
    %129 = arith.addf %0, %128 : vector<16x32xf32>
    %130 = vector.extract_strided_slice %4 {offsets = [2, 0], sizes = [1, 32], strides = [1, 1]} : vector<6x32xf32> to vector<1x32xf32>
    %131 = vector.extract_strided_slice %4 {offsets = [3, 0], sizes = [1, 32], strides = [1, 1]} : vector<6x32xf32> to vector<1x32xf32>
    %cst_43 = arith.constant dense<0.000000e+00> : vector<16xf32>
    %132 = vector.multi_reduction <add>, %129, %cst_43 [1] : vector<16x32xf32> to vector<16xf32>
    %133 = vector.shape_cast %132 : vector<16xf32> to vector<16x1xf32>
    %cst_44 = arith.constant 3.200000e+01 : f32
    %134 = vector.broadcast %cst_44 : f32 to vector<16x1xf32>
    %135 = arith.divf %133, %134 : vector<16x1xf32>
    %136 = vector.broadcast %135 : vector<16x1xf32> to vector<16x32xf32>
    %137 = arith.subf %129, %136 : vector<16x32xf32>
    %138 = arith.mulf %137, %137 : vector<16x32xf32>
    %cst_45 = arith.constant dense<0.000000e+00> : vector<16xf32>
    %139 = vector.multi_reduction <add>, %138, %cst_45 [1] : vector<16x32xf32> to vector<16xf32>
    %140 = vector.shape_cast %139 : vector<16xf32> to vector<16x1xf32>
    %cst_46 = arith.constant 3.100000e+01 : f32
    %141 = vector.broadcast %cst_46 : f32 to vector<16x1xf32>
    %142 = arith.divf %140, %141 : vector<16x1xf32>
    %143 = vector.broadcast %135 : vector<16x1xf32> to vector<16x32xf32>
    %144 = arith.subf %129, %143 : vector<16x32xf32>
    %145 = vector.broadcast %130 : vector<1x32xf32> to vector<16x32xf32>
    %146 = arith.mulf %145, %144 : vector<16x32xf32>
    %147 = math.sqrt %142 : vector<16x1xf32>
    %cst_47 = arith.constant 9.99999997E-7 : f32
    %148 = vector.broadcast %cst_47 : f32 to vector<16x1xf32>
    %149 = arith.addf %147, %148 : vector<16x1xf32>
    %150 = vector.broadcast %149 : vector<16x1xf32> to vector<16x32xf32>
    %151 = arith.divf %146, %150 : vector<16x32xf32>
    %152 = vector.broadcast %131 : vector<1x32xf32> to vector<16x32xf32>
    %153 = arith.addf %151, %152 : vector<16x32xf32>
    %154 = vector.extract_strided_slice %5 {offsets = [1, 0, 0], sizes = [1, 32, 96], strides = [1, 1, 1]} : vector<2x32x96xf32> to vector<1x32x96xf32>
    %155 = vector.shape_cast %154 : vector<1x32x96xf32> to vector<32x96xf32>
    %156 = vector.extract_strided_slice %6 {offsets = [1, 0, 0, 0], sizes = [1, 4, 8, 32], strides = [1, 1, 1, 1]} : vector<2x4x8x32xf32> to vector<1x4x8x32xf32>
    %157 = vector.shape_cast %156 : vector<1x4x8x32xf32> to vector<4x8x32xf32>
    %158 = vector.extract_strided_slice %7 {offsets = [1, 0], sizes = [1, 128], strides = [1, 1]} : vector<2x128xf32> to vector<1x128xf32>
    %159 = vector.extract_strided_slice %158 {offsets = [0, 96], sizes = [1, 32], strides = [1, 1]} : vector<1x128xf32> to vector<1x32xf32>
    %160 = vector.extract_strided_slice %155 {offsets = [0, 0], sizes = [32, 32], strides = [1, 1]} : vector<32x96xf32> to vector<32x32xf32>
    %cst_48 = arith.constant dense<0.000000e+00> : vector<16x32xf32>
    %161 = tpu.matmul %153, %160, %cst_48 {dimension_numbers = #tpu.dot_dimension_numbers<[1], [0], [0], [1], [0, 0, 1, 1], [], []>} : vector<16x32xf32>, vector<32x32xf32>, vector<16x32xf32> -> vector<16x32xf32>
    %162 = vector.extract_strided_slice %158 {offsets = [0, 0], sizes = [1, 32], strides = [1, 1]} : vector<1x128xf32> to vector<1x32xf32>
    %163 = vector.broadcast %162 : vector<1x32xf32> to vector<16x32xf32>
    %164 = arith.addf %161, %163 : vector<16x32xf32>
    %165 = vector.extract_strided_slice %155 {offsets = [0, 32], sizes = [32, 64], strides = [1, 1]} : vector<32x96xf32> to vector<32x64xf32>
    %cst_49 = arith.constant dense<0.000000e+00> : vector<16x64xf32>
    %166 = tpu.matmul %1, %165, %cst_49 {dimension_numbers = #tpu.dot_dimension_numbers<[1], [0], [0], [1], [0, 0, 1, 1], [], []>} : vector<16x32xf32>, vector<32x64xf32>, vector<16x64xf32> -> vector<16x64xf32>
    %167 = vector.extract_strided_slice %158 {offsets = [0, 32], sizes = [1, 64], strides = [1, 1]} : vector<1x128xf32> to vector<1x64xf32>
    %168 = vector.broadcast %167 : vector<1x64xf32> to vector<16x64xf32>
    %169 = arith.addf %166, %168 : vector<16x64xf32>
    %170 = vector.extract_strided_slice %169 {offsets = [0, 0], sizes = [16, 32], strides = [1, 1]} : vector<16x64xf32> to vector<16x32xf32>
    %171 = vector.extract_strided_slice %169 {offsets = [0, 32], sizes = [16, 32], strides = [1, 1]} : vector<16x64xf32> to vector<16x32xf32>
    %172 = vector.extract_strided_slice %164 {offsets = [0, 0], sizes = [16, 8], strides = [1, 1]} : vector<16x32xf32> to vector<16x8xf32>
    %173 = vector.extract_strided_slice %164 {offsets = [0, 8], sizes = [16, 8], strides = [1, 1]} : vector<16x32xf32> to vector<16x8xf32>
    %174 = vector.extract_strided_slice %164 {offsets = [0, 16], sizes = [16, 8], strides = [1, 1]} : vector<16x32xf32> to vector<16x8xf32>
    %175 = vector.extract_strided_slice %164 {offsets = [0, 24], sizes = [16, 8], strides = [1, 1]} : vector<16x32xf32> to vector<16x8xf32>
    %176 = vector.shape_cast %172 : vector<16x8xf32> to vector<1x16x8xf32>
    %177 = vector.shape_cast %173 : vector<16x8xf32> to vector<1x16x8xf32>
    %178 = vector.shape_cast %174 : vector<16x8xf32> to vector<1x16x8xf32>
    %179 = vector.shape_cast %175 : vector<16x8xf32> to vector<1x16x8xf32>
    %180 = tpu.concatenate %176, %177, %178, %179 in 0 : vector<1x16x8xf32>, vector<1x16x8xf32>, vector<1x16x8xf32>, vector<1x16x8xf32> -> vector<4x16x8xf32>
    %181 = vector.extract_strided_slice %170 {offsets = [0, 0], sizes = [16, 8], strides = [1, 1]} : vector<16x32xf32> to vector<16x8xf32>
    %182 = vector.extract_strided_slice %170 {offsets = [0, 8], sizes = [16, 8], strides = [1, 1]} : vector<16x32xf32> to vector<16x8xf32>
    %183 = vector.extract_strided_slice %170 {offsets = [0, 16], sizes = [16, 8], strides = [1, 1]} : vector<16x32xf32> to vector<16x8xf32>
    %184 = vector.extract_strided_slice %170 {offsets = [0, 24], sizes = [16, 8], strides = [1, 1]} : vector<16x32xf32> to vector<16x8xf32>
    %185 = vector.shape_cast %181 : vector<16x8xf32> to vector<1x16x8xf32>
    %186 = vector.shape_cast %182 : vector<16x8xf32> to vector<1x16x8xf32>
    %187 = vector.shape_cast %183 : vector<16x8xf32> to vector<1x16x8xf32>
    %188 = vector.shape_cast %184 : vector<16x8xf32> to vector<1x16x8xf32>
    %189 = tpu.concatenate %185, %186, %187, %188 in 0 : vector<1x16x8xf32>, vector<1x16x8xf32>, vector<1x16x8xf32>, vector<1x16x8xf32> -> vector<4x16x8xf32>
    %190 = vector.extract_strided_slice %171 {offsets = [0, 0], sizes = [16, 8], strides = [1, 1]} : vector<16x32xf32> to vector<16x8xf32>
    %191 = vector.extract_strided_slice %171 {offsets = [0, 8], sizes = [16, 8], strides = [1, 1]} : vector<16x32xf32> to vector<16x8xf32>
    %192 = vector.extract_strided_slice %171 {offsets = [0, 16], sizes = [16, 8], strides = [1, 1]} : vector<16x32xf32> to vector<16x8xf32>
    %193 = vector.extract_strided_slice %171 {offsets = [0, 24], sizes = [16, 8], strides = [1, 1]} : vector<16x32xf32> to vector<16x8xf32>
    %194 = vector.shape_cast %190 : vector<16x8xf32> to vector<1x16x8xf32>
    %195 = vector.shape_cast %191 : vector<16x8xf32> to vector<1x16x8xf32>
    %196 = vector.shape_cast %192 : vector<16x8xf32> to vector<1x16x8xf32>
    %197 = vector.shape_cast %193 : vector<16x8xf32> to vector<1x16x8xf32>
    %198 = tpu.concatenate %194, %195, %196, %197 in 0 : vector<1x16x8xf32>, vector<1x16x8xf32>, vector<1x16x8xf32>, vector<1x16x8xf32> -> vector<4x16x8xf32>
    %199 = vector.extract_strided_slice %180 {offsets = [0, 0, 0], sizes = [4, 8, 8], strides = [1, 1, 1]} : vector<4x16x8xf32> to vector<4x8x8xf32>
    %200 = vector.extract_strided_slice %189 {offsets = [0, 0, 0], sizes = [4, 8, 8], strides = [1, 1, 1]} : vector<4x16x8xf32> to vector<4x8x8xf32>
    %201 = vector.extract_strided_slice %198 {offsets = [0, 0, 0], sizes = [4, 8, 8], strides = [1, 1, 1]} : vector<4x16x8xf32> to vector<4x8x8xf32>
    "tpu.trace_start"() <{level = 10 : i32, message = "hqd,hkd->hqk"}> : () -> ()
    %cst_50 = arith.constant dense<0.000000e+00> : vector<4x8x8xf32>
    %202 = tpu.matmul %199, %200, %cst_50 {dimension_numbers = #tpu.dot_dimension_numbers<[2], [2], [1], [1], [0, 0, 0, 1, 1, 1], [0], [0]>} : vector<4x8x8xf32>, vector<4x8x8xf32>, vector<4x8x8xf32> -> vector<4x8x8xf32>
    "tpu.trace_stop"() : () -> ()
    %cst_51 = arith.constant 0.353553385 : f32
    %203 = vector.broadcast %cst_51 : f32 to vector<4x8x8xf32>
    %204 = arith.mulf %202, %203 : vector<4x8x8xf32>
    %205 = vector.extract_strided_slice %3 {offsets = [0, 0, 0], sizes = [1, 1, 8], strides = [1, 1, 1]} : vector<2x1x8xf32> to vector<1x1x8xf32>
    %206 = vector.shape_cast %205 : vector<1x1x8xf32> to vector<1x8xf32>
    %207 = vector.shape_cast %206 : vector<1x8xf32> to vector<1x1x8xf32>
    %cst_52 = arith.constant 0.000000e+00 : f32
    %208 = vector.broadcast %cst_52 : f32 to vector<1x1x8xf32>
    %209 = arith.cmpf oeq, %207, %208 : vector<1x1x8xf32>
    %cst_53 = arith.constant -1.000000e+09 : f32
    %210 = vector.shape_cast %209 : vector<1x1x8xi1> to vector<1x1x8xi1>
    %211 = vector.broadcast %210 : vector<1x1x8xi1> to vector<4x8x8xi1>
    %212 = vector.broadcast %cst_53 : f32 to vector<4x8x8xf32>
    %213 = arith.select %211, %212, %204 : vector<4x8x8xi1>, vector<4x8x8xf32>
    %cst_54 = arith.constant dense<0xFF800000> : vector<4x8xf32>
    %214 = vector.multi_reduction <maximumf>, %213, %cst_54 [2] : vector<4x8x8xf32> to vector<4x8xf32>
    %215 = vector.shape_cast %214 : vector<4x8xf32> to vector<4x8x1xf32>
    %216 = vector.broadcast %215 : vector<4x8x1xf32> to vector<4x8x8xf32>
    %217 = arith.subf %213, %216 : vector<4x8x8xf32>
    %218 = math.exp %217 : vector<4x8x8xf32>
    %cst_55 = arith.constant dense<0.000000e+00> : vector<4x8xf32>
    %219 = vector.multi_reduction <add>, %218, %cst_55 [2] : vector<4x8x8xf32> to vector<4x8xf32>
    %220 = vector.shape_cast %219 : vector<4x8xf32> to vector<4x8x1xf32>
    %221 = vector.broadcast %220 : vector<4x8x1xf32> to vector<4x8x8xf32>
    %222 = arith.divf %218, %221 : vector<4x8x8xf32>
    "tpu.trace_start"() <{level = 10 : i32, message = "hqk,hkd->hqd"}> : () -> ()
    %cst_56 = arith.constant dense<0.000000e+00> : vector<4x8x8xf32>
    %223 = tpu.matmul %222, %201, %cst_56 {dimension_numbers = #tpu.dot_dimension_numbers<[2], [1], [1], [2], [0, 0, 0, 1, 1, 2], [0], [0]>} : vector<4x8x8xf32>, vector<4x8x8xf32>, vector<4x8x8xf32> -> vector<4x8x8xf32>
    "tpu.trace_stop"() : () -> ()
    "tpu.trace_start"() <{level = 10 : i32, message = "hqd,hde->hqe"}> : () -> ()
    %cst_57 = arith.constant dense<0.000000e+00> : vector<4x8x32xf32>
    %224 = tpu.matmul %223, %157, %cst_57 {dimension_numbers = #tpu.dot_dimension_numbers<[2], [1], [1], [2], [0, 0, 0, 1, 1, 2], [0], [0]>} : vector<4x8x8xf32>, vector<4x8x32xf32>, vector<4x8x32xf32> -> vector<4x8x32xf32>
    "tpu.trace_stop"() : () -> ()
    %cst_58 = arith.constant dense<0.000000e+00> : vector<8x32xf32>
    %225 = vector.multi_reduction <add>, %224, %cst_58 [0] : vector<4x8x32xf32> to vector<8x32xf32>
    %226 = vector.extract_strided_slice %180 {offsets = [0, 8, 0], sizes = [4, 8, 8], strides = [1, 1, 1]} : vector<4x16x8xf32> to vector<4x8x8xf32>
    %227 = vector.extract_strided_slice %189 {offsets = [0, 8, 0], sizes = [4, 8, 8], strides = [1, 1, 1]} : vector<4x16x8xf32> to vector<4x8x8xf32>
    %228 = vector.extract_strided_slice %198 {offsets = [0, 8, 0], sizes = [4, 8, 8], strides = [1, 1, 1]} : vector<4x16x8xf32> to vector<4x8x8xf32>
    "tpu.trace_start"() <{level = 10 : i32, message = "hqd,hkd->hqk"}> : () -> ()
    %cst_59 = arith.constant dense<0.000000e+00> : vector<4x8x8xf32>
    %229 = tpu.matmul %226, %227, %cst_59 {dimension_numbers = #tpu.dot_dimension_numbers<[2], [2], [1], [1], [0, 0, 0, 1, 1, 1], [0], [0]>} : vector<4x8x8xf32>, vector<4x8x8xf32>, vector<4x8x8xf32> -> vector<4x8x8xf32>
    "tpu.trace_stop"() : () -> ()
    %cst_60 = arith.constant 0.353553385 : f32
    %230 = vector.broadcast %cst_60 : f32 to vector<4x8x8xf32>
    %231 = arith.mulf %229, %230 : vector<4x8x8xf32>
    %232 = vector.extract_strided_slice %3 {offsets = [1, 0, 0], sizes = [1, 1, 8], strides = [1, 1, 1]} : vector<2x1x8xf32> to vector<1x1x8xf32>
    %233 = vector.shape_cast %232 : vector<1x1x8xf32> to vector<1x8xf32>
    %234 = vector.shape_cast %233 : vector<1x8xf32> to vector<1x1x8xf32>
    %cst_61 = arith.constant 0.000000e+00 : f32
    %235 = vector.broadcast %cst_61 : f32 to vector<1x1x8xf32>
    %236 = arith.cmpf oeq, %234, %235 : vector<1x1x8xf32>
    %cst_62 = arith.constant -1.000000e+09 : f32
    %237 = vector.shape_cast %236 : vector<1x1x8xi1> to vector<1x1x8xi1>
    %238 = vector.broadcast %237 : vector<1x1x8xi1> to vector<4x8x8xi1>
    %239 = vector.broadcast %cst_62 : f32 to vector<4x8x8xf32>
    %240 = arith.select %238, %239, %231 : vector<4x8x8xi1>, vector<4x8x8xf32>
    %cst_63 = arith.constant dense<0xFF800000> : vector<4x8xf32>
    %241 = vector.multi_reduction <maximumf>, %240, %cst_63 [2] : vector<4x8x8xf32> to vector<4x8xf32>
    %242 = vector.shape_cast %241 : vector<4x8xf32> to vector<4x8x1xf32>
    %243 = vector.broadcast %242 : vector<4x8x1xf32> to vector<4x8x8xf32>
    %244 = arith.subf %240, %243 : vector<4x8x8xf32>
    %245 = math.exp %244 : vector<4x8x8xf32>
    %cst_64 = arith.constant dense<0.000000e+00> : vector<4x8xf32>
    %246 = vector.multi_reduction <add>, %245, %cst_64 [2] : vector<4x8x8xf32> to vector<4x8xf32>
    %247 = vector.shape_cast %246 : vector<4x8xf32> to vector<4x8x1xf32>
    %248 = vector.broadcast %247 : vector<4x8x1xf32> to vector<4x8x8xf32>
    %249 = arith.divf %245, %248 : vector<4x8x8xf32>
    "tpu.trace_start"() <{level = 10 : i32, message = "hqk,hkd->hqd"}> : () -> ()
    %cst_65 = arith.constant dense<0.000000e+00> : vector<4x8x8xf32>
    %250 = tpu.matmul %249, %228, %cst_65 {dimension_numbers = #tpu.dot_dimension_numbers<[2], [1], [1], [2], [0, 0, 0, 1, 1, 2], [0], [0]>} : vector<4x8x8xf32>, vector<4x8x8xf32>, vector<4x8x8xf32> -> vector<4x8x8xf32>
    "tpu.trace_stop"() : () -> ()
    "tpu.trace_start"() <{level = 10 : i32, message = "hqd,hde->hqe"}> : () -> ()
    %cst_66 = arith.constant dense<0.000000e+00> : vector<4x8x32xf32>
    %251 = tpu.matmul %250, %157, %cst_66 {dimension_numbers = #tpu.dot_dimension_numbers<[2], [1], [1], [2], [0, 0, 0, 1, 1, 2], [0], [0]>} : vector<4x8x8xf32>, vector<4x8x32xf32>, vector<4x8x32xf32> -> vector<4x8x32xf32>
    "tpu.trace_stop"() : () -> ()
    %cst_67 = arith.constant dense<0.000000e+00> : vector<8x32xf32>
    %252 = vector.multi_reduction <add>, %251, %cst_67 [0] : vector<4x8x32xf32> to vector<8x32xf32>
    %253 = tpu.concatenate %225, %252 in 0 : vector<8x32xf32>, vector<8x32xf32> -> vector<16x32xf32>
    %254 = vector.broadcast %159 : vector<1x32xf32> to vector<16x32xf32>
    %255 = arith.addf %253, %254 : vector<16x32xf32>
    %256 = arith.addf %129, %255 : vector<16x32xf32>
    %257 = vector.extract_strided_slice %4 {offsets = [4, 0], sizes = [1, 32], strides = [1, 1]} : vector<6x32xf32> to vector<1x32xf32>
    %258 = vector.extract_strided_slice %4 {offsets = [5, 0], sizes = [1, 32], strides = [1, 1]} : vector<6x32xf32> to vector<1x32xf32>
    %cst_68 = arith.constant dense<0.000000e+00> : vector<16xf32>
    %259 = vector.multi_reduction <add>, %256, %cst_68 [1] : vector<16x32xf32> to vector<16xf32>
    %260 = vector.shape_cast %259 : vector<16xf32> to vector<16x1xf32>
    %cst_69 = arith.constant 3.200000e+01 : f32
    %261 = vector.broadcast %cst_69 : f32 to vector<16x1xf32>
    %262 = arith.divf %260, %261 : vector<16x1xf32>
    %263 = vector.broadcast %262 : vector<16x1xf32> to vector<16x32xf32>
    %264 = arith.subf %256, %263 : vector<16x32xf32>
    %265 = arith.mulf %264, %264 : vector<16x32xf32>
    %cst_70 = arith.constant dense<0.000000e+00> : vector<16xf32>
    %266 = vector.multi_reduction <add>, %265, %cst_70 [1] : vector<16x32xf32> to vector<16xf32>
    %267 = vector.shape_cast %266 : vector<16xf32> to vector<16x1xf32>
    %cst_71 = arith.constant 3.100000e+01 : f32
    %268 = vector.broadcast %cst_71 : f32 to vector<16x1xf32>
    %269 = arith.divf %267, %268 : vector<16x1xf32>
    %270 = vector.broadcast %262 : vector<16x1xf32> to vector<16x32xf32>
    %271 = arith.subf %256, %270 : vector<16x32xf32>
    %272 = vector.broadcast %257 : vector<1x32xf32> to vector<16x32xf32>
    %273 = arith.mulf %272, %271 : vector<16x32xf32>
    %274 = math.sqrt %269 : vector<16x1xf32>
    %cst_72 = arith.constant 9.99999997E-7 : f32
    %275 = vector.broadcast %cst_72 : f32 to vector<16x1xf32>
    %276 = arith.addf %274, %275 : vector<16x1xf32>
    %277 = vector.broadcast %276 : vector<16x1xf32> to vector<16x32xf32>
    %278 = arith.divf %273, %277 : vector<16x32xf32>
    %279 = vector.broadcast %258 : vector<1x32xf32> to vector<16x32xf32>
    %280 = arith.addf %278, %279 : vector<16x32xf32>
    %c0_73 = arith.constant 0 : index
    %c0_74 = arith.constant 0 : index
    %281 = vector.load %arg9[%c0_73, %c0_74] : memref<32x64xf32, #tpu.memory_space<vmem>>, vector<32x64xf32>
    %cst_75 = arith.constant dense<0.000000e+00> : vector<16x64xf32>
    %282 = tpu.matmul %280, %281, %cst_75 {dimension_numbers = #tpu.dot_dimension_numbers<[1], [0], [0], [1], [0, 0, 1, 1], [], []>} : vector<16x32xf32>, vector<32x64xf32>, vector<16x64xf32> -> vector<16x64xf32>
    %c0_76 = arith.constant 0 : index
    %c0_77 = arith.constant 0 : index
    %283 = vector.load %arg11[%c0_76, %c0_77] : memref<1x96xf32, #tpu.memory_space<vmem>>, vector<1x64xf32>
    %284 = vector.broadcast %283 : vector<1x64xf32> to vector<16x64xf32>
    %285 = arith.addf %282, %284 : vector<16x64xf32>
    %cst_78 = arith.constant 0.000000e+00 : f32
    %286 = vector.broadcast %cst_78 : f32 to vector<16x64xf32>
    %287 = arith.maximumf %285, %286 : vector<16x64xf32>
    %c0_79 = arith.constant 0 : index
    %c0_80 = arith.constant 0 : index
    %288 = vector.load %arg10[%c0_79, %c0_80] : memref<64x32xf32, #tpu.memory_space<vmem>>, vector<64x32xf32>
    %cst_81 = arith.constant dense<0.000000e+00> : vector<16x32xf32>
    %289 = tpu.matmul %287, %288, %cst_81 {dimension_numbers = #tpu.dot_dimension_numbers<[1], [0], [0], [1], [0, 0, 1, 1], [], []>} : vector<16x64xf32>, vector<64x32xf32>, vector<16x32xf32> -> vector<16x32xf32>
    %290 = arith.addf %256, %289 : vector<16x32xf32>
    %c0_82 = arith.constant 0 : index
    %c64 = arith.constant 64 : index
    %291 = vector.load %arg11[%c0_82, %c64] : memref<1x96xf32, #tpu.memory_space<vmem>>, vector<1x32xf32>
    %292 = vector.broadcast %291 : vector<1x32xf32> to vector<16x32xf32>
    %293 = arith.addf %290, %292 : vector<16x32xf32>
    %c0_83 = arith.constant 0 : index
    %c0_84 = arith.constant 0 : index
    %294 = vector.load %arg12[%c0_83, %c0_84] : memref<16x32xf32, #tpu.memory_space<vmem>>, vector<16x32xf32>
    tpu.vector_store %arg12[%c0_83, %c0_84], %293 {strides = array<i32>} : memref<16x32xf32, #tpu.memory_space<vmem>>, vector<16x32xf32>,
    return
  }
  func.func @transform_0(%arg0: i32) -> (i32, i32) {
    %c0_i32 = arith.constant 0 : i32
    %c0_i32_0 = arith.constant 0 : i32
    %c0_i32_1 = arith.constant 0 : i32
    return %c0_i32, %c0_i32_0 : i32, i32
  }
  func.func @transform_1(%arg0: i32) -> (i32, i32) {
    %c0_i32 = arith.constant 0 : i32
    %c0_i32_0 = arith.constant 0 : i32
    %c0_i32_1 = arith.constant 0 : i32
    return %c0_i32, %c0_i32_0 : i32, i32
  }
  func.func @transform_2(%arg0: i32) -> (i32, i32, i32) {
    %c0_i32 = arith.constant 0 : i32
    %c0_i32_0 = arith.constant 0 : i32
    %c0_i32_1 = arith.constant 0 : i32
    %c0_i32_2 = arith.constant 0 : i32
    return %c0_i32, %c0_i32_0, %c0_i32_1 : i32, i32, i32
  }
  func.func @transform_3(%arg0: i32) -> (i32, i32, i32) {
    %c0_i32 = arith.constant 0 : i32
    %c0_i32_0 = arith.constant 0 : i32
    %c0_i32_1 = arith.constant 0 : i32
    %c0_i32_2 = arith.constant 0 : i32
    return %c0_i32, %c0_i32_0, %c0_i32_1 : i32, i32, i32
  }
  func.func @transform_4(%arg0: i32) -> (i32, i32) {
    %c0_i32 = arith.constant 0 : i32
    %c0_i32_0 = arith.constant 0 : i32
    %c0_i32_1 = arith.constant 0 : i32
    return %c0_i32, %c0_i32_0 : i32, i32
  }
  func.func @transform_5(%arg0: i32) -> (i32, i32, i32) {
    %c0_i32 = arith.constant 0 : i32
    %c0_i32_0 = arith.constant 0 : i32
    %c0_i32_1 = arith.constant 0 : i32
    %c0_i32_2 = arith.constant 0 : i32
    return %c0_i32, %c0_i32_0, %c0_i32_1 : i32, i32, i32
  }
  func.func @transform_6(%arg0: i32) -> (i32, i32, i32, i32) {
    %c0_i32 = arith.constant 0 : i32
    %c0_i32_0 = arith.constant 0 : i32
    %c0_i32_1 = arith.constant 0 : i32
    %c0_i32_2 = arith.constant 0 : i32
    %c0_i32_3 = arith.constant 0 : i32
    return %c0_i32, %c0_i32_0, %c0_i32_1, %c0_i32_2 : i32, i32, i32, i32
  }
  func.func @transform_7(%arg0: i32) -> (i32, i32) {
    %c0_i32 = arith.constant 0 : i32
    %c0_i32_0 = arith.constant 0 : i32
    %c0_i32_1 = arith.constant 0 : i32
    return %c0_i32, %c0_i32_0 : i32, i32
  }
  func.func @transform_8(%arg0: i32) -> (i32, i32) {
    %c0_i32 = arith.constant 0 : i32
    %c0_i32_0 = arith.constant 0 : i32
    %c0_i32_1 = arith.constant 0 : i32
    return %c0_i32, %c0_i32_0 : i32, i32
  }
  func.func @transform_9(%arg0: i32) -> (i32, i32) {
    %c0_i32 = arith.constant 0 : i32
    %c0_i32_0 = arith.constant 0 : i32
    %c0_i32_1 = arith.constant 0 : i32
    return %c0_i32, %c0_i32_0 : i32, i32
  }
  func.func @transform_10(%arg0: i32) -> (i32, i32) {
    %c0_i32 = arith.constant 0 : i32
    %c0_i32_0 = arith.constant 0 : i32
    %c0_i32_1 = arith.constant 0 : i32
    return %c0_i32, %c0_i32_0 : i32, i32
  }
  func.func @transform_11(%arg0: i32) -> (i32, i32) {
    %c0_i32 = arith.constant 0 : i32
    %c0_i32_0 = arith.constant 0 : i32
    %c0_i32_1 = arith.constant 0 : i32
    return %c0_i32, %c0_i32_0 : i32, i32
  }
}

</mosaic_0001>

<llo_original>
// kernel: tpu_custom_call.1
$region0: #{tpu_custom_call.1}
  #allocation0 [shape = 'u32[]', space=smem, size = 0x4, offset = 0x4, fixed_abs, tag = 'smem constant byte address 0x4 - core index']
  #allocation1 [shape = 'u32[144,128]{1,0:T(1,128)}', space=vmem, size = 0x12000, scoped, tag = 'internal scratch']
  %s0 = inlined_call_operand.hbm [shape: f32[16,32], index: 0, kind: input, shape index: {}]
  %s1 = inlined_call_operand.hbm [shape: f32[16,32], index: 1, kind: input, shape index: {}]
  %s2 = inlined_call_operand.hbm [shape: f32[2,8,8], index: 2, kind: input, shape index: {}]
  %s3 = inlined_call_operand.hbm [shape: f32[2,1,8], index: 3, kind: input, shape index: {}]
  %s4 = inlined_call_operand.vmem [shape: f32[6,32], index: 4, kind: input, shape index: {}]
  %s5 = inlined_call_operand.vmem [shape: f32[2,32,96], index: 5, kind: input, shape index: {}]
  %s6 = inlined_call_operand.hbm [shape: f32[2,4,8,32], index: 6, kind: input, shape index: {}]
  %s7 = inlined_call_operand.vmem [shape: f32[2,128], index: 7, kind: input, shape index: {}]
  %s8 = inlined_call_operand.vmem [shape: f32[32,64], index: 8, kind: input, shape index: {}]
  %s9 = inlined_call_operand.vmem [shape: f32[64,32], index: 9, kind: input, shape index: {}]
  %s10 = inlined_call_operand.vmem [shape: f32[1,96], index: 10, kind: input, shape index: {}]
  %s11 = inlined_call_operand.hbm [shape: f32[16,32], index: 11, kind: output, shape index: {}]
  %s12 = sld [smem:[#allocation0]]
  $region74: #{tpu_custom_call.1} parent=0
    _
  %s14 = ssub.s32 1, %s12
  %s15 = scalar_select 0, %s14, %s12
  $region1: #{tpu_custom_call.1} parent=0
    #allocation2 [shape = 'u8[8192]{0}', space=vmem, size = 0x2000, scoped, tag = 'input window, operand 0, single buffered']
    #allocation3 [shape = 's32[1]{0}', space=sflag, size = 0x4, scoped, tag = 'scoped memory for tpu_custom_call.1']
    #allocation4 [shape = 's32[1]{0}', space=sflag, size = 0x4, scoped, tag = 'scoped memory for tpu_custom_call.1']
    #allocation5 [shape = 'u8[8192]{0}', space=vmem, size = 0x2000, scoped, tag = 'input window, operand 1, single buffered']
    #allocation6 [shape = 's32[1]{0}', space=sflag, size = 0x4, scoped, tag = 'scoped memory for tpu_custom_call.1']
    #allocation7 [shape = 'u8[8192]{0}', space=vmem, size = 0x2000, scoped, tag = 'input window, operand 2, single buffered']
    #allocation8 [shape = 'u8[1024]{0}', space=vmem, size = 0x400, scoped, tag = 'input window, operand 3, single buffered']
    #allocation9 [shape = 's32[1]{0}', space=sflag, size = 0x4, scoped, tag = 'scoped memory for tpu_custom_call.1']
    #allocation10 [shape = 'u8[32768]{0}', space=vmem, size = 0x8000, scoped, tag = 'input window, operand 6, single buffered']
    #allocation11 [shape = 'u8[8192]{0}', space=vmem, size = 0x2000, scoped, tag = 'output window, operand 0, single buffered']
    %16 = vsyncpa [#allocation3], 0
    %17 = vsyncpa [#allocation6], 0
    %18 = vsyncpa [#allocation9], 0
    %19 = vsyncpa [#allocation4], 0
    // Predicated region
    $region2: #{tpu_custom_call.1} parent=1 // pred_check
      _
    $region3: #{tpu_custom_call.1} parent=1 // pred_check_branch
      %21 = sbr.rel (0) target = $region5
    $region4: #{tpu_custom_call.1} parent=1 // pred_region
      %s23 = ssub.s32 256, 256
      %24 = vsyncadd [#allocation3], %s23
      %s25 = sshll.u32 [#allocation2], 4
      %s26 = int_to_ptr.vmem [resolvable:$true] %s25
      %31 = dma.hbm_to_vmem [thread:$0]  %s0, 256, %s26, [#allocation3], 128, 128, 8
    $region5: #{tpu_custom_call.1} parent=1 // pred_fallthru
      _
    // Predicated region
    $region6: #{tpu_custom_call.1} parent=1 // pred_check
      _
    $region7: #{tpu_custom_call.1} parent=1 // pred_check_branch
      %33 = sbr.rel (0) target = $region9
    $region8: #{tpu_custom_call.1} parent=1 // pred_region
      %s35 = ssub.s32 256, 256
      %36 = vsyncadd [#allocation6], %s35
      %s37 = sshll.u32 [#allocation5], 4
      %s38 = int_to_ptr.vmem [resolvable:$true] %s37
      %43 = dma.hbm_to_vmem [thread:$0]  %s1, 256, %s38, [#allocation6], 128, 128, 8
    $region9: #{tpu_custom_call.1} parent=1 // pred_fallthru
      _
    // Predicated region
    $region10: #{tpu_custom_call.1} parent=1 // pred_check
      _
    $region11: #{tpu_custom_call.1} parent=1 // pred_check_branch
      %45 = sbr.rel (0) target = $region13
    $region12: #{tpu_custom_call.1} parent=1 // pred_region
      %s47 = ssub.s32 256, 256
      %48 = vsyncadd [#allocation6], %s47
      %s49 = sshll.u32 [#allocation7], 4
      %s50 = int_to_ptr.vmem [resolvable:$true] %s49
      %55 = dma.hbm_to_vmem [thread:$0]  %s2, 256, %s50, [#allocation6], 128, 128, 8
    $region13: #{tpu_custom_call.1} parent=1 // pred_fallthru
      _
    // Predicated region
    $region14: #{tpu_custom_call.1} parent=1 // pred_check
      _
    $region15: #{tpu_custom_call.1} parent=1 // pred_check_branch
      %57 = sbr.rel (0) target = $region17
    $region16: #{tpu_custom_call.1} parent=1 // pred_region
      %s59 = ssub.s32 32, 32
      %60 = vsyncadd [#allocation9], %s59
      %s61 = sshll.u32 [#allocation8], 4
      %s62 = int_to_ptr.vmem [resolvable:$true] %s61
      %67 = dma.hbm_to_vmem [thread:$0]  %s3, 32, %s62, [#allocation9], 16, 16, 1
    $region17: #{tpu_custom_call.1} parent=1 // pred_fallthru
      _
    // Predicated region
    $region18: #{tpu_custom_call.1} parent=1 // pred_check
      _
    $region19: #{tpu_custom_call.1} parent=1 // pred_check_branch
      %69 = sbr.rel (0) target = $region21
    $region20: #{tpu_custom_call.1} parent=1 // pred_region
      _
    $region21: #{tpu_custom_call.1} parent=1 // pred_fallthru
      _
    // Predicated region
    $region22: #{tpu_custom_call.1} parent=1 // pred_check
      _
    $region23: #{tpu_custom_call.1} parent=1 // pred_check_branch
      %71 = sbr.rel (0) target = $region25
    $region24: #{tpu_custom_call.1} parent=1 // pred_region
      _
    $region25: #{tpu_custom_call.1} parent=1 // pred_fallthru
      _
    // Predicated region
    $region26: #{tpu_custom_call.1} parent=1 // pred_check
      _
    $region27: #{tpu_custom_call.1} parent=1 // pred_check_branch
      %73 = sbr.rel (0) target = $region29
    $region28: #{tpu_custom_call.1} parent=1 // pred_region
      %s75 = ssub.s32 1024, 1024
      %76 = vsyncadd [#allocation9], %s75
      %s77 = sshll.u32 [#allocation10], 4
      %s78 = int_to_ptr.vmem [resolvable:$true] %s77
      %83 = dma.hbm_to_vmem [thread:$0]  %s6, 1024, %s78, [#allocation9], 128, 128, 8
    $region29: #{tpu_custom_call.1} parent=1 // pred_fallthru
      _
    // Predicated region
    $region30: #{tpu_custom_call.1} parent=1 // pred_check
      _
    $region31: #{tpu_custom_call.1} parent=1 // pred_check_branch
      %85 = sbr.rel (0) target = $region33
    $region32: #{tpu_custom_call.1} parent=1 // pred_region
      _
    $region33: #{tpu_custom_call.1} parent=1 // pred_fallthru
      _
    // Predicated region
    $region34: #{tpu_custom_call.1} parent=1 // pred_check
      _
    $region35: #{tpu_custom_call.1} parent=1 // pred_check_branch
      %87 = sbr.rel (0) target = $region37
    $region36: #{tpu_custom_call.1} parent=1 // pred_region
      _
    $region37: #{tpu_custom_call.1} parent=1 // pred_fallthru
      _
    // Predicated region
    $region38: #{tpu_custom_call.1} parent=1 // pred_check
      _
    $region39: #{tpu_custom_call.1} parent=1 // pred_check_branch
      %89 = sbr.rel (0) target = $region41
    $region40: #{tpu_custom_call.1} parent=1 // pred_region
      _
    $region41: #{tpu_custom_call.1} parent=1 // pred_fallthru
      _
    // Predicated region
    $region42: #{tpu_custom_call.1} parent=1 // pred_check
      _
    $region43: #{tpu_custom_call.1} parent=1 // pred_check_branch
      %91 = sbr.rel (0) target = $region45
    $region44: #{tpu_custom_call.1} parent=1 // pred_region
      _
    $region45: #{tpu_custom_call.1} parent=1 // pred_fallthru
      _
    // Predicated region
    $region46: #{tpu_custom_call.1} parent=1 // pred_check
      _
    $region47: #{tpu_custom_call.1} parent=1 // pred_check_branch
      %93 = sbr.rel (0) target = $region49
    $region48: #{tpu_custom_call.1} parent=1 // pred_region
      %94 = dma.done [#allocation3], 256
    $region49: #{tpu_custom_call.1} parent=1 // pred_fallthru
      _
    // Predicated region
    $region50: #{tpu_custom_call.1} parent=1 // pred_check
      _
    $region51: #{tpu_custom_call.1} parent=1 // pred_check_branch
      %96 = sbr.rel (0) target = $region53
    $region52: #{tpu_custom_call.1} parent=1 // pred_region
      %97 = dma.done [#allocation6], 256
    $region53: #{tpu_custom_call.1} parent=1 // pred_fallthru
      _
    // Predicated region
    $region54: #{tpu_custom_call.1} parent=1 // pred_check
      _
    $region55: #{tpu_custom_call.1} parent=1 // pred_check_branch
      %99 = sbr.rel (0) target = $region57
    $region56: #{tpu_custom_call.1} parent=1 // pred_region
      %100 = dma.done [#allocation6], 256
    $region57: #{tpu_custom_call.1} parent=1 // pred_fallthru
      _
    // Predicated region
    $region58: #{tpu_custom_call.1} parent=1 // pred_check
      _
    $region59: #{tpu_custom_call.1} parent=1 // pred_check_branch
      %102 = sbr.rel (0) target = $region61
    $region60: #{tpu_custom_call.1} parent=1 // pred_region
      %103 = dma.done [#allocation9], 32
    $region61: #{tpu_custom_call.1} parent=1 // pred_fallthru
      _
    // Predicated region
    $region62: #{tpu_custom_call.1} parent=1 // pred_check
      _
    $region63: #{tpu_custom_call.1} parent=1 // pred_check_branch
      %105 = sbr.rel (0) target = $region65
    $region64: #{tpu_custom_call.1} parent=1 // pred_region
      %106 = dma.done [#allocation9], 1024
    $region65: #{tpu_custom_call.1} parent=1 // pred_fallthru
      _
    %v107 = vld [vmem:[#allocation2] sm:$0xff]
    %v108 = vld [vmem:[#allocation2 + $0x8] sm:$0xff]
    %v109 = vld [vmem:[#allocation5] sm:$0xff]
    %v110 = vld [vmem:[#allocation5 + $0x8] sm:$0xff]
    %v111 = vld [vmem:[#allocation7] sm:$0xff]
    %v112 = vld [vmem:[#allocation7 + $0x8] sm:$0xff]
    %v113 = vld [vmem:[#allocation8] sm:$0x1]
    %v114 = vld [vmem:[#allocation8 + $0x1] sm:$0x1]
    %v115 = vld [vmem:[%s4] sm:$0x3f]
    %v116 = vld [vmem:[%s5] sm:$0xff]
    %v117 = vld [vmem:[%s5 + $0x8] sm:$0xff]
    %v118 = vld [vmem:[%s5 + $0x10] sm:$0xff]
    %v119 = vld [vmem:[%s5 + $0x18] sm:$0xff]
    %v120 = vld [vmem:[%s5 + $0x20] sm:$0xff]
    %v121 = vld [vmem:[%s5 + $0x28] sm:$0xff]
    %v122 = vld [vmem:[%s5 + $0x30] sm:$0xff]
    %v123 = vld [vmem:[%s5 + $0x38] sm:$0xff]
    %v124 = vld [vmem:[#allocation10] sm:$0xff]
    %v125 = vld [vmem:[#allocation10 + $0x8] sm:$0xff]
    %v126 = vld [vmem:[#allocation10 + $0x10] sm:$0xff]
    %v127 = vld [vmem:[#allocation10 + $0x18] sm:$0xff]
    %v128 = vld [vmem:[#allocation10 + $0x20] sm:$0xff]
    %v129 = vld [vmem:[#allocation10 + $0x28] sm:$0xff]
    %v130 = vld [vmem:[#allocation10 + $0x30] sm:$0xff]
    %v131 = vld [vmem:[#allocation10 + $0x38] sm:$0xff]
    %v132 = vld [vmem:[%s7] sm:$0x3]
    %vm133 = vcmask 261120
    %v134 = vsel %vm133, %v107, 0.0
    %135 = vadd.xlane.f32.xlu0 %v134
    %v136 = vpop.xlane.xlu0 %135
    %v137 = vsel %vm133, %v108, 0.0
    %138 = vadd.xlane.f32.xlu0 %v137
    %v139 = vpop.xlane.xlu0 %138
    %v140 = vrcp.pop 32.0
    %v141 = vmul.f32 %v136, %v140
    %v142 = vmul.f32 %v139, %v140
    %v143 = vsub.f32 %v107, %v141
    %v144 = vsub.f32 %v108, %v142
    %v145 = vmul.f32 %v143, %v143
    %v146 = vmul.f32 %v144, %v144
    %v147 = vsel %vm133, %v145, 0.0
    %148 = vadd.xlane.f32.xlu0 %v147
    %v149 = vpop.xlane.xlu0 %148
    %v150 = vsel %vm133, %v146, 0.0
    %151 = vadd.xlane.f32.xlu0 %v150
    %v152 = vpop.xlane.xlu0 %151
    %v153 = vrcp.pop 31.0
    %v154 = vmul.f32 %v149, %v153
    %v155 = vmul.f32 %v152, %v153
    %v156 = vlaneseq
    %v157 = vshrl.u32 %v156, 7
    %v158 = vsub.s32 0, %v157
    %v159 = vrot.slane %v115, %v158
    %v160 = vmul.f32 %v159, %v143
    %v161 = vmul.f32 %v159, %v144
    %v162 = vrsqrt.pop %v154
    %v163 = vmul.f32 %v154, %v162
    %vm164 = vcmp.eq.f32.partialorder %v154, inf
    %v165 = vsel %vm164, %v154, %v163
    %vm166 = vcmp.eq.f32.partialorder %v154, 0.0
    %v167 = vand.u32 %v154, 2147483648
    %v168 = vsel %vm166, %v167, %v165
    %v169 = vrsqrt.pop %v155
    %v170 = vmul.f32 %v155, %v169
    %vm171 = vcmp.eq.f32.partialorder %v155, inf
    %v172 = vsel %vm171, %v155, %v170
    %vm173 = vcmp.eq.f32.partialorder %v155, 0.0
    %v174 = vand.u32 %v155, 2147483648
    %v175 = vsel %vm173, %v174, %v172
    %v176 = vadd.f32 %v168, 1e-06
    %v177 = vadd.f32 %v175, 1e-06
    %v178 = vrcp.pop %v176
    %v179 = vmul.f32 %v160, %v178
    %v180 = vrcp.pop %v177
    %v181 = vmul.f32 %v161, %v180
    %v182 = vlaneseq
    %v183 = vshrl.u32 %v182, 7
    %v184 = vsub.s32 1, %v183
    %v185 = vrot.slane %v115, %v184
    %v186 = vadd.f32 %v179, %v185
    %v187 = vadd.f32 %v181, %v185
    %v188 = vlaneseq
    %v189 = vshrl.u32 %v188, 7
    %v190 = vsub.s32 0, %v189
    %v191 = vrot.slane %v132, %v190
    %v193 = vsel %vm133, %v186, 0
    %v196 = vsel %vm133, %v187, 0
    %198 = vmatprep.subr.mxu0 0.0
    %199 = vmatpush1.msra.mxu0 0.0
    %200 = vmatprep.subr.mxu0 0.0
    %201 = vmatpush1.msra.mxu0 0.0
    %202 = vmatprep.subr.mxu0 0.0
    %203 = vmatpush1.msra.mxu0 0.0
    %204 = vmatprep.subr.mxu0 0.0
    %205 = vmatpush1.msra.mxu0 0.0
    %206 = vmatprep.subr.mxu0 0.0
    %207 = vmatpush1.msra.mxu0 0.0
    %208 = vmatprep.subr.mxu0 0.0
    %209 = vmatpush1.msra.mxu0 0.0
    %210 = vmatprep.subr.mxu0 0.0
    %211 = vmatpush1.msra.mxu0 0.0
    %212 = vmatprep.subr.mxu0 0.0
    %213 = vmatpush1.msra.mxu0 0.0
    %214 = vmatprep.subr.mxu0 0.0
    %215 = vmatpush1.msra.mxu0 0.0
    %216 = vmatprep.subr.mxu0 0.0
    %217 = vmatpush1.msra.mxu0 0.0
    %218 = vmatprep.subr.mxu0 0.0
    %219 = vmatpush1.msra.mxu0 0.0
    %220 = vmatprep.subr.mxu0 0.0
    %221 = vmatpush1.msra.mxu0 0.0
    %222 = vmatprep.subr.mxu0 0.0
    %223 = vmatpush1.msra.mxu0 %v119
    %224 = vmatprep.subr.mxu0 0.0
    %225 = vmatpush1.msra.mxu0 %v118
    %226 = vmatprep.subr.mxu0 0.0
    %227 = vmatpush1.msra.mxu0 %v117
    %228 = vmatprep.subr.mxu0 0.0
    %229 = vmatpush1.msra.mxu0 %v116
    %230 = vmatprep.subr.mxu0 0.0
    %231 = vmatpush2.msra.mxu0 0.0
    %232 = vmatprep.subr.mxu0 0.0
    %233 = vmatpush2.msra.mxu0 0.0
    %234 = vmatprep.subr.mxu0 0.0
    %235 = vmatpush2.msra.mxu0 0.0
    %236 = vmatprep.subr.mxu0 0.0
    %237 = vmatpush2.msra.mxu0 0.0
    %238 = vmatprep.subr.mxu0 0.0
    %239 = vmatpush2.msra.mxu0 0.0
    %240 = vmatprep.subr.mxu0 0.0
    %241 = vmatpush2.msra.mxu0 0.0
    %242 = vmatprep.subr.mxu0 0.0
    %243 = vmatpush2.msra.mxu0 0.0
    %244 = vmatprep.subr.mxu0 0.0
    %245 = vmatpush2.msra.mxu0 0.0
    %246 = vmatprep.subr.mxu0 0.0
    %247 = vmatpush2.msra.mxu0 0.0
    %248 = vmatprep.subr.mxu0 0.0
    %249 = vmatpush2.msra.mxu0 0.0
    %250 = vmatprep.subr.mxu0 0.0
    %251 = vmatpush2.msra.mxu0 0.0
    %252 = vmatprep.subr.mxu0 0.0
    %253 = vmatpush2.msra.mxu0 0.0
    %254 = vmatprep.subr.mxu0 0.0
    %255 = vmatpush2.msra.mxu0 0.0
    %256 = vmatprep.subr.mxu0 0.0
    %257 = vmatpush2.msra.mxu0 0.0
    %258 = vmatprep.subr.mxu0 0.0
    %259 = vmatpush2.msra.mxu0 0.0
    %260 = vmatprep.subr.mxu0 0.0
    %261 = vmatpush2.msra.mxu0 0.0
    %262 = vmatprep.mubr.f32.mxu0 0.0
    %263 = vmatmul.mubr.f32.gmra.mxu0 %v193
    %v264 = vpop.f32.mrf.mxu0
    %v265 = vadd.f32 %v191, %v264
    %v266 = vpop.f32.mrf.mxu0
    %267 = vmatprep.mubr.f32.mxu0 0.0
    %268 = vmatmul.mubr.f32.gmra.mxu0 %v196
    %v269 = vpop.f32.mrf.mxu0
    %v270 = vadd.f32 %v191, %v269
    %v271 = vpop.f32.mrf.mxu0
    %272 = vdwg.mxu0
    %275 = vrot.lane.b32.xlu0 %v265, 120
    %v276 = vpop.permute.xlu0 %275
    %277 = vrot.lane.b32.xlu0 %v270, 120
    %v278 = vpop.permute.xlu0 %277
    %279 = vrot.lane.b32.xlu0 %v265, 112
    %v280 = vpop.permute.xlu0 %279
    %281 = vrot.lane.b32.xlu0 %v270, 112
    %v282 = vpop.permute.xlu0 %281
    %283 = vrot.lane.b32.xlu0 %v265, 104
    %v284 = vpop.permute.xlu0 %283
    %285 = vrot.lane.b32.xlu0 %v270, 104
    %v286 = vpop.permute.xlu0 %285
    %287 = vrot.lane.b32.xlu0 %v265, 96
    %v288 = vpop.permute.xlu0 %287
    %vm289 = vcmask 64512
    %v290 = vsel %vm289, %v265, 0
    %v292 = vsel %vm289, %v288, 0
    %294 = vmatprep.subr.mxu0 0.0
    %295 = vmatpush1.xpose.msra.mxu0 0.0
    %296 = vmatprep.subr.mxu0 0.0
    %297 = vmatpush1.xpose.msra.mxu0 0.0
    %298 = vmatprep.subr.mxu0 0.0
    %299 = vmatpush1.xpose.msra.mxu0 0.0
    %300 = vmatprep.subr.mxu0 0.0
    %301 = vmatpush1.xpose.msra.mxu0 0.0
    %302 = vmatprep.subr.mxu0 0.0
    %303 = vmatpush1.xpose.msra.mxu0 0.0
    %304 = vmatprep.subr.mxu0 0.0
    %305 = vmatpush1.xpose.msra.mxu0 0.0
    %306 = vmatprep.subr.mxu0 0.0
    %307 = vmatpush1.xpose.msra.mxu0 0.0
    %308 = vmatprep.subr.mxu0 0.0
    %309 = vmatpush1.xpose.msra.mxu0 0.0
    %310 = vmatprep.subr.mxu0 0.0
    %311 = vmatpush1.xpose.msra.mxu0 0.0
    %312 = vmatprep.subr.mxu0 0.0
    %313 = vmatpush1.xpose.msra.mxu0 0.0
    %314 = vmatprep.subr.mxu0 0.0
    %315 = vmatpush1.xpose.msra.mxu0 0.0
    %316 = vmatprep.subr.mxu0 0.0
    %317 = vmatpush1.xpose.msra.mxu0 0.0
    %318 = vmatprep.subr.mxu0 0.0
    %319 = vmatpush1.xpose.msra.mxu0 0.0
    %320 = vmatprep.subr.mxu0 0.0
    %321 = vmatpush1.xpose.msra.mxu0 0.0
    %322 = vmatprep.subr.mxu0 0.0
    %323 = vmatpush1.xpose.msra.mxu0 0.0
    %324 = vmatprep.subr.mxu0 0.0
    %325 = vmatpush1.xpose.msra.mxu0 %v292
    %326 = vmatprep.subr.mxu0 0.0
    %327 = vmatpush2.xpose.msra.mxu0 0.0
    %328 = vmatprep.subr.mxu0 0.0
    %329 = vmatpush2.xpose.msra.mxu0 0.0
    %330 = vmatprep.subr.mxu0 0.0
    %331 = vmatpush2.xpose.msra.mxu0 0.0
    %332 = vmatprep.subr.mxu0 0.0
    %333 = vmatpush2.xpose.msra.mxu0 0.0
    %334 = vmatprep.subr.mxu0 0.0
    %335 = vmatpush2.xpose.msra.mxu0 0.0
    %336 = vmatprep.subr.mxu0 0.0
    %337 = vmatpush2.xpose.msra.mxu0 0.0
    %338 = vmatprep.subr.mxu0 0.0
    %339 = vmatpush2.xpose.msra.mxu0 0.0
    %340 = vmatprep.subr.mxu0 0.0
    %341 = vmatpush2.xpose.msra.mxu0 0.0
    %342 = vmatprep.subr.mxu0 0.0
    %343 = vmatpush2.xpose.msra.mxu0 0.0
    %344 = vmatprep.subr.mxu0 0.0
    %345 = vmatpush2.xpose.msra.mxu0 0.0
    %346 = vmatprep.subr.mxu0 0.0
    %347 = vmatpush2.xpose.msra.mxu0 0.0
    %348 = vmatprep.subr.mxu0 0.0
    %349 = vmatpush2.xpose.msra.mxu0 0.0
    %350 = vmatprep.subr.mxu0 0.0
    %351 = vmatpush2.xpose.msra.mxu0 0.0
    %352 = vmatprep.subr.mxu0 0.0
    %353 = vmatpush2.xpose.msra.mxu0 0.0
    %354 = vmatprep.subr.mxu0 0.0
    %355 = vmatpush2.xpose.msra.mxu0 0.0
    %356 = vmatprep.subr.mxu0 0.0
    %357 = vmatpush2.xpose.msra.mxu0 0.0
    %358 = vmatprep.mubr.f32.mxu0 0.0
    %359 = vmatmul.mubr.f32.gmra.mxu0 %v290
    %v360 = vpop.f32.mrf.mxu0
    %v361 = vadd.f32 0.0, %v360
    %v362 = vpop.f32.mrf.mxu0
    %363 = vdwg.mxu0
    %364 = vrot.lane.b32.xlu0 %v276, 96
    %v365 = vpop.permute.xlu0 %364
    %v366 = vsel %vm289, %v276, 0
    %v368 = vsel %vm289, %v365, 0
    %370 = vmatprep.subr.mxu0 0.0
    %371 = vmatpush1.xpose.msra.mxu0 0.0
    %372 = vmatprep.subr.mxu0 0.0
    %373 = vmatpush1.xpose.msra.mxu0 0.0
    %374 = vmatprep.subr.mxu0 0.0
    %375 = vmatpush1.xpose.msra.mxu0 0.0
    %376 = vmatprep.subr.mxu0 0.0
    %377 = vmatpush1.xpose.msra.mxu0 0.0
    %378 = vmatprep.subr.mxu0 0.0
    %379 = vmatpush1.xpose.msra.mxu0 0.0
    %380 = vmatprep.subr.mxu0 0.0
    %381 = vmatpush1.xpose.msra.mxu0 0.0
    %382 = vmatprep.subr.mxu0 0.0
    %383 = vmatpush1.xpose.msra.mxu0 0.0
    %384 = vmatprep.subr.mxu0 0.0
    %385 = vmatpush1.xpose.msra.mxu0 0.0
    %386 = vmatprep.subr.mxu0 0.0
    %387 = vmatpush1.xpose.msra.mxu0 0.0
    %388 = vmatprep.subr.mxu0 0.0
    %389 = vmatpush1.xpose.msra.mxu0 0.0
    %390 = vmatprep.subr.mxu0 0.0
    %391 = vmatpush1.xpose.msra.mxu0 0.0
    %392 = vmatprep.subr.mxu0 0.0
    %393 = vmatpush1.xpose.msra.mxu0 0.0
    %394 = vmatprep.subr.mxu0 0.0
    %395 = vmatpush1.xpose.msra.mxu0 0.0
    %396 = vmatprep.subr.mxu0 0.0
    %397 = vmatpush1.xpose.msra.mxu0 0.0
    %398 = vmatprep.subr.mxu0 0.0
    %399 = vmatpush1.xpose.msra.mxu0 0.0
    %400 = vmatprep.subr.mxu0 0.0
    %401 = vmatpush1.xpose.msra.mxu0 %v368
    %402 = vmatprep.subr.mxu0 0.0
    %403 = vmatpush2.xpose.msra.mxu0 0.0
    %404 = vmatprep.subr.mxu0 0.0
    %405 = vmatpush2.xpose.msra.mxu0 0.0
    %406 = vmatprep.subr.mxu0 0.0
    %407 = vmatpush2.xpose.msra.mxu0 0.0
    %408 = vmatprep.subr.mxu0 0.0
    %409 = vmatpush2.xpose.msra.mxu0 0.0
    %410 = vmatprep.subr.mxu0 0.0
    %411 = vmatpush2.xpose.msra.mxu0 0.0
    %412 = vmatprep.subr.mxu0 0.0
    %413 = vmatpush2.xpose.msra.mxu0 0.0
    %414 = vmatprep.subr.mxu0 0.0
    %415 = vmatpush2.xpose.msra.mxu0 0.0
    %416 = vmatprep.subr.mxu0 0.0
    %417 = vmatpush2.xpose.msra.mxu0 0.0
    %418 = vmatprep.subr.mxu0 0.0
    %419 = vmatpush2.xpose.msra.mxu0 0.0
    %420 = vmatprep.subr.mxu0 0.0
    %421 = vmatpush2.xpose.msra.mxu0 0.0
    %422 = vmatprep.subr.mxu0 0.0
    %423 = vmatpush2.xpose.msra.mxu0 0.0
    %424 = vmatprep.subr.mxu0 0.0
    %425 = vmatpush2.xpose.msra.mxu0 0.0
    %426 = vmatprep.subr.mxu0 0.0
    %427 = vmatpush2.xpose.msra.mxu0 0.0
    %428 = vmatprep.subr.mxu0 0.0
    %429 = vmatpush2.xpose.msra.mxu0 0.0
    %430 = vmatprep.subr.mxu0 0.0
    %431 = vmatpush2.xpose.msra.mxu0 0.0
    %432 = vmatprep.subr.mxu0 0.0
    %433 = vmatpush2.xpose.msra.mxu0 0.0
    %434 = vmatprep.mubr.f32.mxu0 0.0
    %435 = vmatmul.mubr.f32.gmra.mxu0 %v366
    %v436 = vpop.f32.mrf.mxu0
    %v437 = vadd.f32 0.0, %v436
    %v438 = vpop.f32.mrf.mxu0
    %439 = vdwg.mxu0
    %440 = vrot.lane.b32.xlu0 %v280, 96
    %v441 = vpop.permute.xlu0 %440
    %v442 = vsel %vm289, %v280, 0
    %v444 = vsel %vm289, %v441, 0
    %446 = vmatprep.subr.mxu0 0.0
    %447 = vmatpush1.xpose.msra.mxu0 0.0
    %448 = vmatprep.subr.mxu0 0.0
    %449 = vmatpush1.xpose.msra.mxu0 0.0
    %450 = vmatprep.subr.mxu0 0.0
    %451 = vmatpush1.xpose.msra.mxu0 0.0
    %452 = vmatprep.subr.mxu0 0.0
    %453 = vmatpush1.xpose.msra.mxu0 0.0
    %454 = vmatprep.subr.mxu0 0.0
    %455 = vmatpush1.xpose.msra.mxu0 0.0
    %456 = vmatprep.subr.mxu0 0.0
    %457 = vmatpush1.xpose.msra.mxu0 0.0
    %458 = vmatprep.subr.mxu0 0.0
    %459 = vmatpush1.xpose.msra.mxu0 0.0
    %460 = vmatprep.subr.mxu0 0.0
    %461 = vmatpush1.xpose.msra.mxu0 0.0
    %462 = vmatprep.subr.mxu0 0.0
    %463 = vmatpush1.xpose.msra.mxu0 0.0
    %464 = vmatprep.subr.mxu0 0.0
    %465 = vmatpush1.xpose.msra.mxu0 0.0
    %466 = vmatprep.subr.mxu0 0.0
    %467 = vmatpush1.xpose.msra.mxu0 0.0
    %468 = vmatprep.subr.mxu0 0.0
    %469 = vmatpush1.xpose.msra.mxu0 0.0
    %470 = vmatprep.subr.mxu0 0.0
    %471 = vmatpush1.xpose.msra.mxu0 0.0
    %472 = vmatprep.subr.mxu0 0.0
    %473 = vmatpush1.xpose.msra.mxu0 0.0
    %474 = vmatprep.subr.mxu0 0.0
    %475 = vmatpush1.xpose.msra.mxu0 0.0
    %476 = vmatprep.subr.mxu0 0.0
    %477 = vmatpush1.xpose.msra.mxu0 %v444
    %478 = vmatprep.subr.mxu0 0.0
    %479 = vmatpush2.xpose.msra.mxu0 0.0
    %480 = vmatprep.subr.mxu0 0.0
    %481 = vmatpush2.xpose.msra.mxu0 0.0
    %482 = vmatprep.subr.mxu0 0.0
    %483 = vmatpush2.xpose.msra.mxu0 0.0
    %484 = vmatprep.subr.mxu0 0.0
    %485 = vmatpush2.xpose.msra.mxu0 0.0
    %486 = vmatprep.subr.mxu0 0.0
    %487 = vmatpush2.xpose.msra.mxu0 0.0
    %488 = vmatprep.subr.mxu0 0.0
    %489 = vmatpush2.xpose.msra.mxu0 0.0
    %490 = vmatprep.subr.mxu0 0.0
    %491 = vmatpush2.xpose.msra.mxu0 0.0
    %492 = vmatprep.subr.mxu0 0.0
    %493 = vmatpush2.xpose.msra.mxu0 0.0
    %494 = vmatprep.subr.mxu0 0.0
    %495 = vmatpush2.xpose.msra.mxu0 0.0
    %496 = vmatprep.subr.mxu0 0.0
    %497 = vmatpush2.xpose.msra.mxu0 0.0
    %498 = vmatprep.subr.mxu0 0.0
    %499 = vmatpush2.xpose.msra.mxu0 0.0
    %500 = vmatprep.subr.mxu0 0.0
    %501 = vmatpush2.xpose.msra.mxu0 0.0
    %502 = vmatprep.subr.mxu0 0.0
    %503 = vmatpush2.xpose.msra.mxu0 0.0
    %504 = vmatprep.subr.mxu0 0.0
    %505 = vmatpush2.xpose.msra.mxu0 0.0
    %506 = vmatprep.subr.mxu0 0.0
    %507 = vmatpush2.xpose.msra.mxu0 0.0
    %508 = vmatprep.subr.mxu0 0.0
    %509 = vmatpush2.xpose.msra.mxu0 0.0
    %510 = vmatprep.mubr.f32.mxu0 0.0
    %511 = vmatmul.mubr.f32.gmra.mxu0 %v442
    %v512 = vpop.f32.mrf.mxu0
    %v513 = vadd.f32 0.0, %v512
    %v514 = vpop.f32.mrf.mxu0
    %515 = vdwg.mxu0
    %516 = vrot.lane.b32.xlu0 %v284, 96
    %v517 = vpop.permute.xlu0 %516
    %v518 = vsel %vm289, %v284, 0
    %v520 = vsel %vm289, %v517, 0
    %522 = vmatprep.subr.mxu0 0.0
    %523 = vmatpush1.xpose.msra.mxu0 0.0
    %524 = vmatprep.subr.mxu0 0.0
    %525 = vmatpush1.xpose.msra.mxu0 0.0
    %526 = vmatprep.subr.mxu0 0.0
    %527 = vmatpush1.xpose.msra.mxu0 0.0
    %528 = vmatprep.subr.mxu0 0.0
    %529 = vmatpush1.xpose.msra.mxu0 0.0
    %530 = vmatprep.subr.mxu0 0.0
    %531 = vmatpush1.xpose.msra.mxu0 0.0
    %532 = vmatprep.subr.mxu0 0.0
    %533 = vmatpush1.xpose.msra.mxu0 0.0
    %534 = vmatprep.subr.mxu0 0.0
    %535 = vmatpush1.xpose.msra.mxu0 0.0
    %536 = vmatprep.subr.mxu0 0.0
    %537 = vmatpush1.xpose.msra.mxu0 0.0
    %538 = vmatprep.subr.mxu0 0.0
    %539 = vmatpush1.xpose.msra.mxu0 0.0
    %540 = vmatprep.subr.mxu0 0.0
    %541 = vmatpush1.xpose.msra.mxu0 0.0
    %542 = vmatprep.subr.mxu0 0.0
    %543 = vmatpush1.xpose.msra.mxu0 0.0
    %544 = vmatprep.subr.mxu0 0.0
    %545 = vmatpush1.xpose.msra.mxu0 0.0
    %546 = vmatprep.subr.mxu0 0.0
    %547 = vmatpush1.xpose.msra.mxu0 0.0
    %548 = vmatprep.subr.mxu0 0.0
    %549 = vmatpush1.xpose.msra.mxu0 0.0
    %550 = vmatprep.subr.mxu0 0.0
    %551 = vmatpush1.xpose.msra.mxu0 0.0
    %552 = vmatprep.subr.mxu0 0.0
    %553 = vmatpush1.xpose.msra.mxu0 %v520
    %554 = vmatprep.subr.mxu0 0.0
    %555 = vmatpush2.xpose.msra.mxu0 0.0
    %556 = vmatprep.subr.mxu0 0.0
    %557 = vmatpush2.xpose.msra.mxu0 0.0
    %558 = vmatprep.subr.mxu0 0.0
    %559 = vmatpush2.xpose.msra.mxu0 0.0
    %560 = vmatprep.subr.mxu0 0.0
    %561 = vmatpush2.xpose.msra.mxu0 0.0
    %562 = vmatprep.subr.mxu0 0.0
    %563 = vmatpush2.xpose.msra.mxu0 0.0
    %564 = vmatprep.subr.mxu0 0.0
    %565 = vmatpush2.xpose.msra.mxu0 0.0
    %566 = vmatprep.subr.mxu0 0.0
    %567 = vmatpush2.xpose.msra.mxu0 0.0
    %568 = vmatprep.subr.mxu0 0.0
    %569 = vmatpush2.xpose.msra.mxu0 0.0
    %570 = vmatprep.subr.mxu0 0.0
    %571 = vmatpush2.xpose.msra.mxu0 0.0
    %572 = vmatprep.subr.mxu0 0.0
    %573 = vmatpush2.xpose.msra.mxu0 0.0
    %574 = vmatprep.subr.mxu0 0.0
    %575 = vmatpush2.xpose.msra.mxu0 0.0
    %576 = vmatprep.subr.mxu0 0.0
    %577 = vmatpush2.xpose.msra.mxu0 0.0
    %578 = vmatprep.subr.mxu0 0.0
    %579 = vmatpush2.xpose.msra.mxu0 0.0
    %580 = vmatprep.subr.mxu0 0.0
    %581 = vmatpush2.xpose.msra.mxu0 0.0
    %582 = vmatprep.subr.mxu0 0.0
    %583 = vmatpush2.xpose.msra.mxu0 0.0
    %584 = vmatprep.subr.mxu0 0.0
    %585 = vmatpush2.xpose.msra.mxu0 0.0
    %586 = vmatprep.mubr.f32.mxu0 0.0
    %587 = vmatmul.mubr.f32.gmra.mxu0 %v518
    %v588 = vpop.f32.mrf.mxu0
    %v589 = vadd.f32 0.0, %v588
    %v590 = vpop.f32.mrf.mxu0
    %591 = vdwg.mxu0
    %v592 = vmul.f32 %v361, 0.35355338
    %v593 = vmul.f32 %v437, 0.35355338
    %v594 = vmul.f32 %v513, 0.35355338
    %v595 = vmul.f32 %v589, 0.35355338
    %vm596 = vcmp.eq.f32.partialorder %v111, 0.0
    %v597 = vsel %vm596, 1, 0
    %vm598 = vcmp.eq.s32.totalorder %v597, 1
    %v599 = vsel %vm598, -1e+09, %v592
    %v600 = vsel %vm598, -1e+09, %v593
    %v601 = vsel %vm598, -1e+09, %v594
    %v602 = vsel %vm598, -1e+09, %v595
    %v603 = vsel %vm289, %v599, -inf
    %604 = vmax.xlane.f32.xlu0 %v603
    %v605 = vpop.xlane.xlu0 %604
    %v606 = vsel %vm289, %v600, -inf
    %607 = vmax.xlane.f32.xlu0 %v606
    %v608 = vpop.xlane.xlu0 %607
    %v609 = vsel %vm289, %v601, -inf
    %610 = vmax.xlane.f32.xlu0 %v609
    %v611 = vpop.xlane.xlu0 %610
    %v612 = vsel %vm289, %v602, -inf
    %613 = vmax.xlane.f32.xlu0 %v612
    %v614 = vpop.xlane.xlu0 %613
    %v615 = vsub.f32 %v599, %v605
    %v616 = vsub.f32 %v600, %v608
    %v617 = vsub.f32 %v601, %v611
    %v618 = vsub.f32 %v602, %v614
    %v619 = vmul.f32 %v615, 1.442695
    %v620 = vpow.pop %v619
    %v621 = vmul.f32 %v616, 1.442695
    %v622 = vpow.pop %v621
    %v623 = vmul.f32 %v617, 1.442695
    %v624 = vpow.pop %v623
    %v625 = vmul.f32 %v618, 1.442695
    %v626 = vpow.pop %v625
    %v627 = vsel %vm289, %v620, 0.0
    %628 = vadd.xlane.f32.xlu0 %v627
    %v629 = vpop.xlane.xlu0 %628
    %v630 = vsel %vm289, %v622, 0.0
    %631 = vadd.xlane.f32.xlu0 %v630
    %v632 = vpop.xlane.xlu0 %631
    %v633 = vsel %vm289, %v624, 0.0
    %634 = vadd.xlane.f32.xlu0 %v633
    %v635 = vpop.xlane.xlu0 %634
    %v636 = vsel %vm289, %v626, 0.0
    %637 = vadd.xlane.f32.xlu0 %v636
    %v638 = vpop.xlane.xlu0 %637
    %v639 = vrcp.pop %v629
    %v640 = vmul.f32 %v620, %v639
    %v641 = vrcp.pop %v632
    %v642 = vmul.f32 %v622, %v641
    %v643 = vrcp.pop %v635
    %v644 = vmul.f32 %v624, %v643
    %v645 = vrcp.pop %v638
    %v646 = vmul.f32 %v626, %v645
    %647 = vrot.lane.b32.xlu0 %v265, 64
    %v648 = vpop.permute.xlu0 %647
    %v651 = vsel %vm289, %v640, 0
    %653 = vmatprep.subr.mxu0 0.0
    %654 = vmatpush1.msra.mxu0 0.0
    %655 = vmatprep.subr.mxu0 0.0
    %656 = vmatpush1.msra.mxu0 0.0
    %657 = vmatprep.subr.mxu0 0.0
    %658 = vmatpush1.msra.mxu0 0.0
    %659 = vmatprep.subr.mxu0 0.0
    %660 = vmatpush1.msra.mxu0 0.0
    %661 = vmatprep.subr.mxu0 0.0
    %662 = vmatpush1.msra.mxu0 0.0
    %663 = vmatprep.subr.mxu0 0.0
    %664 = vmatpush1.msra.mxu0 0.0
    %665 = vmatprep.subr.mxu0 0.0
    %666 = vmatpush1.msra.mxu0 0.0
    %667 = vmatprep.subr.mxu0 0.0
    %668 = vmatpush1.msra.mxu0 0.0
    %669 = vmatprep.subr.mxu0 0.0
    %670 = vmatpush1.msra.mxu0 0.0
    %671 = vmatprep.subr.mxu0 0.0
    %672 = vmatpush1.msra.mxu0 0.0
    %673 = vmatprep.subr.mxu0 0.0
    %674 = vmatpush1.msra.mxu0 0.0
    %675 = vmatprep.subr.mxu0 0.0
    %676 = vmatpush1.msra.mxu0 0.0
    %677 = vmatprep.subr.mxu0 0.0
    %678 = vmatpush1.msra.mxu0 0.0
    %679 = vmatprep.subr.mxu0 0.0
    %680 = vmatpush1.msra.mxu0 0.0
    %681 = vmatprep.subr.mxu0 0.0
    %682 = vmatpush1.msra.mxu0 0.0
    %683 = vmatprep.subr.mxu0 0.0
    %684 = vmatpush1.msra.mxu0 %v648
    %685 = vmatprep.subr.mxu0 0.0
    %686 = vmatpush2.msra.mxu0 0.0
    %687 = vmatprep.subr.mxu0 0.0
    %688 = vmatpush2.msra.mxu0 0.0
    %689 = vmatprep.subr.mxu0 0.0
    %690 = vmatpush2.msra.mxu0 0.0
    %691 = vmatprep.subr.mxu0 0.0
    %692 = vmatpush2.msra.mxu0 0.0
    %693 = vmatprep.subr.mxu0 0.0
    %694 = vmatpush2.msra.mxu0 0.0
    %695 = vmatprep.subr.mxu0 0.0
    %696 = vmatpush2.msra.mxu0 0.0
    %697 = vmatprep.subr.mxu0 0.0
    %698 = vmatpush2.msra.mxu0 0.0
    %699 = vmatprep.subr.mxu0 0.0
    %700 = vmatpush2.msra.mxu0 0.0
    %701 = vmatprep.subr.mxu0 0.0
    %702 = vmatpush2.msra.mxu0 0.0
    %703 = vmatprep.subr.mxu0 0.0
    %704 = vmatpush2.msra.mxu0 0.0
    %705 = vmatprep.subr.mxu0 0.0
    %706 = vmatpush2.msra.mxu0 0.0
    %707 = vmatprep.subr.mxu0 0.0
    %708 = vmatpush2.msra.mxu0 0.0
    %709 = vmatprep.subr.mxu0 0.0
    %710 = vmatpush2.msra.mxu0 0.0
    %711 = vmatprep.subr.mxu0 0.0
    %712 = vmatpush2.msra.mxu0 0.0
    %713 = vmatprep.subr.mxu0 0.0
    %714 = vmatpush2.msra.mxu0 0.0
    %715 = vmatprep.subr.mxu0 0.0
    %716 = vmatpush2.msra.mxu0 0.0
    %717 = vmatprep.mubr.f32.mxu0 0.0
    %718 = vmatmul.mubr.f32.gmra.mxu0 %v651
    %v719 = vpop.f32.mrf.mxu0
    %v720 = vadd.f32 0.0, %v719
    %v721 = vpop.f32.mrf.mxu0
    %722 = vdwg.mxu0
    %723 = vrot.lane.b32.xlu0 %v276, 64
    %v724 = vpop.permute.xlu0 %723
    %v727 = vsel %vm289, %v642, 0
    %729 = vmatprep.subr.mxu0 0.0
    %730 = vmatpush1.msra.mxu0 0.0
    %731 = vmatprep.subr.mxu0 0.0
    %732 = vmatpush1.msra.mxu0 0.0
    %733 = vmatprep.subr.mxu0 0.0
    %734 = vmatpush1.msra.mxu0 0.0
    %735 = vmatprep.subr.mxu0 0.0
    %736 = vmatpush1.msra.mxu0 0.0
    %737 = vmatprep.subr.mxu0 0.0
    %738 = vmatpush1.msra.mxu0 0.0
    %739 = vmatprep.subr.mxu0 0.0
    %740 = vmatpush1.msra.mxu0 0.0
    %741 = vmatprep.subr.mxu0 0.0
    %742 = vmatpush1.msra.mxu0 0.0
    %743 = vmatprep.subr.mxu0 0.0
    %744 = vmatpush1.msra.mxu0 0.0
    %745 = vmatprep.subr.mxu0 0.0
    %746 = vmatpush1.msra.mxu0 0.0
    %747 = vmatprep.subr.mxu0 0.0
    %748 = vmatpush1.msra.mxu0 0.0
    %749 = vmatprep.subr.mxu0 0.0
    %750 = vmatpush1.msra.mxu0 0.0
    %751 = vmatprep.subr.mxu0 0.0
    %752 = vmatpush1.msra.mxu0 0.0
    %753 = vmatprep.subr.mxu0 0.0
    %754 = vmatpush1.msra.mxu0 0.0
    %755 = vmatprep.subr.mxu0 0.0
    %756 = vmatpush1.msra.mxu0 0.0
    %757 = vmatprep.subr.mxu0 0.0
    %758 = vmatpush1.msra.mxu0 0.0
    %759 = vmatprep.subr.mxu0 0.0
    %760 = vmatpush1.msra.mxu0 %v724
    %761 = vmatprep.subr.mxu0 0.0
    %762 = vmatpush2.msra.mxu0 0.0
    %763 = vmatprep.subr.mxu0 0.0
    %764 = vmatpush2.msra.mxu0 0.0
    %765 = vmatprep.subr.mxu0 0.0
    %766 = vmatpush2.msra.mxu0 0.0
    %767 = vmatprep.subr.mxu0 0.0
    %768 = vmatpush2.msra.mxu0 0.0
    %769 = vmatprep.subr.mxu0 0.0
    %770 = vmatpush2.msra.mxu0 0.0
    %771 = vmatprep.subr.mxu0 0.0
    %772 = vmatpush2.msra.mxu0 0.0
    %773 = vmatprep.subr.mxu0 0.0
    %774 = vmatpush2.msra.mxu0 0.0
    %775 = vmatprep.subr.mxu0 0.0
    %776 = vmatpush2.msra.mxu0 0.0
    %777 = vmatprep.subr.mxu0 0.0
    %778 = vmatpush2.msra.mxu0 0.0
    %779 = vmatprep.subr.mxu0 0.0
    %780 = vmatpush2.msra.mxu0 0.0
    %781 = vmatprep.subr.mxu0 0.0
    %782 = vmatpush2.msra.mxu0 0.0
    %783 = vmatprep.subr.mxu0 0.0
    %784 = vmatpush2.msra.mxu0 0.0
    %785 = vmatprep.subr.mxu0 0.0
    %786 = vmatpush2.msra.mxu0 0.0
    %787 = vmatprep.subr.mxu0 0.0
    %788 = vmatpush2.msra.mxu0 0.0
    %789 = vmatprep.subr.mxu0 0.0
    %790 = vmatpush2.msra.mxu0 0.0
    %791 = vmatprep.subr.mxu0 0.0
    %792 = vmatpush2.msra.mxu0 0.0
    %793 = vmatprep.mubr.f32.mxu0 0.0
    %794 = vmatmul.mubr.f32.gmra.mxu0 %v727
    %v795 = vpop.f32.mrf.mxu0
    %v796 = vadd.f32 0.0, %v795
    %v797 = vpop.f32.mrf.mxu0
    %798 = vdwg.mxu0
    %799 = vrot.lane.b32.xlu0 %v280, 64
    %v800 = vpop.permute.xlu0 %799
    %v803 = vsel %vm289, %v644, 0
    %805 = vmatprep.subr.mxu0 0.0
    %806 = vmatpush1.msra.mxu0 0.0
    %807 = vmatprep.subr.mxu0 0.0
    %808 = vmatpush1.msra.mxu0 0.0
    %809 = vmatprep.subr.mxu0 0.0
    %810 = vmatpush1.msra.mxu0 0.0
    %811 = vmatprep.subr.mxu0 0.0
    %812 = vmatpush1.msra.mxu0 0.0
    %813 = vmatprep.subr.mxu0 0.0
    %814 = vmatpush1.msra.mxu0 0.0
    %815 = vmatprep.subr.mxu0 0.0
    %816 = vmatpush1.msra.mxu0 0.0
    %817 = vmatprep.subr.mxu0 0.0
    %818 = vmatpush1.msra.mxu0 0.0
    %819 = vmatprep.subr.mxu0 0.0
    %820 = vmatpush1.msra.mxu0 0.0
    %821 = vmatprep.subr.mxu0 0.0
    %822 = vmatpush1.msra.mxu0 0.0
    %823 = vmatprep.subr.mxu0 0.0
    %824 = vmatpush1.msra.mxu0 0.0
    %825 = vmatprep.subr.mxu0 0.0
    %826 = vmatpush1.msra.mxu0 0.0
    %827 = vmatprep.subr.mxu0 0.0
    %828 = vmatpush1.msra.mxu0 0.0
    %829 = vmatprep.subr.mxu0 0.0
    %830 = vmatpush1.msra.mxu0 0.0
    %831 = vmatprep.subr.mxu0 0.0
    %832 = vmatpush1.msra.mxu0 0.0
    %833 = vmatprep.subr.mxu0 0.0
    %834 = vmatpush1.msra.mxu0 0.0
    %835 = vmatprep.subr.mxu0 0.0
    %836 = vmatpush1.msra.mxu0 %v800
    %837 = vmatprep.subr.mxu0 0.0
    %838 = vmatpush2.msra.mxu0 0.0
    %839 = vmatprep.subr.mxu0 0.0
    %840 = vmatpush2.msra.mxu0 0.0
    %841 = vmatprep.subr.mxu0 0.0
    %842 = vmatpush2.msra.mxu0 0.0
    %843 = vmatprep.subr.mxu0 0.0
    %844 = vmatpush2.msra.mxu0 0.0
    %845 = vmatprep.subr.mxu0 0.0
    %846 = vmatpush2.msra.mxu0 0.0
    %847 = vmatprep.subr.mxu0 0.0
    %848 = vmatpush2.msra.mxu0 0.0
    %849 = vmatprep.subr.mxu0 0.0
    %850 = vmatpush2.msra.mxu0 0.0
    %851 = vmatprep.subr.mxu0 0.0
    %852 = vmatpush2.msra.mxu0 0.0
    %853 = vmatprep.subr.mxu0 0.0
    %854 = vmatpush2.msra.mxu0 0.0
    %855 = vmatprep.subr.mxu0 0.0
    %856 = vmatpush2.msra.mxu0 0.0
    %857 = vmatprep.subr.mxu0 0.0
    %858 = vmatpush2.msra.mxu0 0.0
    %859 = vmatprep.subr.mxu0 0.0
    %860 = vmatpush2.msra.mxu0 0.0
    %861 = vmatprep.subr.mxu0 0.0
    %862 = vmatpush2.msra.mxu0 0.0
    %863 = vmatprep.subr.mxu0 0.0
    %864 = vmatpush2.msra.mxu0 0.0
    %865 = vmatprep.subr.mxu0 0.0
    %866 = vmatpush2.msra.mxu0 0.0
    %867 = vmatprep.subr.mxu0 0.0
    %868 = vmatpush2.msra.mxu0 0.0
    %869 = vmatprep.mubr.f32.mxu0 0.0
    %870 = vmatmul.mubr.f32.gmra.mxu0 %v803
    %v871 = vpop.f32.mrf.mxu0
    %v872 = vadd.f32 0.0, %v871
    %v873 = vpop.f32.mrf.mxu0
    %874 = vdwg.mxu0
    %875 = vrot.lane.b32.xlu0 %v284, 64
    %v876 = vpop.permute.xlu0 %875
    %v879 = vsel %vm289, %v646, 0
    %881 = vmatprep.subr.mxu0 0.0
    %882 = vmatpush1.msra.mxu0 0.0
    %883 = vmatprep.subr.mxu0 0.0
    %884 = vmatpush1.msra.mxu0 0.0
    %885 = vmatprep.subr.mxu0 0.0
    %886 = vmatpush1.msra.mxu0 0.0
    %887 = vmatprep.subr.mxu0 0.0
    %888 = vmatpush1.msra.mxu0 0.0
    %889 = vmatprep.subr.mxu0 0.0
    %890 = vmatpush1.msra.mxu0 0.0
    %891 = vmatprep.subr.mxu0 0.0
    %892 = vmatpush1.msra.mxu0 0.0
    %893 = vmatprep.subr.mxu0 0.0
    %894 = vmatpush1.msra.mxu0 0.0
    %895 = vmatprep.subr.mxu0 0.0
    %896 = vmatpush1.msra.mxu0 0.0
    %897 = vmatprep.subr.mxu0 0.0
    %898 = vmatpush1.msra.mxu0 0.0
    %899 = vmatprep.subr.mxu0 0.0
    %900 = vmatpush1.msra.mxu0 0.0
    %901 = vmatprep.subr.mxu0 0.0
    %902 = vmatpush1.msra.mxu0 0.0
    %903 = vmatprep.subr.mxu0 0.0
    %904 = vmatpush1.msra.mxu0 0.0
    %905 = vmatprep.subr.mxu0 0.0
    %906 = vmatpush1.msra.mxu0 0.0
    %907 = vmatprep.subr.mxu0 0.0
    %908 = vmatpush1.msra.mxu0 0.0
    %909 = vmatprep.subr.mxu0 0.0
    %910 = vmatpush1.msra.mxu0 0.0
    %911 = vmatprep.subr.mxu0 0.0
    %912 = vmatpush1.msra.mxu0 %v876
    %913 = vmatprep.subr.mxu0 0.0
    %914 = vmatpush2.msra.mxu0 0.0
    %915 = vmatprep.subr.mxu0 0.0
    %916 = vmatpush2.msra.mxu0 0.0
    %917 = vmatprep.subr.mxu0 0.0
    %918 = vmatpush2.msra.mxu0 0.0
    %919 = vmatprep.subr.mxu0 0.0
    %920 = vmatpush2.msra.mxu0 0.0
    %921 = vmatprep.subr.mxu0 0.0
    %922 = vmatpush2.msra.mxu0 0.0
    %923 = vmatprep.subr.mxu0 0.0
    %924 = vmatpush2.msra.mxu0 0.0
    %925 = vmatprep.subr.mxu0 0.0
    %926 = vmatpush2.msra.mxu0 0.0
    %927 = vmatprep.subr.mxu0 0.0
    %928 = vmatpush2.msra.mxu0 0.0
    %929 = vmatprep.subr.mxu0 0.0
    %930 = vmatpush2.msra.mxu0 0.0
    %931 = vmatprep.subr.mxu0 0.0
    %932 = vmatpush2.msra.mxu0 0.0
    %933 = vmatprep.subr.mxu0 0.0
    %934 = vmatpush2.msra.mxu0 0.0
    %935 = vmatprep.subr.mxu0 0.0
    %936 = vmatpush2.msra.mxu0 0.0
    %937 = vmatprep.subr.mxu0 0.0
    %938 = vmatpush2.msra.mxu0 0.0
    %939 = vmatprep.subr.mxu0 0.0
    %940 = vmatpush2.msra.mxu0 0.0
    %941 = vmatprep.subr.mxu0 0.0
    %942 = vmatpush2.msra.mxu0 0.0
    %943 = vmatprep.subr.mxu0 0.0
    %944 = vmatpush2.msra.mxu0 0.0
    %945 = vmatprep.mubr.f32.mxu0 0.0
    %946 = vmatmul.mubr.f32.gmra.mxu0 %v879
    %v947 = vpop.f32.mrf.mxu0
    %v948 = vadd.f32 0.0, %v947
    %v949 = vpop.f32.mrf.mxu0
    %950 = vdwg.mxu0
    %v952 = vsel %vm289, %v720, 0
    %954 = vmatprep.subr.mxu0 0.0
    %955 = vmatpush1.msra.mxu0 0.0
    %956 = vmatprep.subr.mxu0 0.0
    %957 = vmatpush1.msra.mxu0 0.0
    %958 = vmatprep.subr.mxu0 0.0
    %959 = vmatpush1.msra.mxu0 0.0
    %960 = vmatprep.subr.mxu0 0.0
    %961 = vmatpush1.msra.mxu0 0.0
    %962 = vmatprep.subr.mxu0 0.0
    %963 = vmatpush1.msra.mxu0 0.0
    %964 = vmatprep.subr.mxu0 0.0
    %965 = vmatpush1.msra.mxu0 0.0
    %966 = vmatprep.subr.mxu0 0.0
    %967 = vmatpush1.msra.mxu0 0.0
    %968 = vmatprep.subr.mxu0 0.0
    %969 = vmatpush1.msra.mxu0 0.0
    %970 = vmatprep.subr.mxu0 0.0
    %971 = vmatpush1.msra.mxu0 0.0
    %972 = vmatprep.subr.mxu0 0.0
    %973 = vmatpush1.msra.mxu0 0.0
    %974 = vmatprep.subr.mxu0 0.0
    %975 = vmatpush1.msra.mxu0 0.0
    %976 = vmatprep.subr.mxu0 0.0
    %977 = vmatpush1.msra.mxu0 0.0
    %978 = vmatprep.subr.mxu0 0.0
    %979 = vmatpush1.msra.mxu0 0.0
    %980 = vmatprep.subr.mxu0 0.0
    %981 = vmatpush1.msra.mxu0 0.0
    %982 = vmatprep.subr.mxu0 0.0
    %983 = vmatpush1.msra.mxu0 0.0
    %984 = vmatprep.subr.mxu0 0.0
    %985 = vmatpush1.msra.mxu0 %v124
    %986 = vmatprep.subr.mxu0 0.0
    %987 = vmatpush2.msra.mxu0 0.0
    %988 = vmatprep.subr.mxu0 0.0
    %989 = vmatpush2.msra.mxu0 0.0
    %990 = vmatprep.subr.mxu0 0.0
    %991 = vmatpush2.msra.mxu0 0.0
    %992 = vmatprep.subr.mxu0 0.0
    %993 = vmatpush2.msra.mxu0 0.0
    %994 = vmatprep.subr.mxu0 0.0
    %995 = vmatpush2.msra.mxu0 0.0
    %996 = vmatprep.subr.mxu0 0.0
    %997 = vmatpush2.msra.mxu0 0.0
    %998 = vmatprep.subr.mxu0 0.0
    %999 = vmatpush2.msra.mxu0 0.0
    %1000 = vmatprep.subr.mxu0 0.0
    %1001 = vmatpush2.msra.mxu0 0.0
    %1002 = vmatprep.subr.mxu0 0.0
    %1003 = vmatpush2.msra.mxu0 0.0
    %1004 = vmatprep.subr.mxu0 0.0
    %1005 = vmatpush2.msra.mxu0 0.0
    %1006 = vmatprep.subr.mxu0 0.0
    %1007 = vmatpush2.msra.mxu0 0.0
    %1008 = vmatprep.subr.mxu0 0.0
    %1009 = vmatpush2.msra.mxu0 0.0
    %1010 = vmatprep.subr.mxu0 0.0
    %1011 = vmatpush2.msra.mxu0 0.0
    %1012 = vmatprep.subr.mxu0 0.0
    %1013 = vmatpush2.msra.mxu0 0.0
    %1014 = vmatprep.subr.mxu0 0.0
    %1015 = vmatpush2.msra.mxu0 0.0
    %1016 = vmatprep.subr.mxu0 0.0
    %1017 = vmatpush2.msra.mxu0 0.0
    %1018 = vmatprep.mubr.f32.mxu0 0.0
    %1019 = vmatmul.mubr.f32.gmra.mxu0 %v952
    %v1020 = vpop.f32.mrf.mxu0
    %v1021 = vadd.f32 0.0, %v1020
    %v1022 = vpop.f32.mrf.mxu0
    %1023 = vdwg.mxu0
    %v1025 = vsel %vm289, %v796, 0
    %1027 = vmatprep.subr.mxu0 0.0
    %1028 = vmatpush1.msra.mxu0 0.0
    %1029 = vmatprep.subr.mxu0 0.0
    %1030 = vmatpush1.msra.mxu0 0.0
    %1031 = vmatprep.subr.mxu0 0.0
    %1032 = vmatpush1.msra.mxu0 0.0
    %1033 = vmatprep.subr.mxu0 0.0
    %1034 = vmatpush1.msra.mxu0 0.0
    %1035 = vmatprep.subr.mxu0 0.0
    %1036 = vmatpush1.msra.mxu0 0.0
    %1037 = vmatprep.subr.mxu0 0.0
    %1038 = vmatpush1.msra.mxu0 0.0
    %1039 = vmatprep.subr.mxu0 0.0
    %1040 = vmatpush1.msra.mxu0 0.0
    %1041 = vmatprep.subr.mxu0 0.0
    %1042 = vmatpush1.msra.mxu0 0.0
    %1043 = vmatprep.subr.mxu0 0.0
    %1044 = vmatpush1.msra.mxu0 0.0
    %1045 = vmatprep.subr.mxu0 0.0
    %1046 = vmatpush1.msra.mxu0 0.0
    %1047 = vmatprep.subr.mxu0 0.0
    %1048 = vmatpush1.msra.mxu0 0.0
    %1049 = vmatprep.subr.mxu0 0.0
    %1050 = vmatpush1.msra.mxu0 0.0
    %1051 = vmatprep.subr.mxu0 0.0
    %1052 = vmatpush1.msra.mxu0 0.0
    %1053 = vmatprep.subr.mxu0 0.0
    %1054 = vmatpush1.msra.mxu0 0.0
    %1055 = vmatprep.subr.mxu0 0.0
    %1056 = vmatpush1.msra.mxu0 0.0
    %1057 = vmatprep.subr.mxu0 0.0
    %1058 = vmatpush1.msra.mxu0 %v125
    %1059 = vmatprep.subr.mxu0 0.0
    %1060 = vmatpush2.msra.mxu0 0.0
    %1061 = vmatprep.subr.mxu0 0.0
    %1062 = vmatpush2.msra.mxu0 0.0
    %1063 = vmatprep.subr.mxu0 0.0
    %1064 = vmatpush2.msra.mxu0 0.0
    %1065 = vmatprep.subr.mxu0 0.0
    %1066 = vmatpush2.msra.mxu0 0.0
    %1067 = vmatprep.subr.mxu0 0.0
    %1068 = vmatpush2.msra.mxu0 0.0
    %1069 = vmatprep.subr.mxu0 0.0
    %1070 = vmatpush2.msra.mxu0 0.0
    %1071 = vmatprep.subr.mxu0 0.0
    %1072 = vmatpush2.msra.mxu0 0.0
    %1073 = vmatprep.subr.mxu0 0.0
    %1074 = vmatpush2.msra.mxu0 0.0
    %1075 = vmatprep.subr.mxu0 0.0
    %1076 = vmatpush2.msra.mxu0 0.0
    %1077 = vmatprep.subr.mxu0 0.0
    %1078 = vmatpush2.msra.mxu0 0.0
    %1079 = vmatprep.subr.mxu0 0.0
    %1080 = vmatpush2.msra.mxu0 0.0
    %1081 = vmatprep.subr.mxu0 0.0
    %1082 = vmatpush2.msra.mxu0 0.0
    %1083 = vmatprep.subr.mxu0 0.0
    %1084 = vmatpush2.msra.mxu0 0.0
    %1085 = vmatprep.subr.mxu0 0.0
    %1086 = vmatpush2.msra.mxu0 0.0
    %1087 = vmatprep.subr.mxu0 0.0
    %1088 = vmatpush2.msra.mxu0 0.0
    %1089 = vmatprep.subr.mxu0 0.0
    %1090 = vmatpush2.msra.mxu0 0.0
    %1091 = vmatprep.mubr.f32.mxu0 0.0
    %1092 = vmatmul.mubr.f32.gmra.mxu0 %v1025
    %v1093 = vpop.f32.mrf.mxu0
    %v1094 = vadd.f32 0.0, %v1093
    %v1095 = vpop.f32.mrf.mxu0
    %1096 = vdwg.mxu0
    %v1098 = vsel %vm289, %v872, 0
    %1100 = vmatprep.subr.mxu0 0.0
    %1101 = vmatpush1.msra.mxu0 0.0
    %1102 = vmatprep.subr.mxu0 0.0
    %1103 = vmatpush1.msra.mxu0 0.0
    %1104 = vmatprep.subr.mxu0 0.0
    %1105 = vmatpush1.msra.mxu0 0.0
    %1106 = vmatprep.subr.mxu0 0.0
    %1107 = vmatpush1.msra.mxu0 0.0
    %1108 = vmatprep.subr.mxu0 0.0
    %1109 = vmatpush1.msra.mxu0 0.0
    %1110 = vmatprep.subr.mxu0 0.0
    %1111 = vmatpush1.msra.mxu0 0.0
    %1112 = vmatprep.subr.mxu0 0.0
    %1113 = vmatpush1.msra.mxu0 0.0
    %1114 = vmatprep.subr.mxu0 0.0
    %1115 = vmatpush1.msra.mxu0 0.0
    %1116 = vmatprep.subr.mxu0 0.0
    %1117 = vmatpush1.msra.mxu0 0.0
    %1118 = vmatprep.subr.mxu0 0.0
    %1119 = vmatpush1.msra.mxu0 0.0
    %1120 = vmatprep.subr.mxu0 0.0
    %1121 = vmatpush1.msra.mxu0 0.0
    %1122 = vmatprep.subr.mxu0 0.0
    %1123 = vmatpush1.msra.mxu0 0.0
    %1124 = vmatprep.subr.mxu0 0.0
    %1125 = vmatpush1.msra.mxu0 0.0
    %1126 = vmatprep.subr.mxu0 0.0
    %1127 = vmatpush1.msra.mxu0 0.0
    %1128 = vmatprep.subr.mxu0 0.0
    %1129 = vmatpush1.msra.mxu0 0.0
    %1130 = vmatprep.subr.mxu0 0.0
    %1131 = vmatpush1.msra.mxu0 %v126
    %1132 = vmatprep.subr.mxu0 0.0
    %1133 = vmatpush2.msra.mxu0 0.0
    %1134 = vmatprep.subr.mxu0 0.0
    %1135 = vmatpush2.msra.mxu0 0.0
    %1136 = vmatprep.subr.mxu0 0.0
    %1137 = vmatpush2.msra.mxu0 0.0
    %1138 = vmatprep.subr.mxu0 0.0
    %1139 = vmatpush2.msra.mxu0 0.0
    %1140 = vmatprep.subr.mxu0 0.0
    %1141 = vmatpush2.msra.mxu0 0.0
    %1142 = vmatprep.subr.mxu0 0.0
    %1143 = vmatpush2.msra.mxu0 0.0
    %1144 = vmatprep.subr.mxu0 0.0
    %1145 = vmatpush2.msra.mxu0 0.0
    %1146 = vmatprep.subr.mxu0 0.0
    %1147 = vmatpush2.msra.mxu0 0.0
    %1148 = vmatprep.subr.mxu0 0.0
    %1149 = vmatpush2.msra.mxu0 0.0
    %1150 = vmatprep.subr.mxu0 0.0
    %1151 = vmatpush2.msra.mxu0 0.0
    %1152 = vmatprep.subr.mxu0 0.0
    %1153 = vmatpush2.msra.mxu0 0.0
    %1154 = vmatprep.subr.mxu0 0.0
    %1155 = vmatpush2.msra.mxu0 0.0
    %1156 = vmatprep.subr.mxu0 0.0
    %1157 = vmatpush2.msra.mxu0 0.0
    %1158 = vmatprep.subr.mxu0 0.0
    %1159 = vmatpush2.msra.mxu0 0.0
    %1160 = vmatprep.subr.mxu0 0.0
    %1161 = vmatpush2.msra.mxu0 0.0
    %1162 = vmatprep.subr.mxu0 0.0
    %1163 = vmatpush2.msra.mxu0 0.0
    %1164 = vmatprep.mubr.f32.mxu0 0.0
    %1165 = vmatmul.mubr.f32.gmra.mxu0 %v1098
    %v1166 = vpop.f32.mrf.mxu0
    %v1167 = vadd.f32 0.0, %v1166
    %v1168 = vpop.f32.mrf.mxu0
    %1169 = vdwg.mxu0
    %v1171 = vsel %vm289, %v948, 0
    %1173 = vmatprep.subr.mxu0 0.0
    %1174 = vmatpush1.msra.mxu0 0.0
    %1175 = vmatprep.subr.mxu0 0.0
    %1176 = vmatpush1.msra.mxu0 0.0
    %1177 = vmatprep.subr.mxu0 0.0
    %1178 = vmatpush1.msra.mxu0 0.0
    %1179 = vmatprep.subr.mxu0 0.0
    %1180 = vmatpush1.msra.mxu0 0.0
    %1181 = vmatprep.subr.mxu0 0.0
    %1182 = vmatpush1.msra.mxu0 0.0
    %1183 = vmatprep.subr.mxu0 0.0
    %1184 = vmatpush1.msra.mxu0 0.0
    %1185 = vmatprep.subr.mxu0 0.0
    %1186 = vmatpush1.msra.mxu0 0.0
    %1187 = vmatprep.subr.mxu0 0.0
    %1188 = vmatpush1.msra.mxu0 0.0
    %1189 = vmatprep.subr.mxu0 0.0
    %1190 = vmatpush1.msra.mxu0 0.0
    %1191 = vmatprep.subr.mxu0 0.0
    %1192 = vmatpush1.msra.mxu0 0.0
    %1193 = vmatprep.subr.mxu0 0.0
    %1194 = vmatpush1.msra.mxu0 0.0
    %1195 = vmatprep.subr.mxu0 0.0
    %1196 = vmatpush1.msra.mxu0 0.0
    %1197 = vmatprep.subr.mxu0 0.0
    %1198 = vmatpush1.msra.mxu0 0.0
    %1199 = vmatprep.subr.mxu0 0.0
    %1200 = vmatpush1.msra.mxu0 0.0
    %1201 = vmatprep.subr.mxu0 0.0
    %1202 = vmatpush1.msra.mxu0 0.0
    %1203 = vmatprep.subr.mxu0 0.0
    %1204 = vmatpush1.msra.mxu0 %v127
    %1205 = vmatprep.subr.mxu0 0.0
    %1206 = vmatpush2.msra.mxu0 0.0
    %1207 = vmatprep.subr.mxu0 0.0
    %1208 = vmatpush2.msra.mxu0 0.0
    %1209 = vmatprep.subr.mxu0 0.0
    %1210 = vmatpush2.msra.mxu0 0.0
    %1211 = vmatprep.subr.mxu0 0.0
    %1212 = vmatpush2.msra.mxu0 0.0
    %1213 = vmatprep.subr.mxu0 0.0
    %1214 = vmatpush2.msra.mxu0 0.0
    %1215 = vmatprep.subr.mxu0 0.0
    %1216 = vmatpush2.msra.mxu0 0.0
    %1217 = vmatprep.subr.mxu0 0.0
    %1218 = vmatpush2.msra.mxu0 0.0
    %1219 = vmatprep.subr.mxu0 0.0
    %1220 = vmatpush2.msra.mxu0 0.0
    %1221 = vmatprep.subr.mxu0 0.0
    %1222 = vmatpush2.msra.mxu0 0.0
    %1223 = vmatprep.subr.mxu0 0.0
    %1224 = vmatpush2.msra.mxu0 0.0
    %1225 = vmatprep.subr.mxu0 0.0
    %1226 = vmatpush2.msra.mxu0 0.0
    %1227 = vmatprep.subr.mxu0 0.0
    %1228 = vmatpush2.msra.mxu0 0.0
    %1229 = vmatprep.subr.mxu0 0.0
    %1230 = vmatpush2.msra.mxu0 0.0
    %1231 = vmatprep.subr.mxu0 0.0
    %1232 = vmatpush2.msra.mxu0 0.0
    %1233 = vmatprep.subr.mxu0 0.0
    %1234 = vmatpush2.msra.mxu0 0.0
    %1235 = vmatprep.subr.mxu0 0.0
    %1236 = vmatpush2.msra.mxu0 0.0
    %1237 = vmatprep.mubr.f32.mxu0 0.0
    %1238 = vmatmul.mubr.f32.gmra.mxu0 %v1171
    %v1239 = vpop.f32.mrf.mxu0
    %v1240 = vadd.f32 0.0, %v1239
    %v1241 = vpop.f32.mrf.mxu0
    %1242 = vdwg.mxu0
    %v1243 = vsel %vm133, %v1021, 0.0
    %v1244 = vsel %vm133, %v1094, 0.0
    %v1245 = vadd.f32 %v1243, %v1244
    %v1246 = vsel %vm133, %v1167, 0.0
    %v1247 = vadd.f32 %v1245, %v1246
    %v1248 = vsel %vm133, %v1240, 0.0
    %v1249 = vadd.f32 %v1247, %v1248
    %1250 = vrot.lane.b32.xlu0 %v270, 96
    %v1251 = vpop.permute.xlu0 %1250
    %v1252 = vsel %vm289, %v270, 0
    %v1254 = vsel %vm289, %v1251, 0
    %1256 = vmatprep.subr.mxu0 0.0
    %1257 = vmatpush1.xpose.msra.mxu0 0.0
    %1258 = vmatprep.subr.mxu0 0.0
    %1259 = vmatpush1.xpose.msra.mxu0 0.0
    %1260 = vmatprep.subr.mxu0 0.0
    %1261 = vmatpush1.xpose.msra.mxu0 0.0
    %1262 = vmatprep.subr.mxu0 0.0
    %1263 = vmatpush1.xpose.msra.mxu0 0.0
    %1264 = vmatprep.subr.mxu0 0.0
    %1265 = vmatpush1.xpose.msra.mxu0 0.0
    %1266 = vmatprep.subr.mxu0 0.0
    %1267 = vmatpush1.xpose.msra.mxu0 0.0
    %1268 = vmatprep.subr.mxu0 0.0
    %1269 = vmatpush1.xpose.msra.mxu0 0.0
    %1270 = vmatprep.subr.mxu0 0.0
    %1271 = vmatpush1.xpose.msra.mxu0 0.0
    %1272 = vmatprep.subr.mxu0 0.0
    %1273 = vmatpush1.xpose.msra.mxu0 0.0
    %1274 = vmatprep.subr.mxu0 0.0
    %1275 = vmatpush1.xpose.msra.mxu0 0.0
    %1276 = vmatprep.subr.mxu0 0.0
    %1277 = vmatpush1.xpose.msra.mxu0 0.0
    %1278 = vmatprep.subr.mxu0 0.0
    %1279 = vmatpush1.xpose.msra.mxu0 0.0
    %1280 = vmatprep.subr.mxu0 0.0
    %1281 = vmatpush1.xpose.msra.mxu0 0.0
    %1282 = vmatprep.subr.mxu0 0.0
    %1283 = vmatpush1.xpose.msra.mxu0 0.0
    %1284 = vmatprep.subr.mxu0 0.0
    %1285 = vmatpush1.xpose.msra.mxu0 0.0
    %1286 = vmatprep.subr.mxu0 0.0
    %1287 = vmatpush1.xpose.msra.mxu0 %v1254
    %1288 = vmatprep.subr.mxu0 0.0
    %1289 = vmatpush2.xpose.msra.mxu0 0.0
    %1290 = vmatprep.subr.mxu0 0.0
    %1291 = vmatpush2.xpose.msra.mxu0 0.0
    %1292 = vmatprep.subr.mxu0 0.0
    %1293 = vmatpush2.xpose.msra.mxu0 0.0
    %1294 = vmatprep.subr.mxu0 0.0
    %1295 = vmatpush2.xpose.msra.mxu0 0.0
    %1296 = vmatprep.subr.mxu0 0.0
    %1297 = vmatpush2.xpose.msra.mxu0 0.0
    %1298 = vmatprep.subr.mxu0 0.0
    %1299 = vmatpush2.xpose.msra.mxu0 0.0
    %1300 = vmatprep.subr.mxu0 0.0
    %1301 = vmatpush2.xpose.msra.mxu0 0.0
    %1302 = vmatprep.subr.mxu0 0.0
    %1303 = vmatpush2.xpose.msra.mxu0 0.0
    %1304 = vmatprep.subr.mxu0 0.0
    %1305 = vmatpush2.xpose.msra.mxu0 0.0
    %1306 = vmatprep.subr.mxu0 0.0
    %1307 = vmatpush2.xpose.msra.mxu0 0.0
    %1308 = vmatprep.subr.mxu0 0.0
    %1309 = vmatpush2.xpose.msra.mxu0 0.0
    %1310 = vmatprep.subr.mxu0 0.0
    %1311 = vmatpush2.xpose.msra.mxu0 0.0
    %1312 = vmatprep.subr.mxu0 0.0
    %1313 = vmatpush2.xpose.msra.mxu0 0.0
    %1314 = vmatprep.subr.mxu0 0.0
    %1315 = vmatpush2.xpose.msra.mxu0 0.0
    %1316 = vmatprep.subr.mxu0 0.0
    %1317 = vmatpush2.xpose.msra.mxu0 0.0
    %1318 = vmatprep.subr.mxu0 0.0
    %1319 = vmatpush2.xpose.msra.mxu0 0.0
    %1320 = vmatprep.mubr.f32.mxu0 0.0
    %1321 = vmatmul.mubr.f32.gmra.mxu0 %v1252
    %v1322 = vpop.f32.mrf.mxu0
    %v1323 = vadd.f32 0.0, %v1322
    %v1324 = vpop.f32.mrf.mxu0
    %1325 = vdwg.mxu0
    %1326 = vrot.lane.b32.xlu0 %v278, 96
    %v1327 = vpop.permute.xlu0 %1326
    %v1328 = vsel %vm289, %v278, 0
    %v1330 = vsel %vm289, %v1327, 0
    %1332 = vmatprep.subr.mxu0 0.0
    %1333 = vmatpush1.xpose.msra.mxu0 0.0
    %1334 = vmatprep.subr.mxu0 0.0
    %1335 = vmatpush1.xpose.msra.mxu0 0.0
    %1336 = vmatprep.subr.mxu0 0.0
    %1337 = vmatpush1.xpose.msra.mxu0 0.0
    %1338 = vmatprep.subr.mxu0 0.0
    %1339 = vmatpush1.xpose.msra.mxu0 0.0
    %1340 = vmatprep.subr.mxu0 0.0
    %1341 = vmatpush1.xpose.msra.mxu0 0.0
    %1342 = vmatprep.subr.mxu0 0.0
    %1343 = vmatpush1.xpose.msra.mxu0 0.0
    %1344 = vmatprep.subr.mxu0 0.0
    %1345 = vmatpush1.xpose.msra.mxu0 0.0
    %1346 = vmatprep.subr.mxu0 0.0
    %1347 = vmatpush1.xpose.msra.mxu0 0.0
    %1348 = vmatprep.subr.mxu0 0.0
    %1349 = vmatpush1.xpose.msra.mxu0 0.0
    %1350 = vmatprep.subr.mxu0 0.0
    %1351 = vmatpush1.xpose.msra.mxu0 0.0
    %1352 = vmatprep.subr.mxu0 0.0
    %1353 = vmatpush1.xpose.msra.mxu0 0.0
    %1354 = vmatprep.subr.mxu0 0.0
    %1355 = vmatpush1.xpose.msra.mxu0 0.0
    %1356 = vmatprep.subr.mxu0 0.0
    %1357 = vmatpush1.xpose.msra.mxu0 0.0
    %1358 = vmatprep.subr.mxu0 0.0
    %1359 = vmatpush1.xpose.msra.mxu0 0.0
    %1360 = vmatprep.subr.mxu0 0.0
    %1361 = vmatpush1.xpose.msra.mxu0 0.0
    %1362 = vmatprep.subr.mxu0 0.0
    %1363 = vmatpush1.xpose.msra.mxu0 %v1330
    %1364 = vmatprep.subr.mxu0 0.0
    %1365 = vmatpush2.xpose.msra.mxu0 0.0
    %1366 = vmatprep.subr.mxu0 0.0
    %1367 = vmatpush2.xpose.msra.mxu0 0.0
    %1368 = vmatprep.subr.mxu0 0.0
    %1369 = vmatpush2.xpose.msra.mxu0 0.0
    %1370 = vmatprep.subr.mxu0 0.0
    %1371 = vmatpush2.xpose.msra.mxu0 0.0
    %1372 = vmatprep.subr.mxu0 0.0
    %1373 = vmatpush2.xpose.msra.mxu0 0.0
    %1374 = vmatprep.subr.mxu0 0.0
    %1375 = vmatpush2.xpose.msra.mxu0 0.0
    %1376 = vmatprep.subr.mxu0 0.0
    %1377 = vmatpush2.xpose.msra.mxu0 0.0
    %1378 = vmatprep.subr.mxu0 0.0
    %1379 = vmatpush2.xpose.msra.mxu0 0.0
    %1380 = vmatprep.subr.mxu0 0.0
    %1381 = vmatpush2.xpose.msra.mxu0 0.0
    %1382 = vmatprep.subr.mxu0 0.0
    %1383 = vmatpush2.xpose.msra.mxu0 0.0
    %1384 = vmatprep.subr.mxu0 0.0
    %1385 = vmatpush2.xpose.msra.mxu0 0.0
    %1386 = vmatprep.subr.mxu0 0.0
    %1387 = vmatpush2.xpose.msra.mxu0 0.0
    %1388 = vmatprep.subr.mxu0 0.0
    %1389 = vmatpush2.xpose.msra.mxu0 0.0
    %1390 = vmatprep.subr.mxu0 0.0
    %1391 = vmatpush2.xpose.msra.mxu0 0.0
    %1392 = vmatprep.subr.mxu0 0.0
    %1393 = vmatpush2.xpose.msra.mxu0 0.0
    %1394 = vmatprep.subr.mxu0 0.0
    %1395 = vmatpush2.xpose.msra.mxu0 0.0
    %1396 = vmatprep.mubr.f32.mxu0 0.0
    %1397 = vmatmul.mubr.f32.gmra.mxu0 %v1328
    %v1398 = vpop.f32.mrf.mxu0
    %v1399 = vadd.f32 0.0, %v1398
    %v1400 = vpop.f32.mrf.mxu0
    %1401 = vdwg.mxu0
    %1402 = vrot.lane.b32.xlu0 %v282, 96
    %v1403 = vpop.permute.xlu0 %1402
    %v1404 = vsel %vm289, %v282, 0
    %v1406 = vsel %vm289, %v1403, 0
    %1408 = vmatprep.subr.mxu0 0.0
    %1409 = vmatpush1.xpose.msra.mxu0 0.0
    %1410 = vmatprep.subr.mxu0 0.0
    %1411 = vmatpush1.xpose.msra.mxu0 0.0
    %1412 = vmatprep.subr.mxu0 0.0
    %1413 = vmatpush1.xpose.msra.mxu0 0.0
    %1414 = vmatprep.subr.mxu0 0.0
    %1415 = vmatpush1.xpose.msra.mxu0 0.0
    %1416 = vmatprep.subr.mxu0 0.0
    %1417 = vmatpush1.xpose.msra.mxu0 0.0
    %1418 = vmatprep.subr.mxu0 0.0
    %1419 = vmatpush1.xpose.msra.mxu0 0.0
    %1420 = vmatprep.subr.mxu0 0.0
    %1421 = vmatpush1.xpose.msra.mxu0 0.0
    %1422 = vmatprep.subr.mxu0 0.0
    %1423 = vmatpush1.xpose.msra.mxu0 0.0
    %1424 = vmatprep.subr.mxu0 0.0
    %1425 = vmatpush1.xpose.msra.mxu0 0.0
    %1426 = vmatprep.subr.mxu0 0.0
    %1427 = vmatpush1.xpose.msra.mxu0 0.0
    %1428 = vmatprep.subr.mxu0 0.0
    %1429 = vmatpush1.xpose.msra.mxu0 0.0
    %1430 = vmatprep.subr.mxu0 0.0
    %1431 = vmatpush1.xpose.msra.mxu0 0.0
    %1432 = vmatprep.subr.mxu0 0.0
    %1433 = vmatpush1.xpose.msra.mxu0 0.0
    %1434 = vmatprep.subr.mxu0 0.0
    %1435 = vmatpush1.xpose.msra.mxu0 0.0
    %1436 = vmatprep.subr.mxu0 0.0
    %1437 = vmatpush1.xpose.msra.mxu0 0.0
    %1438 = vmatprep.subr.mxu0 0.0
    %1439 = vmatpush1.xpose.msra.mxu0 %v1406
    %1440 = vmatprep.subr.mxu0 0.0
    %1441 = vmatpush2.xpose.msra.mxu0 0.0
    %1442 = vmatprep.subr.mxu0 0.0
    %1443 = vmatpush2.xpose.msra.mxu0 0.0
    %1444 = vmatprep.subr.mxu0 0.0
    %1445 = vmatpush2.xpose.msra.mxu0 0.0
    %1446 = vmatprep.subr.mxu0 0.0
    %1447 = vmatpush2.xpose.msra.mxu0 0.0
    %1448 = vmatprep.subr.mxu0 0.0
    %1449 = vmatpush2.xpose.msra.mxu0 0.0
    %1450 = vmatprep.subr.mxu0 0.0
    %1451 = vmatpush2.xpose.msra.mxu0 0.0
    %1452 = vmatprep.subr.mxu0 0.0
    %1453 = vmatpush2.xpose.msra.mxu0 0.0
    %1454 = vmatprep.subr.mxu0 0.0
    %1455 = vmatpush2.xpose.msra.mxu0 0.0
    %1456 = vmatprep.subr.mxu0 0.0
    %1457 = vmatpush2.xpose.msra.mxu0 0.0
    %1458 = vmatprep.subr.mxu0 0.0
    %1459 = vmatpush2.xpose.msra.mxu0 0.0
    %1460 = vmatprep.subr.mxu0 0.0
    %1461 = vmatpush2.xpose.msra.mxu0 0.0
    %1462 = vmatprep.subr.mxu0 0.0
    %1463 = vmatpush2.xpose.msra.mxu0 0.0
    %1464 = vmatprep.subr.mxu0 0.0
    %1465 = vmatpush2.xpose.msra.mxu0 0.0
    %1466 = vmatprep.subr.mxu0 0.0
    %1467 = vmatpush2.xpose.msra.mxu0 0.0
    %1468 = vmatprep.subr.mxu0 0.0
    %1469 = vmatpush2.xpose.msra.mxu0 0.0
    %1470 = vmatprep.subr.mxu0 0.0
    %1471 = vmatpush2.xpose.msra.mxu0 0.0
    %1472 = vmatprep.mubr.f32.mxu0 0.0
    %1473 = vmatmul.mubr.f32.gmra.mxu0 %v1404
    %v1474 = vpop.f32.mrf.mxu0
    %v1475 = vadd.f32 0.0, %v1474
    %v1476 = vpop.f32.mrf.mxu0
    %1477 = vdwg.mxu0
    %1478 = vrot.lane.b32.xlu0 %v286, 96
    %v1479 = vpop.permute.xlu0 %1478
    %v1480 = vsel %vm289, %v286, 0
    %v1482 = vsel %vm289, %v1479, 0
    %1484 = vmatprep.subr.mxu0 0.0
    %1485 = vmatpush1.xpose.msra.mxu0 0.0
    %1486 = vmatprep.subr.mxu0 0.0
    %1487 = vmatpush1.xpose.msra.mxu0 0.0
    %1488 = vmatprep.subr.mxu0 0.0
    %1489 = vmatpush1.xpose.msra.mxu0 0.0
    %1490 = vmatprep.subr.mxu0 0.0
    %1491 = vmatpush1.xpose.msra.mxu0 0.0
    %1492 = vmatprep.subr.mxu0 0.0
    %1493 = vmatpush1.xpose.msra.mxu0 0.0
    %1494 = vmatprep.subr.mxu0 0.0
    %1495 = vmatpush1.xpose.msra.mxu0 0.0
    %1496 = vmatprep.subr.mxu0 0.0
    %1497 = vmatpush1.xpose.msra.mxu0 0.0
    %1498 = vmatprep.subr.mxu0 0.0
    %1499 = vmatpush1.xpose.msra.mxu0 0.0
    %1500 = vmatprep.subr.mxu0 0.0
    %1501 = vmatpush1.xpose.msra.mxu0 0.0
    %1502 = vmatprep.subr.mxu0 0.0
    %1503 = vmatpush1.xpose.msra.mxu0 0.0
    %1504 = vmatprep.subr.mxu0 0.0
    %1505 = vmatpush1.xpose.msra.mxu0 0.0
    %1506 = vmatprep.subr.mxu0 0.0
    %1507 = vmatpush1.xpose.msra.mxu0 0.0
    %1508 = vmatprep.subr.mxu0 0.0
    %1509 = vmatpush1.xpose.msra.mxu0 0.0
    %1510 = vmatprep.subr.mxu0 0.0
    %1511 = vmatpush1.xpose.msra.mxu0 0.0
    %1512 = vmatprep.subr.mxu0 0.0
    %1513 = vmatpush1.xpose.msra.mxu0 0.0
    %1514 = vmatprep.subr.mxu0 0.0
    %1515 = vmatpush1.xpose.msra.mxu0 %v1482
    %1516 = vmatprep.subr.mxu0 0.0
    %1517 = vmatpush2.xpose.msra.mxu0 0.0
    %1518 = vmatprep.subr.mxu0 0.0
    %1519 = vmatpush2.xpose.msra.mxu0 0.0
    %1520 = vmatprep.subr.mxu0 0.0
    %1521 = vmatpush2.xpose.msra.mxu0 0.0
    %1522 = vmatprep.subr.mxu0 0.0
    %1523 = vmatpush2.xpose.msra.mxu0 0.0
    %1524 = vmatprep.subr.mxu0 0.0
    %1525 = vmatpush2.xpose.msra.mxu0 0.0
    %1526 = vmatprep.subr.mxu0 0.0
    %1527 = vmatpush2.xpose.msra.mxu0 0.0
    %1528 = vmatprep.subr.mxu0 0.0
    %1529 = vmatpush2.xpose.msra.mxu0 0.0
    %1530 = vmatprep.subr.mxu0 0.0
    %1531 = vmatpush2.xpose.msra.mxu0 0.0
    %1532 = vmatprep.subr.mxu0 0.0
    %1533 = vmatpush2.xpose.msra.mxu0 0.0
    %1534 = vmatprep.subr.mxu0 0.0
    %1535 = vmatpush2.xpose.msra.mxu0 0.0
    %1536 = vmatprep.subr.mxu0 0.0
    %1537 = vmatpush2.xpose.msra.mxu0 0.0
    %1538 = vmatprep.subr.mxu0 0.0
    %1539 = vmatpush2.xpose.msra.mxu0 0.0
    %1540 = vmatprep.subr.mxu0 0.0
    %1541 = vmatpush2.xpose.msra.mxu0 0.0
    %1542 = vmatprep.subr.mxu0 0.0
    %1543 = vmatpush2.xpose.msra.mxu0 0.0
    %1544 = vmatprep.subr.mxu0 0.0
    %1545 = vmatpush2.xpose.msra.mxu0 0.0
    %1546 = vmatprep.subr.mxu0 0.0
    %1547 = vmatpush2.xpose.msra.mxu0 0.0
    %1548 = vmatprep.mubr.f32.mxu0 0.0
    %1549 = vmatmul.mubr.f32.gmra.mxu0 %v1480
    %v1550 = vpop.f32.mrf.mxu0
    %v1551 = vadd.f32 0.0, %v1550
    %v1552 = vpop.f32.mrf.mxu0
    %1553 = vdwg.mxu0
    %v1554 = vmul.f32 %v1323, 0.35355338
    %v1555 = vmul.f32 %v1399, 0.35355338
    %v1556 = vmul.f32 %v1475, 0.35355338
    %v1557 = vmul.f32 %v1551, 0.35355338
    %vm1558 = vcmp.eq.f32.partialorder %v112, 0.0
    %v1559 = vsel %vm1558, 1, 0
    %vm1560 = vcmp.eq.s32.totalorder %v1559, 1
    %v1561 = vsel %vm1560, -1e+09, %v1554
    %v1562 = vsel %vm1560, -1e+09, %v1555
    %v1563 = vsel %vm1560, -1e+09, %v1556
    %v1564 = vsel %vm1560, -1e+09, %v1557
    %v1565 = vsel %vm289, %v1561, -inf
    %1566 = vmax.xlane.f32.xlu0 %v1565
    %v1567 = vpop.xlane.xlu0 %1566
    %v1568 = vsel %vm289, %v1562, -inf
    %1569 = vmax.xlane.f32.xlu0 %v1568
    %v1570 = vpop.xlane.xlu0 %1569
    %v1571 = vsel %vm289, %v1563, -inf
    %1572 = vmax.xlane.f32.xlu0 %v1571
    %v1573 = vpop.xlane.xlu0 %1572
    %v1574 = vsel %vm289, %v1564, -inf
    %1575 = vmax.xlane.f32.xlu0 %v1574
    %v1576 = vpop.xlane.xlu0 %1575
    %v1577 = vsub.f32 %v1561, %v1567
    %v1578 = vsub.f32 %v1562, %v1570
    %v1579 = vsub.f32 %v1563, %v1573
    %v1580 = vsub.f32 %v1564, %v1576
    %v1581 = vmul.f32 %v1577, 1.442695
    %v1582 = vpow.pop %v1581
    %v1583 = vmul.f32 %v1578, 1.442695
    %v1584 = vpow.pop %v1583
    %v1585 = vmul.f32 %v1579, 1.442695
    %v1586 = vpow.pop %v1585
    %v1587 = vmul.f32 %v1580, 1.442695
    %v1588 = vpow.pop %v1587
    %v1589 = vsel %vm289, %v1582, 0.0
    %1590 = vadd.xlane.f32.xlu0 %v1589
    %v1591 = vpop.xlane.xlu0 %1590
    %v1592 = vsel %vm289, %v1584, 0.0
    %1593 = vadd.xlane.f32.xlu0 %v1592
    %v1594 = vpop.xlane.xlu0 %1593
    %v1595 = vsel %vm289, %v1586, 0.0
    %1596 = vadd.xlane.f32.xlu0 %v1595
    %v1597 = vpop.xlane.xlu0 %1596
    %v1598 = vsel %vm289, %v1588, 0.0
    %1599 = vadd.xlane.f32.xlu0 %v1598
    %v1600 = vpop.xlane.xlu0 %1599
    %v1601 = vrcp.pop %v1591
    %v1602 = vmul.f32 %v1582, %v1601
    %v1603 = vrcp.pop %v1594
    %v1604 = vmul.f32 %v1584, %v1603
    %v1605 = vrcp.pop %v1597
    %v1606 = vmul.f32 %v1586, %v1605
    %v1607 = vrcp.pop %v1600
    %v1608 = vmul.f32 %v1588, %v1607
    %1609 = vrot.lane.b32.xlu0 %v270, 64
    %v1610 = vpop.permute.xlu0 %1609
    %v1613 = vsel %vm289, %v1602, 0
    %1615 = vmatprep.subr.mxu0 0.0
    %1616 = vmatpush1.msra.mxu0 0.0
    %1617 = vmatprep.subr.mxu0 0.0
    %1618 = vmatpush1.msra.mxu0 0.0
    %1619 = vmatprep.subr.mxu0 0.0
    %1620 = vmatpush1.msra.mxu0 0.0
    %1621 = vmatprep.subr.mxu0 0.0
    %1622 = vmatpush1.msra.mxu0 0.0
    %1623 = vmatprep.subr.mxu0 0.0
    %1624 = vmatpush1.msra.mxu0 0.0
    %1625 = vmatprep.subr.mxu0 0.0
    %1626 = vmatpush1.msra.mxu0 0.0
    %1627 = vmatprep.subr.mxu0 0.0
    %1628 = vmatpush1.msra.mxu0 0.0
    %1629 = vmatprep.subr.mxu0 0.0
    %1630 = vmatpush1.msra.mxu0 0.0
    %1631 = vmatprep.subr.mxu0 0.0
    %1632 = vmatpush1.msra.mxu0 0.0
    %1633 = vmatprep.subr.mxu0 0.0
    %1634 = vmatpush1.msra.mxu0 0.0
    %1635 = vmatprep.subr.mxu0 0.0
    %1636 = vmatpush1.msra.mxu0 0.0
    %1637 = vmatprep.subr.mxu0 0.0
    %1638 = vmatpush1.msra.mxu0 0.0
    %1639 = vmatprep.subr.mxu0 0.0
    %1640 = vmatpush1.msra.mxu0 0.0
    %1641 = vmatprep.subr.mxu0 0.0
    %1642 = vmatpush1.msra.mxu0 0.0
    %1643 = vmatprep.subr.mxu0 0.0
    %1644 = vmatpush1.msra.mxu0 0.0
    %1645 = vmatprep.subr.mxu0 0.0
    %1646 = vmatpush1.msra.mxu0 %v1610
    %1647 = vmatprep.subr.mxu0 0.0
    %1648 = vmatpush2.msra.mxu0 0.0
    %1649 = vmatprep.subr.mxu0 0.0
    %1650 = vmatpush2.msra.mxu0 0.0
    %1651 = vmatprep.subr.mxu0 0.0
    %1652 = vmatpush2.msra.mxu0 0.0
    %1653 = vmatprep.subr.mxu0 0.0
    %1654 = vmatpush2.msra.mxu0 0.0
    %1655 = vmatprep.subr.mxu0 0.0
    %1656 = vmatpush2.msra.mxu0 0.0
    %1657 = vmatprep.subr.mxu0 0.0
    %1658 = vmatpush2.msra.mxu0 0.0
    %1659 = vmatprep.subr.mxu0 0.0
    %1660 = vmatpush2.msra.mxu0 0.0
    %1661 = vmatprep.subr.mxu0 0.0
    %1662 = vmatpush2.msra.mxu0 0.0
    %1663 = vmatprep.subr.mxu0 0.0
    %1664 = vmatpush2.msra.mxu0 0.0
    %1665 = vmatprep.subr.mxu0 0.0
    %1666 = vmatpush2.msra.mxu0 0.0
    %1667 = vmatprep.subr.mxu0 0.0
    %1668 = vmatpush2.msra.mxu0 0.0
    %1669 = vmatprep.subr.mxu0 0.0
    %1670 = vmatpush2.msra.mxu0 0.0
    %1671 = vmatprep.subr.mxu0 0.0
    %1672 = vmatpush2.msra.mxu0 0.0
    %1673 = vmatprep.subr.mxu0 0.0
    %1674 = vmatpush2.msra.mxu0 0.0
    %1675 = vmatprep.subr.mxu0 0.0
    %1676 = vmatpush2.msra.mxu0 0.0
    %1677 = vmatprep.subr.mxu0 0.0
    %1678 = vmatpush2.msra.mxu0 0.0
    %1679 = vmatprep.mubr.f32.mxu0 0.0
    %1680 = vmatmul.mubr.f32.gmra.mxu0 %v1613
    %v1681 = vpop.f32.mrf.mxu0
    %v1682 = vadd.f32 0.0, %v1681
    %v1683 = vpop.f32.mrf.mxu0
    %1684 = vdwg.mxu0
    %1685 = vrot.lane.b32.xlu0 %v278, 64
    %v1686 = vpop.permute.xlu0 %1685
    %v1689 = vsel %vm289, %v1604, 0
    %1691 = vmatprep.subr.mxu0 0.0
    %1692 = vmatpush1.msra.mxu0 0.0
    %1693 = vmatprep.subr.mxu0 0.0
    %1694 = vmatpush1.msra.mxu0 0.0
    %1695 = vmatprep.subr.mxu0 0.0
    %1696 = vmatpush1.msra.mxu0 0.0
    %1697 = vmatprep.subr.mxu0 0.0
    %1698 = vmatpush1.msra.mxu0 0.0
    %1699 = vmatprep.subr.mxu0 0.0
    %1700 = vmatpush1.msra.mxu0 0.0
    %1701 = vmatprep.subr.mxu0 0.0
    %1702 = vmatpush1.msra.mxu0 0.0
    %1703 = vmatprep.subr.mxu0 0.0
    %1704 = vmatpush1.msra.mxu0 0.0
    %1705 = vmatprep.subr.mxu0 0.0
    %1706 = vmatpush1.msra.mxu0 0.0
    %1707 = vmatprep.subr.mxu0 0.0
    %1708 = vmatpush1.msra.mxu0 0.0
    %1709 = vmatprep.subr.mxu0 0.0
    %1710 = vmatpush1.msra.mxu0 0.0
    %1711 = vmatprep.subr.mxu0 0.0
    %1712 = vmatpush1.msra.mxu0 0.0
    %1713 = vmatprep.subr.mxu0 0.0
    %1714 = vmatpush1.msra.mxu0 0.0
    %1715 = vmatprep.subr.mxu0 0.0
    %1716 = vmatpush1.msra.mxu0 0.0
    %1717 = vmatprep.subr.mxu0 0.0
    %1718 = vmatpush1.msra.mxu0 0.0
    %1719 = vmatprep.subr.mxu0 0.0
    %1720 = vmatpush1.msra.mxu0 0.0
    %1721 = vmatprep.subr.mxu0 0.0
    %1722 = vmatpush1.msra.mxu0 %v1686
    %1723 = vmatprep.subr.mxu0 0.0
    %1724 = vmatpush2.msra.mxu0 0.0
    %1725 = vmatprep.subr.mxu0 0.0
    %1726 = vmatpush2.msra.mxu0 0.0
    %1727 = vmatprep.subr.mxu0 0.0
    %1728 = vmatpush2.msra.mxu0 0.0
    %1729 = vmatprep.subr.mxu0 0.0
    %1730 = vmatpush2.msra.mxu0 0.0
    %1731 = vmatprep.subr.mxu0 0.0
    %1732 = vmatpush2.msra.mxu0 0.0
    %1733 = vmatprep.subr.mxu0 0.0
    %1734 = vmatpush2.msra.mxu0 0.0
    %1735 = vmatprep.subr.mxu0 0.0
    %1736 = vmatpush2.msra.mxu0 0.0
    %1737 = vmatprep.subr.mxu0 0.0
    %1738 = vmatpush2.msra.mxu0 0.0
    %1739 = vmatprep.subr.mxu0 0.0
    %1740 = vmatpush2.msra.mxu0 0.0
    %1741 = vmatprep.subr.mxu0 0.0
    %1742 = vmatpush2.msra.mxu0 0.0
    %1743 = vmatprep.subr.mxu0 0.0
    %1744 = vmatpush2.msra.mxu0 0.0
    %1745 = vmatprep.subr.mxu0 0.0
    %1746 = vmatpush2.msra.mxu0 0.0
    %1747 = vmatprep.subr.mxu0 0.0
    %1748 = vmatpush2.msra.mxu0 0.0
    %1749 = vmatprep.subr.mxu0 0.0
    %1750 = vmatpush2.msra.mxu0 0.0
    %1751 = vmatprep.subr.mxu0 0.0
    %1752 = vmatpush2.msra.mxu0 0.0
    %1753 = vmatprep.subr.mxu0 0.0
    %1754 = vmatpush2.msra.mxu0 0.0
    %1755 = vmatprep.mubr.f32.mxu0 0.0
    %1756 = vmatmul.mubr.f32.gmra.mxu0 %v1689
    %v1757 = vpop.f32.mrf.mxu0
    %v1758 = vadd.f32 0.0, %v1757
    %v1759 = vpop.f32.mrf.mxu0
    %1760 = vdwg.mxu0
    %1761 = vrot.lane.b32.xlu0 %v282, 64
    %v1762 = vpop.permute.xlu0 %1761
    %v1765 = vsel %vm289, %v1606, 0
    %1767 = vmatprep.subr.mxu0 0.0
    %1768 = vmatpush1.msra.mxu0 0.0
    %1769 = vmatprep.subr.mxu0 0.0
    %1770 = vmatpush1.msra.mxu0 0.0
    %1771 = vmatprep.subr.mxu0 0.0
    %1772 = vmatpush1.msra.mxu0 0.0
    %1773 = vmatprep.subr.mxu0 0.0
    %1774 = vmatpush1.msra.mxu0 0.0
    %1775 = vmatprep.subr.mxu0 0.0
    %1776 = vmatpush1.msra.mxu0 0.0
    %1777 = vmatprep.subr.mxu0 0.0
    %1778 = vmatpush1.msra.mxu0 0.0
    %1779 = vmatprep.subr.mxu0 0.0
    %1780 = vmatpush1.msra.mxu0 0.0
    %1781 = vmatprep.subr.mxu0 0.0
    %1782 = vmatpush1.msra.mxu0 0.0
    %1783 = vmatprep.subr.mxu0 0.0
    %1784 = vmatpush1.msra.mxu0 0.0
    %1785 = vmatprep.subr.mxu0 0.0
    %1786 = vmatpush1.msra.mxu0 0.0
    %1787 = vmatprep.subr.mxu0 0.0
    %1788 = vmatpush1.msra.mxu0 0.0
    %1789 = vmatprep.subr.mxu0 0.0
    %1790 = vmatpush1.msra.mxu0 0.0
    %1791 = vmatprep.subr.mxu0 0.0
    %1792 = vmatpush1.msra.mxu0 0.0
    %1793 = vmatprep.subr.mxu0 0.0
    %1794 = vmatpush1.msra.mxu0 0.0
    %1795 = vmatprep.subr.mxu0 0.0
    %1796 = vmatpush1.msra.mxu0 0.0
    %1797 = vmatprep.subr.mxu0 0.0
    %1798 = vmatpush1.msra.mxu0 %v1762
    %1799 = vmatprep.subr.mxu0 0.0
    %1800 = vmatpush2.msra.mxu0 0.0
    %1801 = vmatprep.subr.mxu0 0.0
    %1802 = vmatpush2.msra.mxu0 0.0
    %1803 = vmatprep.subr.mxu0 0.0
    %1804 = vmatpush2.msra.mxu0 0.0
    %1805 = vmatprep.subr.mxu0 0.0
    %1806 = vmatpush2.msra.mxu0 0.0
    %1807 = vmatprep.subr.mxu0 0.0
    %1808 = vmatpush2.msra.mxu0 0.0
    %1809 = vmatprep.subr.mxu0 0.0
    %1810 = vmatpush2.msra.mxu0 0.0
    %1811 = vmatprep.subr.mxu0 0.0
    %1812 = vmatpush2.msra.mxu0 0.0
    %1813 = vmatprep.subr.mxu0 0.0
    %1814 = vmatpush2.msra.mxu0 0.0
    %1815 = vmatprep.subr.mxu0 0.0
    %1816 = vmatpush2.msra.mxu0 0.0
    %1817 = vmatprep.subr.mxu0 0.0
    %1818 = vmatpush2.msra.mxu0 0.0
    %1819 = vmatprep.subr.mxu0 0.0
    %1820 = vmatpush2.msra.mxu0 0.0
    %1821 = vmatprep.subr.mxu0 0.0
    %1822 = vmatpush2.msra.mxu0 0.0
    %1823 = vmatprep.subr.mxu0 0.0
    %1824 = vmatpush2.msra.mxu0 0.0
    %1825 = vmatprep.subr.mxu0 0.0
    %1826 = vmatpush2.msra.mxu0 0.0
    %1827 = vmatprep.subr.mxu0 0.0
    %1828 = vmatpush2.msra.mxu0 0.0
    %1829 = vmatprep.subr.mxu0 0.0
    %1830 = vmatpush2.msra.mxu0 0.0
    %1831 = vmatprep.mubr.f32.mxu0 0.0
    %1832 = vmatmul.mubr.f32.gmra.mxu0 %v1765
    %v1833 = vpop.f32.mrf.mxu0
    %v1834 = vadd.f32 0.0, %v1833
    %v1835 = vpop.f32.mrf.mxu0
    %1836 = vdwg.mxu0
    %1837 = vrot.lane.b32.xlu0 %v286, 64
    %v1838 = vpop.permute.xlu0 %1837
    %v1841 = vsel %vm289, %v1608, 0
    %1843 = vmatprep.subr.mxu0 0.0
    %1844 = vmatpush1.msra.mxu0 0.0
    %1845 = vmatprep.subr.mxu0 0.0
    %1846 = vmatpush1.msra.mxu0 0.0
    %1847 = vmatprep.subr.mxu0 0.0
    %1848 = vmatpush1.msra.mxu0 0.0
    %1849 = vmatprep.subr.mxu0 0.0
    %1850 = vmatpush1.msra.mxu0 0.0
    %1851 = vmatprep.subr.mxu0 0.0
    %1852 = vmatpush1.msra.mxu0 0.0
    %1853 = vmatprep.subr.mxu0 0.0
    %1854 = vmatpush1.msra.mxu0 0.0
    %1855 = vmatprep.subr.mxu0 0.0
    %1856 = vmatpush1.msra.mxu0 0.0
    %1857 = vmatprep.subr.mxu0 0.0
    %1858 = vmatpush1.msra.mxu0 0.0
    %1859 = vmatprep.subr.mxu0 0.0
    %1860 = vmatpush1.msra.mxu0 0.0
    %1861 = vmatprep.subr.mxu0 0.0
    %1862 = vmatpush1.msra.mxu0 0.0
    %1863 = vmatprep.subr.mxu0 0.0
    %1864 = vmatpush1.msra.mxu0 0.0
    %1865 = vmatprep.subr.mxu0 0.0
    %1866 = vmatpush1.msra.mxu0 0.0
    %1867 = vmatprep.subr.mxu0 0.0
    %1868 = vmatpush1.msra.mxu0 0.0
    %1869 = vmatprep.subr.mxu0 0.0
    %1870 = vmatpush1.msra.mxu0 0.0
    %1871 = vmatprep.subr.mxu0 0.0
    %1872 = vmatpush1.msra.mxu0 0.0
    %1873 = vmatprep.subr.mxu0 0.0
    %1874 = vmatpush1.msra.mxu0 %v1838
    %1875 = vmatprep.subr.mxu0 0.0
    %1876 = vmatpush2.msra.mxu0 0.0
    %1877 = vmatprep.subr.mxu0 0.0
    %1878 = vmatpush2.msra.mxu0 0.0
    %1879 = vmatprep.subr.mxu0 0.0
    %1880 = vmatpush2.msra.mxu0 0.0
    %1881 = vmatprep.subr.mxu0 0.0
    %1882 = vmatpush2.msra.mxu0 0.0
    %1883 = vmatprep.subr.mxu0 0.0
    %1884 = vmatpush2.msra.mxu0 0.0
    %1885 = vmatprep.subr.mxu0 0.0
    %1886 = vmatpush2.msra.mxu0 0.0
    %1887 = vmatprep.subr.mxu0 0.0
    %1888 = vmatpush2.msra.mxu0 0.0
    %1889 = vmatprep.subr.mxu0 0.0
    %1890 = vmatpush2.msra.mxu0 0.0
    %1891 = vmatprep.subr.mxu0 0.0
    %1892 = vmatpush2.msra.mxu0 0.0
    %1893 = vmatprep.subr.mxu0 0.0
    %1894 = vmatpush2.msra.mxu0 0.0
    %1895 = vmatprep.subr.mxu0 0.0
    %1896 = vmatpush2.msra.mxu0 0.0
    %1897 = vmatprep.subr.mxu0 0.0
    %1898 = vmatpush2.msra.mxu0 0.0
    %1899 = vmatprep.subr.mxu0 0.0
    %1900 = vmatpush2.msra.mxu0 0.0
    %1901 = vmatprep.subr.mxu0 0.0
    %1902 = vmatpush2.msra.mxu0 0.0
    %1903 = vmatprep.subr.mxu0 0.0
    %1904 = vmatpush2.msra.mxu0 0.0
    %1905 = vmatprep.subr.mxu0 0.0
    %1906 = vmatpush2.msra.mxu0 0.0
    %1907 = vmatprep.mubr.f32.mxu0 0.0
    %1908 = vmatmul.mubr.f32.gmra.mxu0 %v1841
    %v1909 = vpop.f32.mrf.mxu0
    %v1910 = vadd.f32 0.0, %v1909
    %v1911 = vpop.f32.mrf.mxu0
    %1912 = vdwg.mxu0
    %v1914 = vsel %vm289, %v1682, 0
    %1916 = vmatprep.subr.mxu0 0.0
    %1917 = vmatpush1.msra.mxu0 0.0
    %1918 = vmatprep.subr.mxu0 0.0
    %1919 = vmatpush1.msra.mxu0 0.0
    %1920 = vmatprep.subr.mxu0 0.0
    %1921 = vmatpush1.msra.mxu0 0.0
    %1922 = vmatprep.subr.mxu0 0.0
    %1923 = vmatpush1.msra.mxu0 0.0
    %1924 = vmatprep.subr.mxu0 0.0
    %1925 = vmatpush1.msra.mxu0 0.0
    %1926 = vmatprep.subr.mxu0 0.0
    %1927 = vmatpush1.msra.mxu0 0.0
    %1928 = vmatprep.subr.mxu0 0.0
    %1929 = vmatpush1.msra.mxu0 0.0
    %1930 = vmatprep.subr.mxu0 0.0
    %1931 = vmatpush1.msra.mxu0 0.0
    %1932 = vmatprep.subr.mxu0 0.0
    %1933 = vmatpush1.msra.mxu0 0.0
    %1934 = vmatprep.subr.mxu0 0.0
    %1935 = vmatpush1.msra.mxu0 0.0
    %1936 = vmatprep.subr.mxu0 0.0
    %1937 = vmatpush1.msra.mxu0 0.0
    %1938 = vmatprep.subr.mxu0 0.0
    %1939 = vmatpush1.msra.mxu0 0.0
    %1940 = vmatprep.subr.mxu0 0.0
    %1941 = vmatpush1.msra.mxu0 0.0
    %1942 = vmatprep.subr.mxu0 0.0
    %1943 = vmatpush1.msra.mxu0 0.0
    %1944 = vmatprep.subr.mxu0 0.0
    %1945 = vmatpush1.msra.mxu0 0.0
    %1946 = vmatprep.subr.mxu0 0.0
    %1947 = vmatpush1.msra.mxu0 %v124
    %1948 = vmatprep.subr.mxu0 0.0
    %1949 = vmatpush2.msra.mxu0 0.0
    %1950 = vmatprep.subr.mxu0 0.0
    %1951 = vmatpush2.msra.mxu0 0.0
    %1952 = vmatprep.subr.mxu0 0.0
    %1953 = vmatpush2.msra.mxu0 0.0
    %1954 = vmatprep.subr.mxu0 0.0
    %1955 = vmatpush2.msra.mxu0 0.0
    %1956 = vmatprep.subr.mxu0 0.0
    %1957 = vmatpush2.msra.mxu0 0.0
    %1958 = vmatprep.subr.mxu0 0.0
    %1959 = vmatpush2.msra.mxu0 0.0
    %1960 = vmatprep.subr.mxu0 0.0
    %1961 = vmatpush2.msra.mxu0 0.0
    %1962 = vmatprep.subr.mxu0 0.0
    %1963 = vmatpush2.msra.mxu0 0.0
    %1964 = vmatprep.subr.mxu0 0.0
    %1965 = vmatpush2.msra.mxu0 0.0
    %1966 = vmatprep.subr.mxu0 0.0
    %1967 = vmatpush2.msra.mxu0 0.0
    %1968 = vmatprep.subr.mxu0 0.0
    %1969 = vmatpush2.msra.mxu0 0.0
    %1970 = vmatprep.subr.mxu0 0.0
    %1971 = vmatpush2.msra.mxu0 0.0
    %1972 = vmatprep.subr.mxu0 0.0
    %1973 = vmatpush2.msra.mxu0 0.0
    %1974 = vmatprep.subr.mxu0 0.0
    %1975 = vmatpush2.msra.mxu0 0.0
    %1976 = vmatprep.subr.mxu0 0.0
    %1977 = vmatpush2.msra.mxu0 0.0
    %1978 = vmatprep.subr.mxu0 0.0
    %1979 = vmatpush2.msra.mxu0 0.0
    %1980 = vmatprep.mubr.f32.mxu0 0.0
    %1981 = vmatmul.mubr.f32.gmra.mxu0 %v1914
    %v1982 = vpop.f32.mrf.mxu0
    %v1983 = vadd.f32 0.0, %v1982
    %v1984 = vpop.f32.mrf.mxu0
    %1985 = vdwg.mxu0
    %v1987 = vsel %vm289, %v1758, 0
    %1989 = vmatprep.subr.mxu0 0.0
    %1990 = vmatpush1.msra.mxu0 0.0
    %1991 = vmatprep.subr.mxu0 0.0
    %1992 = vmatpush1.msra.mxu0 0.0
    %1993 = vmatprep.subr.mxu0 0.0
    %1994 = vmatpush1.msra.mxu0 0.0
    %1995 = vmatprep.subr.mxu0 0.0
    %1996 = vmatpush1.msra.mxu0 0.0
    %1997 = vmatprep.subr.mxu0 0.0
    %1998 = vmatpush1.msra.mxu0 0.0
    %1999 = vmatprep.subr.mxu0 0.0
    %2000 = vmatpush1.msra.mxu0 0.0
    %2001 = vmatprep.subr.mxu0 0.0
    %2002 = vmatpush1.msra.mxu0 0.0
    %2003 = vmatprep.subr.mxu0 0.0
    %2004 = vmatpush1.msra.mxu0 0.0
    %2005 = vmatprep.subr.mxu0 0.0
    %2006 = vmatpush1.msra.mxu0 0.0
    %2007 = vmatprep.subr.mxu0 0.0
    %2008 = vmatpush1.msra.mxu0 0.0
    %2009 = vmatprep.subr.mxu0 0.0
    %2010 = vmatpush1.msra.mxu0 0.0
    %2011 = vmatprep.subr.mxu0 0.0
    %2012 = vmatpush1.msra.mxu0 0.0
    %2013 = vmatprep.subr.mxu0 0.0
    %2014 = vmatpush1.msra.mxu0 0.0
    %2015 = vmatprep.subr.mxu0 0.0
    %2016 = vmatpush1.msra.mxu0 0.0
    %2017 = vmatprep.subr.mxu0 0.0
    %2018 = vmatpush1.msra.mxu0 0.0
    %2019 = vmatprep.subr.mxu0 0.0
    %2020 = vmatpush1.msra.mxu0 %v125
    %2021 = vmatprep.subr.mxu0 0.0
    %2022 = vmatpush2.msra.mxu0 0.0
    %2023 = vmatprep.subr.mxu0 0.0
    %2024 = vmatpush2.msra.mxu0 0.0
    %2025 = vmatprep.subr.mxu0 0.0
    %2026 = vmatpush2.msra.mxu0 0.0
    %2027 = vmatprep.subr.mxu0 0.0
    %2028 = vmatpush2.msra.mxu0 0.0
    %2029 = vmatprep.subr.mxu0 0.0
    %2030 = vmatpush2.msra.mxu0 0.0
    %2031 = vmatprep.subr.mxu0 0.0
    %2032 = vmatpush2.msra.mxu0 0.0
    %2033 = vmatprep.subr.mxu0 0.0
    %2034 = vmatpush2.msra.mxu0 0.0
    %2035 = vmatprep.subr.mxu0 0.0
    %2036 = vmatpush2.msra.mxu0 0.0
    %2037 = vmatprep.subr.mxu0 0.0
    %2038 = vmatpush2.msra.mxu0 0.0
    %2039 = vmatprep.subr.mxu0 0.0
    %2040 = vmatpush2.msra.mxu0 0.0
    %2041 = vmatprep.subr.mxu0 0.0
    %2042 = vmatpush2.msra.mxu0 0.0
    %2043 = vmatprep.subr.mxu0 0.0
    %2044 = vmatpush2.msra.mxu0 0.0
    %2045 = vmatprep.subr.mxu0 0.0
    %2046 = vmatpush2.msra.mxu0 0.0
    %2047 = vmatprep.subr.mxu0 0.0
    %2048 = vmatpush2.msra.mxu0 0.0
    %2049 = vmatprep.subr.mxu0 0.0
    %2050 = vmatpush2.msra.mxu0 0.0
    %2051 = vmatprep.subr.mxu0 0.0
    %2052 = vmatpush2.msra.mxu0 0.0
    %2053 = vmatprep.mubr.f32.mxu0 0.0
    %2054 = vmatmul.mubr.f32.gmra.mxu0 %v1987
    %v2055 = vpop.f32.mrf.mxu0
    %v2056 = vadd.f32 0.0, %v2055
    %v2057 = vpop.f32.mrf.mxu0
    %2058 = vdwg.mxu0
    %v2060 = vsel %vm289, %v1834, 0
    %2062 = vmatprep.subr.mxu0 0.0
    %2063 = vmatpush1.msra.mxu0 0.0
    %2064 = vmatprep.subr.mxu0 0.0
    %2065 = vmatpush1.msra.mxu0 0.0
    %2066 = vmatprep.subr.mxu0 0.0
    %2067 = vmatpush1.msra.mxu0 0.0
    %2068 = vmatprep.subr.mxu0 0.0
    %2069 = vmatpush1.msra.mxu0 0.0
    %2070 = vmatprep.subr.mxu0 0.0
    %2071 = vmatpush1.msra.mxu0 0.0
    %2072 = vmatprep.subr.mxu0 0.0
    %2073 = vmatpush1.msra.mxu0 0.0
    %2074 = vmatprep.subr.mxu0 0.0
    %2075 = vmatpush1.msra.mxu0 0.0
    %2076 = vmatprep.subr.mxu0 0.0
    %2077 = vmatpush1.msra.mxu0 0.0
    %2078 = vmatprep.subr.mxu0 0.0
    %2079 = vmatpush1.msra.mxu0 0.0
    %2080 = vmatprep.subr.mxu0 0.0
    %2081 = vmatpush1.msra.mxu0 0.0
    %2082 = vmatprep.subr.mxu0 0.0
    %2083 = vmatpush1.msra.mxu0 0.0
    %2084 = vmatprep.subr.mxu0 0.0
    %2085 = vmatpush1.msra.mxu0 0.0
    %2086 = vmatprep.subr.mxu0 0.0
    %2087 = vmatpush1.msra.mxu0 0.0
    %2088 = vmatprep.subr.mxu0 0.0
    %2089 = vmatpush1.msra.mxu0 0.0
    %2090 = vmatprep.subr.mxu0 0.0
    %2091 = vmatpush1.msra.mxu0 0.0
    %2092 = vmatprep.subr.mxu0 0.0
    %2093 = vmatpush1.msra.mxu0 %v126
    %2094 = vmatprep.subr.mxu0 0.0
    %2095 = vmatpush2.msra.mxu0 0.0
    %2096 = vmatprep.subr.mxu0 0.0
    %2097 = vmatpush2.msra.mxu0 0.0
    %2098 = vmatprep.subr.mxu0 0.0
    %2099 = vmatpush2.msra.mxu0 0.0
    %2100 = vmatprep.subr.mxu0 0.0
    %2101 = vmatpush2.msra.mxu0 0.0
    %2102 = vmatprep.subr.mxu0 0.0
    %2103 = vmatpush2.msra.mxu0 0.0
    %2104 = vmatprep.subr.mxu0 0.0
    %2105 = vmatpush2.msra.mxu0 0.0
    %2106 = vmatprep.subr.mxu0 0.0
    %2107 = vmatpush2.msra.mxu0 0.0
    %2108 = vmatprep.subr.mxu0 0.0
    %2109 = vmatpush2.msra.mxu0 0.0
    %2110 = vmatprep.subr.mxu0 0.0
    %2111 = vmatpush2.msra.mxu0 0.0
    %2112 = vmatprep.subr.mxu0 0.0
    %2113 = vmatpush2.msra.mxu0 0.0
    %2114 = vmatprep.subr.mxu0 0.0
    %2115 = vmatpush2.msra.mxu0 0.0
    %2116 = vmatprep.subr.mxu0 0.0
    %2117 = vmatpush2.msra.mxu0 0.0
    %2118 = vmatprep.subr.mxu0 0.0
    %2119 = vmatpush2.msra.mxu0 0.0
    %2120 = vmatprep.subr.mxu0 0.0
    %2121 = vmatpush2.msra.mxu0 0.0
    %2122 = vmatprep.subr.mxu0 0.0
    %2123 = vmatpush2.msra.mxu0 0.0
    %2124 = vmatprep.subr.mxu0 0.0
    %2125 = vmatpush2.msra.mxu0 0.0
    %2126 = vmatprep.mubr.f32.mxu0 0.0
    %2127 = vmatmul.mubr.f32.gmra.mxu0 %v2060
    %v2128 = vpop.f32.mrf.mxu0
    %v2129 = vadd.f32 0.0, %v2128
    %v2130 = vpop.f32.mrf.mxu0
    %2131 = vdwg.mxu0
    %v2133 = vsel %vm289, %v1910, 0
    %2135 = vmatprep.subr.mxu0 0.0
    %2136 = vmatpush1.msra.mxu0 0.0
    %2137 = vmatprep.subr.mxu0 0.0
    %2138 = vmatpush1.msra.mxu0 0.0
    %2139 = vmatprep.subr.mxu0 0.0
    %2140 = vmatpush1.msra.mxu0 0.0
    %2141 = vmatprep.subr.mxu0 0.0
    %2142 = vmatpush1.msra.mxu0 0.0
    %2143 = vmatprep.subr.mxu0 0.0
    %2144 = vmatpush1.msra.mxu0 0.0
    %2145 = vmatprep.subr.mxu0 0.0
    %2146 = vmatpush1.msra.mxu0 0.0
    %2147 = vmatprep.subr.mxu0 0.0
    %2148 = vmatpush1.msra.mxu0 0.0
    %2149 = vmatprep.subr.mxu0 0.0
    %2150 = vmatpush1.msra.mxu0 0.0
    %2151 = vmatprep.subr.mxu0 0.0
    %2152 = vmatpush1.msra.mxu0 0.0
    %2153 = vmatprep.subr.mxu0 0.0
    %2154 = vmatpush1.msra.mxu0 0.0
    %2155 = vmatprep.subr.mxu0 0.0
    %2156 = vmatpush1.msra.mxu0 0.0
    %2157 = vmatprep.subr.mxu0 0.0
    %2158 = vmatpush1.msra.mxu0 0.0
    %2159 = vmatprep.subr.mxu0 0.0
    %2160 = vmatpush1.msra.mxu0 0.0
    %2161 = vmatprep.subr.mxu0 0.0
    %2162 = vmatpush1.msra.mxu0 0.0
    %2163 = vmatprep.subr.mxu0 0.0
    %2164 = vmatpush1.msra.mxu0 0.0
    %2165 = vmatprep.subr.mxu0 0.0
    %2166 = vmatpush1.msra.mxu0 %v127
    %2167 = vmatprep.subr.mxu0 0.0
    %2168 = vmatpush2.msra.mxu0 0.0
    %2169 = vmatprep.subr.mxu0 0.0
    %2170 = vmatpush2.msra.mxu0 0.0
    %2171 = vmatprep.subr.mxu0 0.0
    %2172 = vmatpush2.msra.mxu0 0.0
    %2173 = vmatprep.subr.mxu0 0.0
    %2174 = vmatpush2.msra.mxu0 0.0
    %2175 = vmatprep.subr.mxu0 0.0
    %2176 = vmatpush2.msra.mxu0 0.0
    %2177 = vmatprep.subr.mxu0 0.0
    %2178 = vmatpush2.msra.mxu0 0.0
    %2179 = vmatprep.subr.mxu0 0.0
    %2180 = vmatpush2.msra.mxu0 0.0
    %2181 = vmatprep.subr.mxu0 0.0
    %2182 = vmatpush2.msra.mxu0 0.0
    %2183 = vmatprep.subr.mxu0 0.0
    %2184 = vmatpush2.msra.mxu0 0.0
    %2185 = vmatprep.subr.mxu0 0.0
    %2186 = vmatpush2.msra.mxu0 0.0
    %2187 = vmatprep.subr.mxu0 0.0
    %2188 = vmatpush2.msra.mxu0 0.0
    %2189 = vmatprep.subr.mxu0 0.0
    %2190 = vmatpush2.msra.mxu0 0.0
    %2191 = vmatprep.subr.mxu0 0.0
    %2192 = vmatpush2.msra.mxu0 0.0
    %2193 = vmatprep.subr.mxu0 0.0
    %2194 = vmatpush2.msra.mxu0 0.0
    %2195 = vmatprep.subr.mxu0 0.0
    %2196 = vmatpush2.msra.mxu0 0.0
    %2197 = vmatprep.subr.mxu0 0.0
    %2198 = vmatpush2.msra.mxu0 0.0
    %2199 = vmatprep.mubr.f32.mxu0 0.0
    %2200 = vmatmul.mubr.f32.gmra.mxu0 %v2133
    %v2201 = vpop.f32.mrf.mxu0
    %v2202 = vadd.f32 0.0, %v2201
    %v2203 = vpop.f32.mrf.mxu0
    %2204 = vdwg.mxu0
    %v2205 = vsel %vm133, %v1983, 0.0
    %v2206 = vsel %vm133, %v2056, 0.0
    %v2207 = vadd.f32 %v2205, %v2206
    %v2208 = vsel %vm133, %v2129, 0.0
    %v2209 = vadd.f32 %v2207, %v2208
    %v2210 = vsel %vm133, %v2202, 0.0
    %v2211 = vadd.f32 %v2209, %v2210
    %2213 = vrot.lane.b32.xlu0 %v191, 32
    %v2214 = vpop.permute.xlu0 %2213
    %v2216 = vadd.f32 %v1249, %v2214
    %v2217 = vadd.f32 %v2211, %v2214
    %v2218 = vadd.f32 %v107, %v2216
    %v2219 = vadd.f32 %v108, %v2217
    %v2220 = vsel %vm133, %v2218, 0.0
    %2221 = vadd.xlane.f32.xlu0 %v2220
    %v2222 = vpop.xlane.xlu0 %2221
    %v2223 = vsel %vm133, %v2219, 0.0
    %2224 = vadd.xlane.f32.xlu0 %v2223
    %v2225 = vpop.xlane.xlu0 %2224
    %v2226 = vmul.f32 %v2222, %v140
    %v2227 = vmul.f32 %v2225, %v140
    %v2228 = vsub.f32 %v2218, %v2226
    %v2229 = vsub.f32 %v2219, %v2227
    %v2230 = vmul.f32 %v2228, %v2228
    %v2231 = vmul.f32 %v2229, %v2229
    %v2232 = vsel %vm133, %v2230, 0.0
    %2233 = vadd.xlane.f32.xlu0 %v2232
    %v2234 = vpop.xlane.xlu0 %2233
    %v2235 = vsel %vm133, %v2231, 0.0
    %2236 = vadd.xlane.f32.xlu0 %v2235
    %v2237 = vpop.xlane.xlu0 %2236
    %v2238 = vmul.f32 %v2234, %v153
    %v2239 = vmul.f32 %v2237, %v153
    %v2240 = vlaneseq
    %v2241 = vshrl.u32 %v2240, 7
    %v2242 = vsub.s32 2, %v2241
    %v2243 = vrot.slane %v115, %v2242
    %v2244 = vmul.f32 %v2243, %v2228
    %v2245 = vmul.f32 %v2243, %v2229
    %v2246 = vrsqrt.pop %v2238
    %v2247 = vmul.f32 %v2238, %v2246
    %vm2248 = vcmp.eq.f32.partialorder %v2238, inf
    %v2249 = vsel %vm2248, %v2238, %v2247
    %vm2250 = vcmp.eq.f32.partialorder %v2238, 0.0
    %v2251 = vand.u32 %v2238, 2147483648
    %v2252 = vsel %vm2250, %v2251, %v2249
    %v2253 = vrsqrt.pop %v2239
    %v2254 = vmul.f32 %v2239, %v2253
    %vm2255 = vcmp.eq.f32.partialorder %v2239, inf
    %v2256 = vsel %vm2255, %v2239, %v2254
    %vm2257 = vcmp.eq.f32.partialorder %v2239, 0.0
    %v2258 = vand.u32 %v2239, 2147483648
    %v2259 = vsel %vm2257, %v2258, %v2256
    %v2260 = vadd.f32 %v2252, 1e-06
    %v2261 = vadd.f32 %v2259, 1e-06
    %v2262 = vrcp.pop %v2260
    %v2263 = vmul.f32 %v2244, %v2262
    %v2264 = vrcp.pop %v2261
    %v2265 = vmul.f32 %v2245, %v2264
    %v2266 = vlaneseq
    %v2267 = vshrl.u32 %v2266, 7
    %v2268 = vsub.s32 3, %v2267
    %v2269 = vrot.slane %v115, %v2268
    %v2270 = vadd.f32 %v2263, %v2269
    %v2271 = vadd.f32 %v2265, %v2269
    %v2272 = vlaneseq
    %v2273 = vshrl.u32 %v2272, 7
    %v2274 = vsub.s32 1, %v2273
    %v2275 = vrot.slane %v132, %v2274
    %v2277 = vsel %vm133, %v2270, 0
    %v2280 = vsel %vm133, %v2271, 0
    %2282 = vmatprep.subr.mxu0 0.0
    %2283 = vmatpush1.msra.mxu0 0.0
    %2284 = vmatprep.subr.mxu0 0.0
    %2285 = vmatpush1.msra.mxu0 0.0
    %2286 = vmatprep.subr.mxu0 0.0
    %2287 = vmatpush1.msra.mxu0 0.0
    %2288 = vmatprep.subr.mxu0 0.0
    %2289 = vmatpush1.msra.mxu0 0.0
    %2290 = vmatprep.subr.mxu0 0.0
    %2291 = vmatpush1.msra.mxu0 0.0
    %2292 = vmatprep.subr.mxu0 0.0
    %2293 = vmatpush1.msra.mxu0 0.0
    %2294 = vmatprep.subr.mxu0 0.0
    %2295 = vmatpush1.msra.mxu0 0.0
    %2296 = vmatprep.subr.mxu0 0.0
    %2297 = vmatpush1.msra.mxu0 0.0
    %2298 = vmatprep.subr.mxu0 0.0
    %2299 = vmatpush1.msra.mxu0 0.0
    %2300 = vmatprep.subr.mxu0 0.0
    %2301 = vmatpush1.msra.mxu0 0.0
    %2302 = vmatprep.subr.mxu0 0.0
    %2303 = vmatpush1.msra.mxu0 0.0
    %2304 = vmatprep.subr.mxu0 0.0
    %2305 = vmatpush1.msra.mxu0 0.0
    %2306 = vmatprep.subr.mxu0 0.0
    %2307 = vmatpush1.msra.mxu0 %v123
    %2308 = vmatprep.subr.mxu0 0.0
    %2309 = vmatpush1.msra.mxu0 %v122
    %2310 = vmatprep.subr.mxu0 0.0
    %2311 = vmatpush1.msra.mxu0 %v121
    %2312 = vmatprep.subr.mxu0 0.0
    %2313 = vmatpush1.msra.mxu0 %v120
    %2314 = vmatprep.subr.mxu0 0.0
    %2315 = vmatpush2.msra.mxu0 0.0
    %2316 = vmatprep.subr.mxu0 0.0
    %2317 = vmatpush2.msra.mxu0 0.0
    %2318 = vmatprep.subr.mxu0 0.0
    %2319 = vmatpush2.msra.mxu0 0.0
    %2320 = vmatprep.subr.mxu0 0.0
    %2321 = vmatpush2.msra.mxu0 0.0
    %2322 = vmatprep.subr.mxu0 0.0
    %2323 = vmatpush2.msra.mxu0 0.0
    %2324 = vmatprep.subr.mxu0 0.0
    %2325 = vmatpush2.msra.mxu0 0.0
    %2326 = vmatprep.subr.mxu0 0.0
    %2327 = vmatpush2.msra.mxu0 0.0
    %2328 = vmatprep.subr.mxu0 0.0
    %2329 = vmatpush2.msra.mxu0 0.0
    %2330 = vmatprep.subr.mxu0 0.0
    %2331 = vmatpush2.msra.mxu0 0.0
    %2332 = vmatprep.subr.mxu0 0.0
    %2333 = vmatpush2.msra.mxu0 0.0
    %2334 = vmatprep.subr.mxu0 0.0
    %2335 = vmatpush2.msra.mxu0 0.0
    %2336 = vmatprep.subr.mxu0 0.0
    %2337 = vmatpush2.msra.mxu0 0.0
    %2338 = vmatprep.subr.mxu0 0.0
    %2339 = vmatpush2.msra.mxu0 0.0
    %2340 = vmatprep.subr.mxu0 0.0
    %2341 = vmatpush2.msra.mxu0 0.0
    %2342 = vmatprep.subr.mxu0 0.0
    %2343 = vmatpush2.msra.mxu0 0.0
    %2344 = vmatprep.subr.mxu0 0.0
    %2345 = vmatpush2.msra.mxu0 0.0
    %2346 = vmatprep.mubr.f32.mxu0 0.0
    %2347 = vmatmul.mubr.f32.gmra.mxu0 %v2277
    %v2348 = vpop.f32.mrf.mxu0
    %v2349 = vadd.f32 %v2275, %v2348
    %v2350 = vpop.f32.mrf.mxu0
    %2351 = vmatprep.mubr.f32.mxu0 0.0
    %2352 = vmatmul.mubr.f32.gmra.mxu0 %v2280
    %v2353 = vpop.f32.mrf.mxu0
    %v2354 = vadd.f32 %v2275, %v2353
    %v2355 = vpop.f32.mrf.mxu0
    %2356 = vdwg.mxu0
    %2361 = vrot.lane.b32.xlu0 %v120, 96
    %v2362 = vpop.permute.xlu0 %2361
    %2363 = vrot.lane.b32.xlu0 %v121, 96
    %v2364 = vpop.permute.xlu0 %2363
    %2365 = vrot.lane.b32.xlu0 %v122, 96
    %v2366 = vpop.permute.xlu0 %2365
    %2367 = vrot.lane.b32.xlu0 %v123, 96
    %v2368 = vpop.permute.xlu0 %2367
    %2374 = vrot.lane.b32.xlu0 %v2275, 96
    %v2375 = vpop.permute.xlu0 %2374
    %v2378 = vsel %vm133, %v109, 0
    %v2381 = vsel %vm133, %v110, 0
    %2383 = vmatprep.subr.mxu0 0.0
    %2384 = vmatpush1.msra.mxu0 0.0
    %2385 = vmatprep.subr.mxu0 0.0
    %2386 = vmatpush1.msra.mxu0 0.0
    %2387 = vmatprep.subr.mxu0 0.0
    %2388 = vmatpush1.msra.mxu0 0.0
    %2389 = vmatprep.subr.mxu0 0.0
    %2390 = vmatpush1.msra.mxu0 0.0
    %2391 = vmatprep.subr.mxu0 0.0
    %2392 = vmatpush1.msra.mxu0 0.0
    %2393 = vmatprep.subr.mxu0 0.0
    %2394 = vmatpush1.msra.mxu0 0.0
    %2395 = vmatprep.subr.mxu0 0.0
    %2396 = vmatpush1.msra.mxu0 0.0
    %2397 = vmatprep.subr.mxu0 0.0
    %2398 = vmatpush1.msra.mxu0 0.0
    %2399 = vmatprep.subr.mxu0 0.0
    %2400 = vmatpush1.msra.mxu0 0.0
    %2401 = vmatprep.subr.mxu0 0.0
    %2402 = vmatpush1.msra.mxu0 0.0
    %2403 = vmatprep.subr.mxu0 0.0
    %2404 = vmatpush1.msra.mxu0 0.0
    %2405 = vmatprep.subr.mxu0 0.0
    %2406 = vmatpush1.msra.mxu0 0.0
    %2407 = vmatprep.subr.mxu0 0.0
    %2408 = vmatpush1.msra.mxu0 %v2368
    %2409 = vmatprep.subr.mxu0 0.0
    %2410 = vmatpush1.msra.mxu0 %v2366
    %2411 = vmatprep.subr.mxu0 0.0
    %2412 = vmatpush1.msra.mxu0 %v2364
    %2413 = vmatprep.subr.mxu0 0.0
    %2414 = vmatpush1.msra.mxu0 %v2362
    %2415 = vmatprep.subr.mxu0 0.0
    %2416 = vmatpush2.msra.mxu0 0.0
    %2417 = vmatprep.subr.mxu0 0.0
    %2418 = vmatpush2.msra.mxu0 0.0
    %2419 = vmatprep.subr.mxu0 0.0
    %2420 = vmatpush2.msra.mxu0 0.0
    %2421 = vmatprep.subr.mxu0 0.0
    %2422 = vmatpush2.msra.mxu0 0.0
    %2423 = vmatprep.subr.mxu0 0.0
    %2424 = vmatpush2.msra.mxu0 0.0
    %2425 = vmatprep.subr.mxu0 0.0
    %2426 = vmatpush2.msra.mxu0 0.0
    %2427 = vmatprep.subr.mxu0 0.0
    %2428 = vmatpush2.msra.mxu0 0.0
    %2429 = vmatprep.subr.mxu0 0.0
    %2430 = vmatpush2.msra.mxu0 0.0
    %2431 = vmatprep.subr.mxu0 0.0
    %2432 = vmatpush2.msra.mxu0 0.0
    %2433 = vmatprep.subr.mxu0 0.0
    %2434 = vmatpush2.msra.mxu0 0.0
    %2435 = vmatprep.subr.mxu0 0.0
    %2436 = vmatpush2.msra.mxu0 0.0
    %2437 = vmatprep.subr.mxu0 0.0
    %2438 = vmatpush2.msra.mxu0 0.0
    %2439 = vmatprep.subr.mxu0 0.0
    %2440 = vmatpush2.msra.mxu0 0.0
    %2441 = vmatprep.subr.mxu0 0.0
    %2442 = vmatpush2.msra.mxu0 0.0
    %2443 = vmatprep.subr.mxu0 0.0
    %2444 = vmatpush2.msra.mxu0 0.0
    %2445 = vmatprep.subr.mxu0 0.0
    %2446 = vmatpush2.msra.mxu0 0.0
    %2447 = vmatprep.mubr.f32.mxu0 0.0
    %2448 = vmatmul.mubr.f32.gmra.mxu0 %v2378
    %v2449 = vpop.f32.mrf.mxu0
    %v2450 = vadd.f32 %v2375, %v2449
    %v2451 = vpop.f32.mrf.mxu0
    %2452 = vmatprep.mubr.f32.mxu0 0.0
    %2453 = vmatmul.mubr.f32.gmra.mxu0 %v2381
    %v2454 = vpop.f32.mrf.mxu0
    %v2455 = vadd.f32 %v2375, %v2454
    %v2456 = vpop.f32.mrf.mxu0
    %2457 = vdwg.mxu0
    %2460 = vrot.lane.b32.xlu0 %v2349, 120
    %v2461 = vpop.permute.xlu0 %2460
    %2462 = vrot.lane.b32.xlu0 %v2354, 120
    %v2463 = vpop.permute.xlu0 %2462
    %2464 = vrot.lane.b32.xlu0 %v2349, 112
    %v2465 = vpop.permute.xlu0 %2464
    %2466 = vrot.lane.b32.xlu0 %v2354, 112
    %v2467 = vpop.permute.xlu0 %2466
    %2468 = vrot.lane.b32.xlu0 %v2349, 104
    %v2469 = vpop.permute.xlu0 %2468
    %2470 = vrot.lane.b32.xlu0 %v2354, 104
    %v2471 = vpop.permute.xlu0 %2470
    %2474 = vrot.lane.b32.xlu0 %v2450, 120
    %v2475 = vpop.permute.xlu0 %2474
    %2476 = vrot.lane.b32.xlu0 %v2455, 120
    %v2477 = vpop.permute.xlu0 %2476
    %2478 = vrot.lane.b32.xlu0 %v2450, 112
    %v2479 = vpop.permute.xlu0 %2478
    %2480 = vrot.lane.b32.xlu0 %v2455, 112
    %v2481 = vpop.permute.xlu0 %2480
    %2482 = vrot.lane.b32.xlu0 %v2450, 104
    %v2483 = vpop.permute.xlu0 %2482
    %2484 = vrot.lane.b32.xlu0 %v2455, 104
    %v2485 = vpop.permute.xlu0 %2484
    %v2486 = vsel %vm289, %v2349, 0
    %v2488 = vsel %vm289, %v2450, 0
    %2490 = vmatprep.subr.mxu0 0.0
    %2491 = vmatpush1.xpose.msra.mxu0 0.0
    %2492 = vmatprep.subr.mxu0 0.0
    %2493 = vmatpush1.xpose.msra.mxu0 0.0
    %2494 = vmatprep.subr.mxu0 0.0
    %2495 = vmatpush1.xpose.msra.mxu0 0.0
    %2496 = vmatprep.subr.mxu0 0.0
    %2497 = vmatpush1.xpose.msra.mxu0 0.0
    %2498 = vmatprep.subr.mxu0 0.0
    %2499 = vmatpush1.xpose.msra.mxu0 0.0
    %2500 = vmatprep.subr.mxu0 0.0
    %2501 = vmatpush1.xpose.msra.mxu0 0.0
    %2502 = vmatprep.subr.mxu0 0.0
    %2503 = vmatpush1.xpose.msra.mxu0 0.0
    %2504 = vmatprep.subr.mxu0 0.0
    %2505 = vmatpush1.xpose.msra.mxu0 0.0
    %2506 = vmatprep.subr.mxu0 0.0
    %2507 = vmatpush1.xpose.msra.mxu0 0.0
    %2508 = vmatprep.subr.mxu0 0.0
    %2509 = vmatpush1.xpose.msra.mxu0 0.0
    %2510 = vmatprep.subr.mxu0 0.0
    %2511 = vmatpush1.xpose.msra.mxu0 0.0
    %2512 = vmatprep.subr.mxu0 0.0
    %2513 = vmatpush1.xpose.msra.mxu0 0.0
    %2514 = vmatprep.subr.mxu0 0.0
    %2515 = vmatpush1.xpose.msra.mxu0 0.0
    %2516 = vmatprep.subr.mxu0 0.0
    %2517 = vmatpush1.xpose.msra.mxu0 0.0
    %2518 = vmatprep.subr.mxu0 0.0
    %2519 = vmatpush1.xpose.msra.mxu0 0.0
    %2520 = vmatprep.subr.mxu0 0.0
    %2521 = vmatpush1.xpose.msra.mxu0 %v2488
    %2522 = vmatprep.subr.mxu0 0.0
    %2523 = vmatpush2.xpose.msra.mxu0 0.0
    %2524 = vmatprep.subr.mxu0 0.0
    %2525 = vmatpush2.xpose.msra.mxu0 0.0
    %2526 = vmatprep.subr.mxu0 0.0
    %2527 = vmatpush2.xpose.msra.mxu0 0.0
    %2528 = vmatprep.subr.mxu0 0.0
    %2529 = vmatpush2.xpose.msra.mxu0 0.0
    %2530 = vmatprep.subr.mxu0 0.0
    %2531 = vmatpush2.xpose.msra.mxu0 0.0
    %2532 = vmatprep.subr.mxu0 0.0
    %2533 = vmatpush2.xpose.msra.mxu0 0.0
    %2534 = vmatprep.subr.mxu0 0.0
    %2535 = vmatpush2.xpose.msra.mxu0 0.0
    %2536 = vmatprep.subr.mxu0 0.0
    %2537 = vmatpush2.xpose.msra.mxu0 0.0
    %2538 = vmatprep.subr.mxu0 0.0
    %2539 = vmatpush2.xpose.msra.mxu0 0.0
    %2540 = vmatprep.subr.mxu0 0.0
    %2541 = vmatpush2.xpose.msra.mxu0 0.0
    %2542 = vmatprep.subr.mxu0 0.0
    %2543 = vmatpush2.xpose.msra.mxu0 0.0
    %2544 = vmatprep.subr.mxu0 0.0
    %2545 = vmatpush2.xpose.msra.mxu0 0.0
    %2546 = vmatprep.subr.mxu0 0.0
    %2547 = vmatpush2.xpose.msra.mxu0 0.0
    %2548 = vmatprep.subr.mxu0 0.0
    %2549 = vmatpush2.xpose.msra.mxu0 0.0
    %2550 = vmatprep.subr.mxu0 0.0
    %2551 = vmatpush2.xpose.msra.mxu0 0.0
    %2552 = vmatprep.subr.mxu0 0.0
    %2553 = vmatpush2.xpose.msra.mxu0 0.0
    %2554 = vmatprep.mubr.f32.mxu0 0.0
    %2555 = vmatmul.mubr.f32.gmra.mxu0 %v2486
    %v2556 = vpop.f32.mrf.mxu0
    %v2557 = vadd.f32 0.0, %v2556
    %v2558 = vpop.f32.mrf.mxu0
    %2559 = vdwg.mxu0
    %v2560 = vsel %vm289, %v2461, 0
    %v2562 = vsel %vm289, %v2475, 0
    %2564 = vmatprep.subr.mxu0 0.0
    %2565 = vmatpush1.xpose.msra.mxu0 0.0
    %2566 = vmatprep.subr.mxu0 0.0
    %2567 = vmatpush1.xpose.msra.mxu0 0.0
    %2568 = vmatprep.subr.mxu0 0.0
    %2569 = vmatpush1.xpose.msra.mxu0 0.0
    %2570 = vmatprep.subr.mxu0 0.0
    %2571 = vmatpush1.xpose.msra.mxu0 0.0
    %2572 = vmatprep.subr.mxu0 0.0
    %2573 = vmatpush1.xpose.msra.mxu0 0.0
    %2574 = vmatprep.subr.mxu0 0.0
    %2575 = vmatpush1.xpose.msra.mxu0 0.0
    %2576 = vmatprep.subr.mxu0 0.0
    %2577 = vmatpush1.xpose.msra.mxu0 0.0
    %2578 = vmatprep.subr.mxu0 0.0
    %2579 = vmatpush1.xpose.msra.mxu0 0.0
    %2580 = vmatprep.subr.mxu0 0.0
    %2581 = vmatpush1.xpose.msra.mxu0 0.0
    %2582 = vmatprep.subr.mxu0 0.0
    %2583 = vmatpush1.xpose.msra.mxu0 0.0
    %2584 = vmatprep.subr.mxu0 0.0
    %2585 = vmatpush1.xpose.msra.mxu0 0.0
    %2586 = vmatprep.subr.mxu0 0.0
    %2587 = vmatpush1.xpose.msra.mxu0 0.0
    %2588 = vmatprep.subr.mxu0 0.0
    %2589 = vmatpush1.xpose.msra.mxu0 0.0
    %2590 = vmatprep.subr.mxu0 0.0
    %2591 = vmatpush1.xpose.msra.mxu0 0.0
    %2592 = vmatprep.subr.mxu0 0.0
    %2593 = vmatpush1.xpose.msra.mxu0 0.0
    %2594 = vmatprep.subr.mxu0 0.0
    %2595 = vmatpush1.xpose.msra.mxu0 %v2562
    %2596 = vmatprep.subr.mxu0 0.0
    %2597 = vmatpush2.xpose.msra.mxu0 0.0
    %2598 = vmatprep.subr.mxu0 0.0
    %2599 = vmatpush2.xpose.msra.mxu0 0.0
    %2600 = vmatprep.subr.mxu0 0.0
    %2601 = vmatpush2.xpose.msra.mxu0 0.0
    %2602 = vmatprep.subr.mxu0 0.0
    %2603 = vmatpush2.xpose.msra.mxu0 0.0
    %2604 = vmatprep.subr.mxu0 0.0
    %2605 = vmatpush2.xpose.msra.mxu0 0.0
    %2606 = vmatprep.subr.mxu0 0.0
    %2607 = vmatpush2.xpose.msra.mxu0 0.0
    %2608 = vmatprep.subr.mxu0 0.0
    %2609 = vmatpush2.xpose.msra.mxu0 0.0
    %2610 = vmatprep.subr.mxu0 0.0
    %2611 = vmatpush2.xpose.msra.mxu0 0.0
    %2612 = vmatprep.subr.mxu0 0.0
    %2613 = vmatpush2.xpose.msra.mxu0 0.0
    %2614 = vmatprep.subr.mxu0 0.0
    %2615 = vmatpush2.xpose.msra.mxu0 0.0
    %2616 = vmatprep.subr.mxu0 0.0
    %2617 = vmatpush2.xpose.msra.mxu0 0.0
    %2618 = vmatprep.subr.mxu0 0.0
    %2619 = vmatpush2.xpose.msra.mxu0 0.0
    %2620 = vmatprep.subr.mxu0 0.0
    %2621 = vmatpush2.xpose.msra.mxu0 0.0
    %2622 = vmatprep.subr.mxu0 0.0
    %2623 = vmatpush2.xpose.msra.mxu0 0.0
    %2624 = vmatprep.subr.mxu0 0.0
    %2625 = vmatpush2.xpose.msra.mxu0 0.0
    %2626 = vmatprep.subr.mxu0 0.0
    %2627 = vmatpush2.xpose.msra.mxu0 0.0
    %2628 = vmatprep.mubr.f32.mxu0 0.0
    %2629 = vmatmul.mubr.f32.gmra.mxu0 %v2560
    %v2630 = vpop.f32.mrf.mxu0
    %v2631 = vadd.f32 0.0, %v2630
    %v2632 = vpop.f32.mrf.mxu0
    %2633 = vdwg.mxu0
    %v2634 = vsel %vm289, %v2465, 0
    %v2636 = vsel %vm289, %v2479, 0
    %2638 = vmatprep.subr.mxu0 0.0
    %2639 = vmatpush1.xpose.msra.mxu0 0.0
    %2640 = vmatprep.subr.mxu0 0.0
    %2641 = vmatpush1.xpose.msra.mxu0 0.0
    %2642 = vmatprep.subr.mxu0 0.0
    %2643 = vmatpush1.xpose.msra.mxu0 0.0
    %2644 = vmatprep.subr.mxu0 0.0
    %2645 = vmatpush1.xpose.msra.mxu0 0.0
    %2646 = vmatprep.subr.mxu0 0.0
    %2647 = vmatpush1.xpose.msra.mxu0 0.0
    %2648 = vmatprep.subr.mxu0 0.0
    %2649 = vmatpush1.xpose.msra.mxu0 0.0
    %2650 = vmatprep.subr.mxu0 0.0
    %2651 = vmatpush1.xpose.msra.mxu0 0.0
    %2652 = vmatprep.subr.mxu0 0.0
    %2653 = vmatpush1.xpose.msra.mxu0 0.0
    %2654 = vmatprep.subr.mxu0 0.0
    %2655 = vmatpush1.xpose.msra.mxu0 0.0
    %2656 = vmatprep.subr.mxu0 0.0
    %2657 = vmatpush1.xpose.msra.mxu0 0.0
    %2658 = vmatprep.subr.mxu0 0.0
    %2659 = vmatpush1.xpose.msra.mxu0 0.0
    %2660 = vmatprep.subr.mxu0 0.0
    %2661 = vmatpush1.xpose.msra.mxu0 0.0
    %2662 = vmatprep.subr.mxu0 0.0
    %2663 = vmatpush1.xpose.msra.mxu0 0.0
    %2664 = vmatprep.subr.mxu0 0.0
    %2665 = vmatpush1.xpose.msra.mxu0 0.0
    %2666 = vmatprep.subr.mxu0 0.0
    %2667 = vmatpush1.xpose.msra.mxu0 0.0
    %2668 = vmatprep.subr.mxu0 0.0
    %2669 = vmatpush1.xpose.msra.mxu0 %v2636
    %2670 = vmatprep.subr.mxu0 0.0
    %2671 = vmatpush2.xpose.msra.mxu0 0.0
    %2672 = vmatprep.subr.mxu0 0.0
    %2673 = vmatpush2.xpose.msra.mxu0 0.0
    %2674 = vmatprep.subr.mxu0 0.0
    %2675 = vmatpush2.xpose.msra.mxu0 0.0
    %2676 = vmatprep.subr.mxu0 0.0
    %2677 = vmatpush2.xpose.msra.mxu0 0.0
    %2678 = vmatprep.subr.mxu0 0.0
    %2679 = vmatpush2.xpose.msra.mxu0 0.0
    %2680 = vmatprep.subr.mxu0 0.0
    %2681 = vmatpush2.xpose.msra.mxu0 0.0
    %2682 = vmatprep.subr.mxu0 0.0
    %2683 = vmatpush2.xpose.msra.mxu0 0.0
    %2684 = vmatprep.subr.mxu0 0.0
    %2685 = vmatpush2.xpose.msra.mxu0 0.0
    %2686 = vmatprep.subr.mxu0 0.0
    %2687 = vmatpush2.xpose.msra.mxu0 0.0
    %2688 = vmatprep.subr.mxu0 0.0
    %2689 = vmatpush2.xpose.msra.mxu0 0.0
    %2690 = vmatprep.subr.mxu0 0.0
    %2691 = vmatpush2.xpose.msra.mxu0 0.0
    %2692 = vmatprep.subr.mxu0 0.0
    %2693 = vmatpush2.xpose.msra.mxu0 0.0
    %2694 = vmatprep.subr.mxu0 0.0
    %2695 = vmatpush2.xpose.msra.mxu0 0.0
    %2696 = vmatprep.subr.mxu0 0.0
    %2697 = vmatpush2.xpose.msra.mxu0 0.0
    %2698 = vmatprep.subr.mxu0 0.0
    %2699 = vmatpush2.xpose.msra.mxu0 0.0
    %2700 = vmatprep.subr.mxu0 0.0
    %2701 = vmatpush2.xpose.msra.mxu0 0.0
    %2702 = vmatprep.mubr.f32.mxu0 0.0
    %2703 = vmatmul.mubr.f32.gmra.mxu0 %v2634
    %v2704 = vpop.f32.mrf.mxu0
    %v2705 = vadd.f32 0.0, %v2704
    %v2706 = vpop.f32.mrf.mxu0
    %2707 = vdwg.mxu0
    %v2708 = vsel %vm289, %v2469, 0
    %v2710 = vsel %vm289, %v2483, 0
    %2712 = vmatprep.subr.mxu0 0.0
    %2713 = vmatpush1.xpose.msra.mxu0 0.0
    %2714 = vmatprep.subr.mxu0 0.0
    %2715 = vmatpush1.xpose.msra.mxu0 0.0
    %2716 = vmatprep.subr.mxu0 0.0
    %2717 = vmatpush1.xpose.msra.mxu0 0.0
    %2718 = vmatprep.subr.mxu0 0.0
    %2719 = vmatpush1.xpose.msra.mxu0 0.0
    %2720 = vmatprep.subr.mxu0 0.0
    %2721 = vmatpush1.xpose.msra.mxu0 0.0
    %2722 = vmatprep.subr.mxu0 0.0
    %2723 = vmatpush1.xpose.msra.mxu0 0.0
    %2724 = vmatprep.subr.mxu0 0.0
    %2725 = vmatpush1.xpose.msra.mxu0 0.0
    %2726 = vmatprep.subr.mxu0 0.0
    %2727 = vmatpush1.xpose.msra.mxu0 0.0
    %2728 = vmatprep.subr.mxu0 0.0
    %2729 = vmatpush1.xpose.msra.mxu0 0.0
    %2730 = vmatprep.subr.mxu0 0.0
    %2731 = vmatpush1.xpose.msra.mxu0 0.0
    %2732 = vmatprep.subr.mxu0 0.0
    %2733 = vmatpush1.xpose.msra.mxu0 0.0
    %2734 = vmatprep.subr.mxu0 0.0
    %2735 = vmatpush1.xpose.msra.mxu0 0.0
    %2736 = vmatprep.subr.mxu0 0.0
    %2737 = vmatpush1.xpose.msra.mxu0 0.0
    %2738 = vmatprep.subr.mxu0 0.0
    %2739 = vmatpush1.xpose.msra.mxu0 0.0
    %2740 = vmatprep.subr.mxu0 0.0
    %2741 = vmatpush1.xpose.msra.mxu0 0.0
    %2742 = vmatprep.subr.mxu0 0.0
    %2743 = vmatpush1.xpose.msra.mxu0 %v2710
    %2744 = vmatprep.subr.mxu0 0.0
    %2745 = vmatpush2.xpose.msra.mxu0 0.0
    %2746 = vmatprep.subr.mxu0 0.0
    %2747 = vmatpush2.xpose.msra.mxu0 0.0
    %2748 = vmatprep.subr.mxu0 0.0
    %2749 = vmatpush2.xpose.msra.mxu0 0.0
    %2750 = vmatprep.subr.mxu0 0.0
    %2751 = vmatpush2.xpose.msra.mxu0 0.0
    %2752 = vmatprep.subr.mxu0 0.0
    %2753 = vmatpush2.xpose.msra.mxu0 0.0
    %2754 = vmatprep.subr.mxu0 0.0
    %2755 = vmatpush2.xpose.msra.mxu0 0.0
    %2756 = vmatprep.subr.mxu0 0.0
    %2757 = vmatpush2.xpose.msra.mxu0 0.0
    %2758 = vmatprep.subr.mxu0 0.0
    %2759 = vmatpush2.xpose.msra.mxu0 0.0
    %2760 = vmatprep.subr.mxu0 0.0
    %2761 = vmatpush2.xpose.msra.mxu0 0.0
    %2762 = vmatprep.subr.mxu0 0.0
    %2763 = vmatpush2.xpose.msra.mxu0 0.0
    %2764 = vmatprep.subr.mxu0 0.0
    %2765 = vmatpush2.xpose.msra.mxu0 0.0
    %2766 = vmatprep.subr.mxu0 0.0
    %2767 = vmatpush2.xpose.msra.mxu0 0.0
    %2768 = vmatprep.subr.mxu0 0.0
    %2769 = vmatpush2.xpose.msra.mxu0 0.0
    %2770 = vmatprep.subr.mxu0 0.0
    %2771 = vmatpush2.xpose.msra.mxu0 0.0
    %2772 = vmatprep.subr.mxu0 0.0
    %2773 = vmatpush2.xpose.msra.mxu0 0.0
    %2774 = vmatprep.subr.mxu0 0.0
    %2775 = vmatpush2.xpose.msra.mxu0 0.0
    %2776 = vmatprep.mubr.f32.mxu0 0.0
    %2777 = vmatmul.mubr.f32.gmra.mxu0 %v2708
    %v2778 = vpop.f32.mrf.mxu0
    %v2779 = vadd.f32 0.0, %v2778
    %v2780 = vpop.f32.mrf.mxu0
    %2781 = vdwg.mxu0
    %v2782 = vmul.f32 %v2557, 0.35355338
    %v2783 = vmul.f32 %v2631, 0.35355338
    %v2784 = vmul.f32 %v2705, 0.35355338
    %v2785 = vmul.f32 %v2779, 0.35355338
    %vm2786 = vcmp.eq.f32.partialorder %v113, 0.0
    %v2787 = vsel %vm2786, 1, 0
    %v2788 = vlaneseq
    %v2789 = vshrl.u32 %v2788, 7
    %v2790 = vsub.s32 0, %v2789
    %v2791 = vrot.slane %v2787, %v2790
    %vm2792 = vcmp.eq.s32.totalorder %v2791, 1
    %v2793 = vsel %vm2792, -1e+09, %v2782
    %v2794 = vsel %vm2792, -1e+09, %v2783
    %v2795 = vsel %vm2792, -1e+09, %v2784
    %v2796 = vsel %vm2792, -1e+09, %v2785
    %v2797 = vsel %vm289, %v2793, -inf
    %2798 = vmax.xlane.f32.xlu0 %v2797
    %v2799 = vpop.xlane.xlu0 %2798
    %v2800 = vsel %vm289, %v2794, -inf
    %2801 = vmax.xlane.f32.xlu0 %v2800
    %v2802 = vpop.xlane.xlu0 %2801
    %v2803 = vsel %vm289, %v2795, -inf
    %2804 = vmax.xlane.f32.xlu0 %v2803
    %v2805 = vpop.xlane.xlu0 %2804
    %v2806 = vsel %vm289, %v2796, -inf
    %2807 = vmax.xlane.f32.xlu0 %v2806
    %v2808 = vpop.xlane.xlu0 %2807
    %v2809 = vsub.f32 %v2793, %v2799
    %v2810 = vsub.f32 %v2794, %v2802
    %v2811 = vsub.f32 %v2795, %v2805
    %v2812 = vsub.f32 %v2796, %v2808
    %v2813 = vmul.f32 %v2809, 1.442695
    %v2814 = vpow.pop %v2813
    %v2815 = vmul.f32 %v2810, 1.442695
    %v2816 = vpow.pop %v2815
    %v2817 = vmul.f32 %v2811, 1.442695
    %v2818 = vpow.pop %v2817
    %v2819 = vmul.f32 %v2812, 1.442695
    %v2820 = vpow.pop %v2819
    %v2821 = vsel %vm289, %v2814, 0.0
    %2822 = vadd.xlane.f32.xlu0 %v2821
    %v2823 = vpop.xlane.xlu0 %2822
    %v2824 = vsel %vm289, %v2816, 0.0
    %2825 = vadd.xlane.f32.xlu0 %v2824
    %v2826 = vpop.xlane.xlu0 %2825
    %v2827 = vsel %vm289, %v2818, 0.0
    %2828 = vadd.xlane.f32.xlu0 %v2827
    %v2829 = vpop.xlane.xlu0 %2828
    %v2830 = vsel %vm289, %v2820, 0.0
    %2831 = vadd.xlane.f32.xlu0 %v2830
    %v2832 = vpop.xlane.xlu0 %2831
    %v2833 = vrcp.pop %v2823
    %v2834 = vmul.f32 %v2814, %v2833
    %v2835 = vrcp.pop %v2826
    %v2836 = vmul.f32 %v2816, %v2835
    %v2837 = vrcp.pop %v2829
    %v2838 = vmul.f32 %v2818, %v2837
    %v2839 = vrcp.pop %v2832
    %v2840 = vmul.f32 %v2820, %v2839
    %2841 = vrot.lane.b32.xlu0 %v2450, 96
    %v2842 = vpop.permute.xlu0 %2841
    %v2845 = vsel %vm289, %v2834, 0
    %2847 = vmatprep.subr.mxu0 0.0
    %2848 = vmatpush1.msra.mxu0 0.0
    %2849 = vmatprep.subr.mxu0 0.0
    %2850 = vmatpush1.msra.mxu0 0.0
    %2851 = vmatprep.subr.mxu0 0.0
    %2852 = vmatpush1.msra.mxu0 0.0
    %2853 = vmatprep.subr.mxu0 0.0
    %2854 = vmatpush1.msra.mxu0 0.0
    %2855 = vmatprep.subr.mxu0 0.0
    %2856 = vmatpush1.msra.mxu0 0.0
    %2857 = vmatprep.subr.mxu0 0.0
    %2858 = vmatpush1.msra.mxu0 0.0
    %2859 = vmatprep.subr.mxu0 0.0
    %2860 = vmatpush1.msra.mxu0 0.0
    %2861 = vmatprep.subr.mxu0 0.0
    %2862 = vmatpush1.msra.mxu0 0.0
    %2863 = vmatprep.subr.mxu0 0.0
    %2864 = vmatpush1.msra.mxu0 0.0
    %2865 = vmatprep.subr.mxu0 0.0
    %2866 = vmatpush1.msra.mxu0 0.0
    %2867 = vmatprep.subr.mxu0 0.0
    %2868 = vmatpush1.msra.mxu0 0.0
    %2869 = vmatprep.subr.mxu0 0.0
    %2870 = vmatpush1.msra.mxu0 0.0
    %2871 = vmatprep.subr.mxu0 0.0
    %2872 = vmatpush1.msra.mxu0 0.0
    %2873 = vmatprep.subr.mxu0 0.0
    %2874 = vmatpush1.msra.mxu0 0.0
    %2875 = vmatprep.subr.mxu0 0.0
    %2876 = vmatpush1.msra.mxu0 0.0
    %2877 = vmatprep.subr.mxu0 0.0
    %2878 = vmatpush1.msra.mxu0 %v2842
    %2879 = vmatprep.subr.mxu0 0.0
    %2880 = vmatpush2.msra.mxu0 0.0
    %2881 = vmatprep.subr.mxu0 0.0
    %2882 = vmatpush2.msra.mxu0 0.0
    %2883 = vmatprep.subr.mxu0 0.0
    %2884 = vmatpush2.msra.mxu0 0.0
    %2885 = vmatprep.subr.mxu0 0.0
    %2886 = vmatpush2.msra.mxu0 0.0
    %2887 = vmatprep.subr.mxu0 0.0
    %2888 = vmatpush2.msra.mxu0 0.0
    %2889 = vmatprep.subr.mxu0 0.0
    %2890 = vmatpush2.msra.mxu0 0.0
    %2891 = vmatprep.subr.mxu0 0.0
    %2892 = vmatpush2.msra.mxu0 0.0
    %2893 = vmatprep.subr.mxu0 0.0
    %2894 = vmatpush2.msra.mxu0 0.0
    %2895 = vmatprep.subr.mxu0 0.0
    %2896 = vmatpush2.msra.mxu0 0.0
    %2897 = vmatprep.subr.mxu0 0.0
    %2898 = vmatpush2.msra.mxu0 0.0
    %2899 = vmatprep.subr.mxu0 0.0
    %2900 = vmatpush2.msra.mxu0 0.0
    %2901 = vmatprep.subr.mxu0 0.0
    %2902 = vmatpush2.msra.mxu0 0.0
    %2903 = vmatprep.subr.mxu0 0.0
    %2904 = vmatpush2.msra.mxu0 0.0
    %2905 = vmatprep.subr.mxu0 0.0
    %2906 = vmatpush2.msra.mxu0 0.0
    %2907 = vmatprep.subr.mxu0 0.0
    %2908 = vmatpush2.msra.mxu0 0.0
    %2909 = vmatprep.subr.mxu0 0.0
    %2910 = vmatpush2.msra.mxu0 0.0
    %2911 = vmatprep.mubr.f32.mxu0 0.0
    %2912 = vmatmul.mubr.f32.gmra.mxu0 %v2845
    %v2913 = vpop.f32.mrf.mxu0
    %v2914 = vadd.f32 0.0, %v2913
    %v2915 = vpop.f32.mrf.mxu0
    %2916 = vdwg.mxu0
    %2917 = vrot.lane.b32.xlu0 %v2475, 96
    %v2918 = vpop.permute.xlu0 %2917
    %v2921 = vsel %vm289, %v2836, 0
    %2923 = vmatprep.subr.mxu0 0.0
    %2924 = vmatpush1.msra.mxu0 0.0
    %2925 = vmatprep.subr.mxu0 0.0
    %2926 = vmatpush1.msra.mxu0 0.0
    %2927 = vmatprep.subr.mxu0 0.0
    %2928 = vmatpush1.msra.mxu0 0.0
    %2929 = vmatprep.subr.mxu0 0.0
    %2930 = vmatpush1.msra.mxu0 0.0
    %2931 = vmatprep.subr.mxu0 0.0
    %2932 = vmatpush1.msra.mxu0 0.0
    %2933 = vmatprep.subr.mxu0 0.0
    %2934 = vmatpush1.msra.mxu0 0.0
    %2935 = vmatprep.subr.mxu0 0.0
    %2936 = vmatpush1.msra.mxu0 0.0
    %2937 = vmatprep.subr.mxu0 0.0
    %2938 = vmatpush1.msra.mxu0 0.0
    %2939 = vmatprep.subr.mxu0 0.0
    %2940 = vmatpush1.msra.mxu0 0.0
    %2941 = vmatprep.subr.mxu0 0.0
    %2942 = vmatpush1.msra.mxu0 0.0
    %2943 = vmatprep.subr.mxu0 0.0
    %2944 = vmatpush1.msra.mxu0 0.0
    %2945 = vmatprep.subr.mxu0 0.0
    %2946 = vmatpush1.msra.mxu0 0.0
    %2947 = vmatprep.subr.mxu0 0.0
    %2948 = vmatpush1.msra.mxu0 0.0
    %2949 = vmatprep.subr.mxu0 0.0
    %2950 = vmatpush1.msra.mxu0 0.0
    %2951 = vmatprep.subr.mxu0 0.0
    %2952 = vmatpush1.msra.mxu0 0.0
    %2953 = vmatprep.subr.mxu0 0.0
    %2954 = vmatpush1.msra.mxu0 %v2918
    %2955 = vmatprep.subr.mxu0 0.0
    %2956 = vmatpush2.msra.mxu0 0.0
    %2957 = vmatprep.subr.mxu0 0.0
    %2958 = vmatpush2.msra.mxu0 0.0
    %2959 = vmatprep.subr.mxu0 0.0
    %2960 = vmatpush2.msra.mxu0 0.0
    %2961 = vmatprep.subr.mxu0 0.0
    %2962 = vmatpush2.msra.mxu0 0.0
    %2963 = vmatprep.subr.mxu0 0.0
    %2964 = vmatpush2.msra.mxu0 0.0
    %2965 = vmatprep.subr.mxu0 0.0
    %2966 = vmatpush2.msra.mxu0 0.0
    %2967 = vmatprep.subr.mxu0 0.0
    %2968 = vmatpush2.msra.mxu0 0.0
    %2969 = vmatprep.subr.mxu0 0.0
    %2970 = vmatpush2.msra.mxu0 0.0
    %2971 = vmatprep.subr.mxu0 0.0
    %2972 = vmatpush2.msra.mxu0 0.0
    %2973 = vmatprep.subr.mxu0 0.0
    %2974 = vmatpush2.msra.mxu0 0.0
    %2975 = vmatprep.subr.mxu0 0.0
    %2976 = vmatpush2.msra.mxu0 0.0
    %2977 = vmatprep.subr.mxu0 0.0
    %2978 = vmatpush2.msra.mxu0 0.0
    %2979 = vmatprep.subr.mxu0 0.0
    %2980 = vmatpush2.msra.mxu0 0.0
    %2981 = vmatprep.subr.mxu0 0.0
    %2982 = vmatpush2.msra.mxu0 0.0
    %2983 = vmatprep.subr.mxu0 0.0
    %2984 = vmatpush2.msra.mxu0 0.0
    %2985 = vmatprep.subr.mxu0 0.0
    %2986 = vmatpush2.msra.mxu0 0.0
    %2987 = vmatprep.mubr.f32.mxu0 0.0
    %2988 = vmatmul.mubr.f32.gmra.mxu0 %v2921
    %v2989 = vpop.f32.mrf.mxu0
    %v2990 = vadd.f32 0.0, %v2989
    %v2991 = vpop.f32.mrf.mxu0
    %2992 = vdwg.mxu0
    %2993 = vrot.lane.b32.xlu0 %v2479, 96
    %v2994 = vpop.permute.xlu0 %2993
    %v2997 = vsel %vm289, %v2838, 0
    %2999 = vmatprep.subr.mxu0 0.0
    %3000 = vmatpush1.msra.mxu0 0.0
    %3001 = vmatprep.subr.mxu0 0.0
    %3002 = vmatpush1.msra.mxu0 0.0
    %3003 = vmatprep.subr.mxu0 0.0
    %3004 = vmatpush1.msra.mxu0 0.0
    %3005 = vmatprep.subr.mxu0 0.0
    %3006 = vmatpush1.msra.mxu0 0.0
    %3007 = vmatprep.subr.mxu0 0.0
    %3008 = vmatpush1.msra.mxu0 0.0
    %3009 = vmatprep.subr.mxu0 0.0
    %3010 = vmatpush1.msra.mxu0 0.0
    %3011 = vmatprep.subr.mxu0 0.0
    %3012 = vmatpush1.msra.mxu0 0.0
    %3013 = vmatprep.subr.mxu0 0.0
    %3014 = vmatpush1.msra.mxu0 0.0
    %3015 = vmatprep.subr.mxu0 0.0
    %3016 = vmatpush1.msra.mxu0 0.0
    %3017 = vmatprep.subr.mxu0 0.0
    %3018 = vmatpush1.msra.mxu0 0.0
    %3019 = vmatprep.subr.mxu0 0.0
    %3020 = vmatpush1.msra.mxu0 0.0
    %3021 = vmatprep.subr.mxu0 0.0
    %3022 = vmatpush1.msra.mxu0 0.0
    %3023 = vmatprep.subr.mxu0 0.0
    %3024 = vmatpush1.msra.mxu0 0.0
    %3025 = vmatprep.subr.mxu0 0.0
    %3026 = vmatpush1.msra.mxu0 0.0
    %3027 = vmatprep.subr.mxu0 0.0
    %3028 = vmatpush1.msra.mxu0 0.0
    %3029 = vmatprep.subr.mxu0 0.0
    %3030 = vmatpush1.msra.mxu0 %v2994
    %3031 = vmatprep.subr.mxu0 0.0
    %3032 = vmatpush2.msra.mxu0 0.0
    %3033 = vmatprep.subr.mxu0 0.0
    %3034 = vmatpush2.msra.mxu0 0.0
    %3035 = vmatprep.subr.mxu0 0.0
    %3036 = vmatpush2.msra.mxu0 0.0
    %3037 = vmatprep.subr.mxu0 0.0
    %3038 = vmatpush2.msra.mxu0 0.0
    %3039 = vmatprep.subr.mxu0 0.0
    %3040 = vmatpush2.msra.mxu0 0.0
    %3041 = vmatprep.subr.mxu0 0.0
    %3042 = vmatpush2.msra.mxu0 0.0
    %3043 = vmatprep.subr.mxu0 0.0
    %3044 = vmatpush2.msra.mxu0 0.0
    %3045 = vmatprep.subr.mxu0 0.0
    %3046 = vmatpush2.msra.mxu0 0.0
    %3047 = vmatprep.subr.mxu0 0.0
    %3048 = vmatpush2.msra.mxu0 0.0
    %3049 = vmatprep.subr.mxu0 0.0
    %3050 = vmatpush2.msra.mxu0 0.0
    %3051 = vmatprep.subr.mxu0 0.0
    %3052 = vmatpush2.msra.mxu0 0.0
    %3053 = vmatprep.subr.mxu0 0.0
    %3054 = vmatpush2.msra.mxu0 0.0
    %3055 = vmatprep.subr.mxu0 0.0
    %3056 = vmatpush2.msra.mxu0 0.0
    %3057 = vmatprep.subr.mxu0 0.0
    %3058 = vmatpush2.msra.mxu0 0.0
    %3059 = vmatprep.subr.mxu0 0.0
    %3060 = vmatpush2.msra.mxu0 0.0
    %3061 = vmatprep.subr.mxu0 0.0
    %3062 = vmatpush2.msra.mxu0 0.0
    %3063 = vmatprep.mubr.f32.mxu0 0.0
    %3064 = vmatmul.mubr.f32.gmra.mxu0 %v2997
    %v3065 = vpop.f32.mrf.mxu0
    %v3066 = vadd.f32 0.0, %v3065
    %v3067 = vpop.f32.mrf.mxu0
    %3068 = vdwg.mxu0
    %3069 = vrot.lane.b32.xlu0 %v2483, 96
    %v3070 = vpop.permute.xlu0 %3069
    %v3073 = vsel %vm289, %v2840, 0
    %3075 = vmatprep.subr.mxu0 0.0
    %3076 = vmatpush1.msra.mxu0 0.0
    %3077 = vmatprep.subr.mxu0 0.0
    %3078 = vmatpush1.msra.mxu0 0.0
    %3079 = vmatprep.subr.mxu0 0.0
    %3080 = vmatpush1.msra.mxu0 0.0
    %3081 = vmatprep.subr.mxu0 0.0
    %3082 = vmatpush1.msra.mxu0 0.0
    %3083 = vmatprep.subr.mxu0 0.0
    %3084 = vmatpush1.msra.mxu0 0.0
    %3085 = vmatprep.subr.mxu0 0.0
    %3086 = vmatpush1.msra.mxu0 0.0
    %3087 = vmatprep.subr.mxu0 0.0
    %3088 = vmatpush1.msra.mxu0 0.0
    %3089 = vmatprep.subr.mxu0 0.0
    %3090 = vmatpush1.msra.mxu0 0.0
    %3091 = vmatprep.subr.mxu0 0.0
    %3092 = vmatpush1.msra.mxu0 0.0
    %3093 = vmatprep.subr.mxu0 0.0
    %3094 = vmatpush1.msra.mxu0 0.0
    %3095 = vmatprep.subr.mxu0 0.0
    %3096 = vmatpush1.msra.mxu0 0.0
    %3097 = vmatprep.subr.mxu0 0.0
    %3098 = vmatpush1.msra.mxu0 0.0
    %3099 = vmatprep.subr.mxu0 0.0
    %3100 = vmatpush1.msra.mxu0 0.0
    %3101 = vmatprep.subr.mxu0 0.0
    %3102 = vmatpush1.msra.mxu0 0.0
    %3103 = vmatprep.subr.mxu0 0.0
    %3104 = vmatpush1.msra.mxu0 0.0
    %3105 = vmatprep.subr.mxu0 0.0
    %3106 = vmatpush1.msra.mxu0 %v3070
    %3107 = vmatprep.subr.mxu0 0.0
    %3108 = vmatpush2.msra.mxu0 0.0
    %3109 = vmatprep.subr.mxu0 0.0
    %3110 = vmatpush2.msra.mxu0 0.0
    %3111 = vmatprep.subr.mxu0 0.0
    %3112 = vmatpush2.msra.mxu0 0.0
    %3113 = vmatprep.subr.mxu0 0.0
    %3114 = vmatpush2.msra.mxu0 0.0
    %3115 = vmatprep.subr.mxu0 0.0
    %3116 = vmatpush2.msra.mxu0 0.0
    %3117 = vmatprep.subr.mxu0 0.0
    %3118 = vmatpush2.msra.mxu0 0.0
    %3119 = vmatprep.subr.mxu0 0.0
    %3120 = vmatpush2.msra.mxu0 0.0
    %3121 = vmatprep.subr.mxu0 0.0
    %3122 = vmatpush2.msra.mxu0 0.0
    %3123 = vmatprep.subr.mxu0 0.0
    %3124 = vmatpush2.msra.mxu0 0.0
    %3125 = vmatprep.subr.mxu0 0.0
    %3126 = vmatpush2.msra.mxu0 0.0
    %3127 = vmatprep.subr.mxu0 0.0
    %3128 = vmatpush2.msra.mxu0 0.0
    %3129 = vmatprep.subr.mxu0 0.0
    %3130 = vmatpush2.msra.mxu0 0.0
    %3131 = vmatprep.subr.mxu0 0.0
    %3132 = vmatpush2.msra.mxu0 0.0
    %3133 = vmatprep.subr.mxu0 0.0
    %3134 = vmatpush2.msra.mxu0 0.0
    %3135 = vmatprep.subr.mxu0 0.0
    %3136 = vmatpush2.msra.mxu0 0.0
    %3137 = vmatprep.subr.mxu0 0.0
    %3138 = vmatpush2.msra.mxu0 0.0
    %3139 = vmatprep.mubr.f32.mxu0 0.0
    %3140 = vmatmul.mubr.f32.gmra.mxu0 %v3073
    %v3141 = vpop.f32.mrf.mxu0
    %v3142 = vadd.f32 0.0, %v3141
    %v3143 = vpop.f32.mrf.mxu0
    %3144 = vdwg.mxu0
    %v3146 = vsel %vm289, %v2914, 0
    %3148 = vmatprep.subr.mxu0 0.0
    %3149 = vmatpush1.msra.mxu0 0.0
    %3150 = vmatprep.subr.mxu0 0.0
    %3151 = vmatpush1.msra.mxu0 0.0
    %3152 = vmatprep.subr.mxu0 0.0
    %3153 = vmatpush1.msra.mxu0 0.0
    %3154 = vmatprep.subr.mxu0 0.0
    %3155 = vmatpush1.msra.mxu0 0.0
    %3156 = vmatprep.subr.mxu0 0.0
    %3157 = vmatpush1.msra.mxu0 0.0
    %3158 = vmatprep.subr.mxu0 0.0
    %3159 = vmatpush1.msra.mxu0 0.0
    %3160 = vmatprep.subr.mxu0 0.0
    %3161 = vmatpush1.msra.mxu0 0.0
    %3162 = vmatprep.subr.mxu0 0.0
    %3163 = vmatpush1.msra.mxu0 0.0
    %3164 = vmatprep.subr.mxu0 0.0
    %3165 = vmatpush1.msra.mxu0 0.0
    %3166 = vmatprep.subr.mxu0 0.0
    %3167 = vmatpush1.msra.mxu0 0.0
    %3168 = vmatprep.subr.mxu0 0.0
    %3169 = vmatpush1.msra.mxu0 0.0
    %3170 = vmatprep.subr.mxu0 0.0
    %3171 = vmatpush1.msra.mxu0 0.0
    %3172 = vmatprep.subr.mxu0 0.0
    %3173 = vmatpush1.msra.mxu0 0.0
    %3174 = vmatprep.subr.mxu0 0.0
    %3175 = vmatpush1.msra.mxu0 0.0
    %3176 = vmatprep.subr.mxu0 0.0
    %3177 = vmatpush1.msra.mxu0 0.0
    %3178 = vmatprep.subr.mxu0 0.0
    %3179 = vmatpush1.msra.mxu0 %v128
    %3180 = vmatprep.subr.mxu0 0.0
    %3181 = vmatpush2.msra.mxu0 0.0
    %3182 = vmatprep.subr.mxu0 0.0
    %3183 = vmatpush2.msra.mxu0 0.0
    %3184 = vmatprep.subr.mxu0 0.0
    %3185 = vmatpush2.msra.mxu0 0.0
    %3186 = vmatprep.subr.mxu0 0.0
    %3187 = vmatpush2.msra.mxu0 0.0
    %3188 = vmatprep.subr.mxu0 0.0
    %3189 = vmatpush2.msra.mxu0 0.0
    %3190 = vmatprep.subr.mxu0 0.0
    %3191 = vmatpush2.msra.mxu0 0.0
    %3192 = vmatprep.subr.mxu0 0.0
    %3193 = vmatpush2.msra.mxu0 0.0
    %3194 = vmatprep.subr.mxu0 0.0
    %3195 = vmatpush2.msra.mxu0 0.0
    %3196 = vmatprep.subr.mxu0 0.0
    %3197 = vmatpush2.msra.mxu0 0.0
    %3198 = vmatprep.subr.mxu0 0.0
    %3199 = vmatpush2.msra.mxu0 0.0
    %3200 = vmatprep.subr.mxu0 0.0
    %3201 = vmatpush2.msra.mxu0 0.0
    %3202 = vmatprep.subr.mxu0 0.0
    %3203 = vmatpush2.msra.mxu0 0.0
    %3204 = vmatprep.subr.mxu0 0.0
    %3205 = vmatpush2.msra.mxu0 0.0
    %3206 = vmatprep.subr.mxu0 0.0
    %3207 = vmatpush2.msra.mxu0 0.0
    %3208 = vmatprep.subr.mxu0 0.0
    %3209 = vmatpush2.msra.mxu0 0.0
    %3210 = vmatprep.subr.mxu0 0.0
    %3211 = vmatpush2.msra.mxu0 0.0
    %3212 = vmatprep.mubr.f32.mxu0 0.0
    %3213 = vmatmul.mubr.f32.gmra.mxu0 %v3146
    %v3214 = vpop.f32.mrf.mxu0
    %v3215 = vadd.f32 0.0, %v3214
    %v3216 = vpop.f32.mrf.mxu0
    %3217 = vdwg.mxu0
    %v3219 = vsel %vm289, %v2990, 0
    %3221 = vmatprep.subr.mxu0 0.0
    %3222 = vmatpush1.msra.mxu0 0.0
    %3223 = vmatprep.subr.mxu0 0.0
    %3224 = vmatpush1.msra.mxu0 0.0
    %3225 = vmatprep.subr.mxu0 0.0
    %3226 = vmatpush1.msra.mxu0 0.0
    %3227 = vmatprep.subr.mxu0 0.0
    %3228 = vmatpush1.msra.mxu0 0.0
    %3229 = vmatprep.subr.mxu0 0.0
    %3230 = vmatpush1.msra.mxu0 0.0
    %3231 = vmatprep.subr.mxu0 0.0
    %3232 = vmatpush1.msra.mxu0 0.0
    %3233 = vmatprep.subr.mxu0 0.0
    %3234 = vmatpush1.msra.mxu0 0.0
    %3235 = vmatprep.subr.mxu0 0.0
    %3236 = vmatpush1.msra.mxu0 0.0
    %3237 = vmatprep.subr.mxu0 0.0
    %3238 = vmatpush1.msra.mxu0 0.0
    %3239 = vmatprep.subr.mxu0 0.0
    %3240 = vmatpush1.msra.mxu0 0.0
    %3241 = vmatprep.subr.mxu0 0.0
    %3242 = vmatpush1.msra.mxu0 0.0
    %3243 = vmatprep.subr.mxu0 0.0
    %3244 = vmatpush1.msra.mxu0 0.0
    %3245 = vmatprep.subr.mxu0 0.0
    %3246 = vmatpush1.msra.mxu0 0.0
    %3247 = vmatprep.subr.mxu0 0.0
    %3248 = vmatpush1.msra.mxu0 0.0
    %3249 = vmatprep.subr.mxu0 0.0
    %3250 = vmatpush1.msra.mxu0 0.0
    %3251 = vmatprep.subr.mxu0 0.0
    %3252 = vmatpush1.msra.mxu0 %v129
    %3253 = vmatprep.subr.mxu0 0.0
    %3254 = vmatpush2.msra.mxu0 0.0
    %3255 = vmatprep.subr.mxu0 0.0
    %3256 = vmatpush2.msra.mxu0 0.0
    %3257 = vmatprep.subr.mxu0 0.0
    %3258 = vmatpush2.msra.mxu0 0.0
    %3259 = vmatprep.subr.mxu0 0.0
    %3260 = vmatpush2.msra.mxu0 0.0
    %3261 = vmatprep.subr.mxu0 0.0
    %3262 = vmatpush2.msra.mxu0 0.0
    %3263 = vmatprep.subr.mxu0 0.0
    %3264 = vmatpush2.msra.mxu0 0.0
    %3265 = vmatprep.subr.mxu0 0.0
    %3266 = vmatpush2.msra.mxu0 0.0
    %3267 = vmatprep.subr.mxu0 0.0
    %3268 = vmatpush2.msra.mxu0 0.0
    %3269 = vmatprep.subr.mxu0 0.0
    %3270 = vmatpush2.msra.mxu0 0.0
    %3271 = vmatprep.subr.mxu0 0.0
    %3272 = vmatpush2.msra.mxu0 0.0
    %3273 = vmatprep.subr.mxu0 0.0
    %3274 = vmatpush2.msra.mxu0 0.0
    %3275 = vmatprep.subr.mxu0 0.0
    %3276 = vmatpush2.msra.mxu0 0.0
    %3277 = vmatprep.subr.mxu0 0.0
    %3278 = vmatpush2.msra.mxu0 0.0
    %3279 = vmatprep.subr.mxu0 0.0
    %3280 = vmatpush2.msra.mxu0 0.0
    %3281 = vmatprep.subr.mxu0 0.0
    %3282 = vmatpush2.msra.mxu0 0.0
    %3283 = vmatprep.subr.mxu0 0.0
    %3284 = vmatpush2.msra.mxu0 0.0
    %3285 = vmatprep.mubr.f32.mxu0 0.0
    %3286 = vmatmul.mubr.f32.gmra.mxu0 %v3219
    %v3287 = vpop.f32.mrf.mxu0
    %v3288 = vadd.f32 0.0, %v3287
    %v3289 = vpop.f32.mrf.mxu0
    %3290 = vdwg.mxu0
    %v3292 = vsel %vm289, %v3066, 0
    %3294 = vmatprep.subr.mxu0 0.0
    %3295 = vmatpush1.msra.mxu0 0.0
    %3296 = vmatprep.subr.mxu0 0.0
    %3297 = vmatpush1.msra.mxu0 0.0
    %3298 = vmatprep.subr.mxu0 0.0
    %3299 = vmatpush1.msra.mxu0 0.0
    %3300 = vmatprep.subr.mxu0 0.0
    %3301 = vmatpush1.msra.mxu0 0.0
    %3302 = vmatprep.subr.mxu0 0.0
    %3303 = vmatpush1.msra.mxu0 0.0
    %3304 = vmatprep.subr.mxu0 0.0
    %3305 = vmatpush1.msra.mxu0 0.0
    %3306 = vmatprep.subr.mxu0 0.0
    %3307 = vmatpush1.msra.mxu0 0.0
    %3308 = vmatprep.subr.mxu0 0.0
    %3309 = vmatpush1.msra.mxu0 0.0
    %3310 = vmatprep.subr.mxu0 0.0
    %3311 = vmatpush1.msra.mxu0 0.0
    %3312 = vmatprep.subr.mxu0 0.0
    %3313 = vmatpush1.msra.mxu0 0.0
    %3314 = vmatprep.subr.mxu0 0.0
    %3315 = vmatpush1.msra.mxu0 0.0
    %3316 = vmatprep.subr.mxu0 0.0
    %3317 = vmatpush1.msra.mxu0 0.0
    %3318 = vmatprep.subr.mxu0 0.0
    %3319 = vmatpush1.msra.mxu0 0.0
    %3320 = vmatprep.subr.mxu0 0.0
    %3321 = vmatpush1.msra.mxu0 0.0
    %3322 = vmatprep.subr.mxu0 0.0
    %3323 = vmatpush1.msra.mxu0 0.0
    %3324 = vmatprep.subr.mxu0 0.0
    %3325 = vmatpush1.msra.mxu0 %v130
    %3326 = vmatprep.subr.mxu0 0.0
    %3327 = vmatpush2.msra.mxu0 0.0
    %3328 = vmatprep.subr.mxu0 0.0
    %3329 = vmatpush2.msra.mxu0 0.0
    %3330 = vmatprep.subr.mxu0 0.0
    %3331 = vmatpush2.msra.mxu0 0.0
    %3332 = vmatprep.subr.mxu0 0.0
    %3333 = vmatpush2.msra.mxu0 0.0
    %3334 = vmatprep.subr.mxu0 0.0
    %3335 = vmatpush2.msra.mxu0 0.0
    %3336 = vmatprep.subr.mxu0 0.0
    %3337 = vmatpush2.msra.mxu0 0.0
    %3338 = vmatprep.subr.mxu0 0.0
    %3339 = vmatpush2.msra.mxu0 0.0
    %3340 = vmatprep.subr.mxu0 0.0
    %3341 = vmatpush2.msra.mxu0 0.0
    %3342 = vmatprep.subr.mxu0 0.0
    %3343 = vmatpush2.msra.mxu0 0.0
    %3344 = vmatprep.subr.mxu0 0.0
    %3345 = vmatpush2.msra.mxu0 0.0
    %3346 = vmatprep.subr.mxu0 0.0
    %3347 = vmatpush2.msra.mxu0 0.0
    %3348 = vmatprep.subr.mxu0 0.0
    %3349 = vmatpush2.msra.mxu0 0.0
    %3350 = vmatprep.subr.mxu0 0.0
    %3351 = vmatpush2.msra.mxu0 0.0
    %3352 = vmatprep.subr.mxu0 0.0
    %3353 = vmatpush2.msra.mxu0 0.0
    %3354 = vmatprep.subr.mxu0 0.0
    %3355 = vmatpush2.msra.mxu0 0.0
    %3356 = vmatprep.subr.mxu0 0.0
    %3357 = vmatpush2.msra.mxu0 0.0
    %3358 = vmatprep.mubr.f32.mxu0 0.0
    %3359 = vmatmul.mubr.f32.gmra.mxu0 %v3292
    %v3360 = vpop.f32.mrf.mxu0
    %v3361 = vadd.f32 0.0, %v3360
    %v3362 = vpop.f32.mrf.mxu0
    %3363 = vdwg.mxu0
    %v3365 = vsel %vm289, %v3142, 0
    %3367 = vmatprep.subr.mxu0 0.0
    %3368 = vmatpush1.msra.mxu0 0.0
    %3369 = vmatprep.subr.mxu0 0.0
    %3370 = vmatpush1.msra.mxu0 0.0
    %3371 = vmatprep.subr.mxu0 0.0
    %3372 = vmatpush1.msra.mxu0 0.0
    %3373 = vmatprep.subr.mxu0 0.0
    %3374 = vmatpush1.msra.mxu0 0.0
    %3375 = vmatprep.subr.mxu0 0.0
    %3376 = vmatpush1.msra.mxu0 0.0
    %3377 = vmatprep.subr.mxu0 0.0
    %3378 = vmatpush1.msra.mxu0 0.0
    %3379 = vmatprep.subr.mxu0 0.0
    %3380 = vmatpush1.msra.mxu0 0.0
    %3381 = vmatprep.subr.mxu0 0.0
    %3382 = vmatpush1.msra.mxu0 0.0
    %3383 = vmatprep.subr.mxu0 0.0
    %3384 = vmatpush1.msra.mxu0 0.0
    %3385 = vmatprep.subr.mxu0 0.0
    %3386 = vmatpush1.msra.mxu0 0.0
    %3387 = vmatprep.subr.mxu0 0.0
    %3388 = vmatpush1.msra.mxu0 0.0
    %3389 = vmatprep.subr.mxu0 0.0
    %3390 = vmatpush1.msra.mxu0 0.0
    %3391 = vmatprep.subr.mxu0 0.0
    %3392 = vmatpush1.msra.mxu0 0.0
    %3393 = vmatprep.subr.mxu0 0.0
    %3394 = vmatpush1.msra.mxu0 0.0
    %3395 = vmatprep.subr.mxu0 0.0
    %3396 = vmatpush1.msra.mxu0 0.0
    %3397 = vmatprep.subr.mxu0 0.0
    %3398 = vmatpush1.msra.mxu0 %v131
    %3399 = vmatprep.subr.mxu0 0.0
    %3400 = vmatpush2.msra.mxu0 0.0
    %3401 = vmatprep.subr.mxu0 0.0
    %3402 = vmatpush2.msra.mxu0 0.0
    %3403 = vmatprep.subr.mxu0 0.0
    %3404 = vmatpush2.msra.mxu0 0.0
    %3405 = vmatprep.subr.mxu0 0.0
    %3406 = vmatpush2.msra.mxu0 0.0
    %3407 = vmatprep.subr.mxu0 0.0
    %3408 = vmatpush2.msra.mxu0 0.0
    %3409 = vmatprep.subr.mxu0 0.0
    %3410 = vmatpush2.msra.mxu0 0.0
    %3411 = vmatprep.subr.mxu0 0.0
    %3412 = vmatpush2.msra.mxu0 0.0
    %3413 = vmatprep.subr.mxu0 0.0
    %3414 = vmatpush2.msra.mxu0 0.0
    %3415 = vmatprep.subr.mxu0 0.0
    %3416 = vmatpush2.msra.mxu0 0.0
    %3417 = vmatprep.subr.mxu0 0.0
    %3418 = vmatpush2.msra.mxu0 0.0
    %3419 = vmatprep.subr.mxu0 0.0
    %3420 = vmatpush2.msra.mxu0 0.0
    %3421 = vmatprep.subr.mxu0 0.0
    %3422 = vmatpush2.msra.mxu0 0.0
    %3423 = vmatprep.subr.mxu0 0.0
    %3424 = vmatpush2.msra.mxu0 0.0
    %3425 = vmatprep.subr.mxu0 0.0
    %3426 = vmatpush2.msra.mxu0 0.0
    %3427 = vmatprep.subr.mxu0 0.0
    %3428 = vmatpush2.msra.mxu0 0.0
    %3429 = vmatprep.subr.mxu0 0.0
    %3430 = vmatpush2.msra.mxu0 0.0
    %3431 = vmatprep.mubr.f32.mxu0 0.0
    %3432 = vmatmul.mubr.f32.gmra.mxu0 %v3365
    %v3433 = vpop.f32.mrf.mxu0
    %v3434 = vadd.f32 0.0, %v3433
    %v3435 = vpop.f32.mrf.mxu0
    %3436 = vdwg.mxu0
    %v3437 = vsel %vm133, %v3215, 0.0
    %v3438 = vsel %vm133, %v3288, 0.0
    %v3439 = vadd.f32 %v3437, %v3438
    %v3440 = vsel %vm133, %v3361, 0.0
    %v3441 = vadd.f32 %v3439, %v3440
    %v3442 = vsel %vm133, %v3434, 0.0
    %v3443 = vadd.f32 %v3441, %v3442
    %v3444 = vsel %vm289, %v2354, 0
    %v3446 = vsel %vm289, %v2455, 0
    %3448 = vmatprep.subr.mxu0 0.0
    %3449 = vmatpush1.xpose.msra.mxu0 0.0
    %3450 = vmatprep.subr.mxu0 0.0
    %3451 = vmatpush1.xpose.msra.mxu0 0.0
    %3452 = vmatprep.subr.mxu0 0.0
    %3453 = vmatpush1.xpose.msra.mxu0 0.0
    %3454 = vmatprep.subr.mxu0 0.0
    %3455 = vmatpush1.xpose.msra.mxu0 0.0
    %3456 = vmatprep.subr.mxu0 0.0
    %3457 = vmatpush1.xpose.msra.mxu0 0.0
    %3458 = vmatprep.subr.mxu0 0.0
    %3459 = vmatpush1.xpose.msra.mxu0 0.0
    %3460 = vmatprep.subr.mxu0 0.0
    %3461 = vmatpush1.xpose.msra.mxu0 0.0
    %3462 = vmatprep.subr.mxu0 0.0
    %3463 = vmatpush1.xpose.msra.mxu0 0.0
    %3464 = vmatprep.subr.mxu0 0.0
    %3465 = vmatpush1.xpose.msra.mxu0 0.0
    %3466 = vmatprep.subr.mxu0 0.0
    %3467 = vmatpush1.xpose.msra.mxu0 0.0
    %3468 = vmatprep.subr.mxu0 0.0
    %3469 = vmatpush1.xpose.msra.mxu0 0.0
    %3470 = vmatprep.subr.mxu0 0.0
    %3471 = vmatpush1.xpose.msra.mxu0 0.0
    %3472 = vmatprep.subr.mxu0 0.0
    %3473 = vmatpush1.xpose.msra.mxu0 0.0
    %3474 = vmatprep.subr.mxu0 0.0
    %3475 = vmatpush1.xpose.msra.mxu0 0.0
    %3476 = vmatprep.subr.mxu0 0.0
    %3477 = vmatpush1.xpose.msra.mxu0 0.0
    %3478 = vmatprep.subr.mxu0 0.0
    %3479 = vmatpush1.xpose.msra.mxu0 %v3446
    %3480 = vmatprep.subr.mxu0 0.0
    %3481 = vmatpush2.xpose.msra.mxu0 0.0
    %3482 = vmatprep.subr.mxu0 0.0
    %3483 = vmatpush2.xpose.msra.mxu0 0.0
    %3484 = vmatprep.subr.mxu0 0.0
    %3485 = vmatpush2.xpose.msra.mxu0 0.0
    %3486 = vmatprep.subr.mxu0 0.0
    %3487 = vmatpush2.xpose.msra.mxu0 0.0
    %3488 = vmatprep.subr.mxu0 0.0
    %3489 = vmatpush2.xpose.msra.mxu0 0.0
    %3490 = vmatprep.subr.mxu0 0.0
    %3491 = vmatpush2.xpose.msra.mxu0 0.0
    %3492 = vmatprep.subr.mxu0 0.0
    %3493 = vmatpush2.xpose.msra.mxu0 0.0
    %3494 = vmatprep.subr.mxu0 0.0
    %3495 = vmatpush2.xpose.msra.mxu0 0.0
    %3496 = vmatprep.subr.mxu0 0.0
    %3497 = vmatpush2.xpose.msra.mxu0 0.0
    %3498 = vmatprep.subr.mxu0 0.0
    %3499 = vmatpush2.xpose.msra.mxu0 0.0
    %3500 = vmatprep.subr.mxu0 0.0
    %3501 = vmatpush2.xpose.msra.mxu0 0.0
    %3502 = vmatprep.subr.mxu0 0.0
    %3503 = vmatpush2.xpose.msra.mxu0 0.0
    %3504 = vmatprep.subr.mxu0 0.0
    %3505 = vmatpush2.xpose.msra.mxu0 0.0
    %3506 = vmatprep.subr.mxu0 0.0
    %3507 = vmatpush2.xpose.msra.mxu0 0.0
    %3508 = vmatprep.subr.mxu0 0.0
    %3509 = vmatpush2.xpose.msra.mxu0 0.0
    %3510 = vmatprep.subr.mxu0 0.0
    %3511 = vmatpush2.xpose.msra.mxu0 0.0
    %3512 = vmatprep.mubr.f32.mxu0 0.0
    %3513 = vmatmul.mubr.f32.gmra.mxu0 %v3444
    %v3514 = vpop.f32.mrf.mxu0
    %v3515 = vadd.f32 0.0, %v3514
    %v3516 = vpop.f32.mrf.mxu0
    %3517 = vdwg.mxu0
    %v3518 = vsel %vm289, %v2463, 0
    %v3520 = vsel %vm289, %v2477, 0
    %3522 = vmatprep.subr.mxu0 0.0
    %3523 = vmatpush1.xpose.msra.mxu0 0.0
    %3524 = vmatprep.subr.mxu0 0.0
    %3525 = vmatpush1.xpose.msra.mxu0 0.0
    %3526 = vmatprep.subr.mxu0 0.0
    %3527 = vmatpush1.xpose.msra.mxu0 0.0
    %3528 = vmatprep.subr.mxu0 0.0
    %3529 = vmatpush1.xpose.msra.mxu0 0.0
    %3530 = vmatprep.subr.mxu0 0.0
    %3531 = vmatpush1.xpose.msra.mxu0 0.0
    %3532 = vmatprep.subr.mxu0 0.0
    %3533 = vmatpush1.xpose.msra.mxu0 0.0
    %3534 = vmatprep.subr.mxu0 0.0
    %3535 = vmatpush1.xpose.msra.mxu0 0.0
    %3536 = vmatprep.subr.mxu0 0.0
    %3537 = vmatpush1.xpose.msra.mxu0 0.0
    %3538 = vmatprep.subr.mxu0 0.0
    %3539 = vmatpush1.xpose.msra.mxu0 0.0
    %3540 = vmatprep.subr.mxu0 0.0
    %3541 = vmatpush1.xpose.msra.mxu0 0.0
    %3542 = vmatprep.subr.mxu0 0.0
    %3543 = vmatpush1.xpose.msra.mxu0 0.0
    %3544 = vmatprep.subr.mxu0 0.0
    %3545 = vmatpush1.xpose.msra.mxu0 0.0
    %3546 = vmatprep.subr.mxu0 0.0
    %3547 = vmatpush1.xpose.msra.mxu0 0.0
    %3548 = vmatprep.subr.mxu0 0.0
    %3549 = vmatpush1.xpose.msra.mxu0 0.0
    %3550 = vmatprep.subr.mxu0 0.0
    %3551 = vmatpush1.xpose.msra.mxu0 0.0
    %3552 = vmatprep.subr.mxu0 0.0
    %3553 = vmatpush1.xpose.msra.mxu0 %v3520
    %3554 = vmatprep.subr.mxu0 0.0
    %3555 = vmatpush2.xpose.msra.mxu0 0.0
    %3556 = vmatprep.subr.mxu0 0.0
    %3557 = vmatpush2.xpose.msra.mxu0 0.0
    %3558 = vmatprep.subr.mxu0 0.0
    %3559 = vmatpush2.xpose.msra.mxu0 0.0
    %3560 = vmatprep.subr.mxu0 0.0
    %3561 = vmatpush2.xpose.msra.mxu0 0.0
    %3562 = vmatprep.subr.mxu0 0.0
    %3563 = vmatpush2.xpose.msra.mxu0 0.0
    %3564 = vmatprep.subr.mxu0 0.0
    %3565 = vmatpush2.xpose.msra.mxu0 0.0
    %3566 = vmatprep.subr.mxu0 0.0
    %3567 = vmatpush2.xpose.msra.mxu0 0.0
    %3568 = vmatprep.subr.mxu0 0.0
    %3569 = vmatpush2.xpose.msra.mxu0 0.0
    %3570 = vmatprep.subr.mxu0 0.0
    %3571 = vmatpush2.xpose.msra.mxu0 0.0
    %3572 = vmatprep.subr.mxu0 0.0
    %3573 = vmatpush2.xpose.msra.mxu0 0.0
    %3574 = vmatprep.subr.mxu0 0.0
    %3575 = vmatpush2.xpose.msra.mxu0 0.0
    %3576 = vmatprep.subr.mxu0 0.0
    %3577 = vmatpush2.xpose.msra.mxu0 0.0
    %3578 = vmatprep.subr.mxu0 0.0
    %3579 = vmatpush2.xpose.msra.mxu0 0.0
    %3580 = vmatprep.subr.mxu0 0.0
    %3581 = vmatpush2.xpose.msra.mxu0 0.0
    %3582 = vmatprep.subr.mxu0 0.0
    %3583 = vmatpush2.xpose.msra.mxu0 0.0
    %3584 = vmatprep.subr.mxu0 0.0
    %3585 = vmatpush2.xpose.msra.mxu0 0.0
    %3586 = vmatprep.mubr.f32.mxu0 0.0
    %3587 = vmatmul.mubr.f32.gmra.mxu0 %v3518
    %v3588 = vpop.f32.mrf.mxu0
    %v3589 = vadd.f32 0.0, %v3588
    %v3590 = vpop.f32.mrf.mxu0
    %3591 = vdwg.mxu0
    %v3592 = vsel %vm289, %v2467, 0
    %v3594 = vsel %vm289, %v2481, 0
    %3596 = vmatprep.subr.mxu0 0.0
    %3597 = vmatpush1.xpose.msra.mxu0 0.0
    %3598 = vmatprep.subr.mxu0 0.0
    %3599 = vmatpush1.xpose.msra.mxu0 0.0
    %3600 = vmatprep.subr.mxu0 0.0
    %3601 = vmatpush1.xpose.msra.mxu0 0.0
    %3602 = vmatprep.subr.mxu0 0.0
    %3603 = vmatpush1.xpose.msra.mxu0 0.0
    %3604 = vmatprep.subr.mxu0 0.0
    %3605 = vmatpush1.xpose.msra.mxu0 0.0
    %3606 = vmatprep.subr.mxu0 0.0
    %3607 = vmatpush1.xpose.msra.mxu0 0.0
    %3608 = vmatprep.subr.mxu0 0.0
    %3609 = vmatpush1.xpose.msra.mxu0 0.0
    %3610 = vmatprep.subr.mxu0 0.0
    %3611 = vmatpush1.xpose.msra.mxu0 0.0
    %3612 = vmatprep.subr.mxu0 0.0
    %3613 = vmatpush1.xpose.msra.mxu0 0.0
    %3614 = vmatprep.subr.mxu0 0.0
    %3615 = vmatpush1.xpose.msra.mxu0 0.0
    %3616 = vmatprep.subr.mxu0 0.0
    %3617 = vmatpush1.xpose.msra.mxu0 0.0
    %3618 = vmatprep.subr.mxu0 0.0
    %3619 = vmatpush1.xpose.msra.mxu0 0.0
    %3620 = vmatprep.subr.mxu0 0.0
    %3621 = vmatpush1.xpose.msra.mxu0 0.0
    %3622 = vmatprep.subr.mxu0 0.0
    %3623 = vmatpush1.xpose.msra.mxu0 0.0
    %3624 = vmatprep.subr.mxu0 0.0
    %3625 = vmatpush1.xpose.msra.mxu0 0.0
    %3626 = vmatprep.subr.mxu0 0.0
    %3627 = vmatpush1.xpose.msra.mxu0 %v3594
    %3628 = vmatprep.subr.mxu0 0.0
    %3629 = vmatpush2.xpose.msra.mxu0 0.0
    %3630 = vmatprep.subr.mxu0 0.0
    %3631 = vmatpush2.xpose.msra.mxu0 0.0
    %3632 = vmatprep.subr.mxu0 0.0
    %3633 = vmatpush2.xpose.msra.mxu0 0.0
    %3634 = vmatprep.subr.mxu0 0.0
    %3635 = vmatpush2.xpose.msra.mxu0 0.0
    %3636 = vmatprep.subr.mxu0 0.0
    %3637 = vmatpush2.xpose.msra.mxu0 0.0
    %3638 = vmatprep.subr.mxu0 0.0
    %3639 = vmatpush2.xpose.msra.mxu0 0.0
    %3640 = vmatprep.subr.mxu0 0.0
    %3641 = vmatpush2.xpose.msra.mxu0 0.0
    %3642 = vmatprep.subr.mxu0 0.0
    %3643 = vmatpush2.xpose.msra.mxu0 0.0
    %3644 = vmatprep.subr.mxu0 0.0
    %3645 = vmatpush2.xpose.msra.mxu0 0.0
    %3646 = vmatprep.subr.mxu0 0.0
    %3647 = vmatpush2.xpose.msra.mxu0 0.0
    %3648 = vmatprep.subr.mxu0 0.0
    %3649 = vmatpush2.xpose.msra.mxu0 0.0
    %3650 = vmatprep.subr.mxu0 0.0
    %3651 = vmatpush2.xpose.msra.mxu0 0.0
    %3652 = vmatprep.subr.mxu0 0.0
    %3653 = vmatpush2.xpose.msra.mxu0 0.0
    %3654 = vmatprep.subr.mxu0 0.0
    %3655 = vmatpush2.xpose.msra.mxu0 0.0
    %3656 = vmatprep.subr.mxu0 0.0
    %3657 = vmatpush2.xpose.msra.mxu0 0.0
    %3658 = vmatprep.subr.mxu0 0.0
    %3659 = vmatpush2.xpose.msra.mxu0 0.0
    %3660 = vmatprep.mubr.f32.mxu0 0.0
    %3661 = vmatmul.mubr.f32.gmra.mxu0 %v3592
    %v3662 = vpop.f32.mrf.mxu0
    %v3663 = vadd.f32 0.0, %v3662
    %v3664 = vpop.f32.mrf.mxu0
    %3665 = vdwg.mxu0
    %v3666 = vsel %vm289, %v2471, 0
    %v3668 = vsel %vm289, %v2485, 0
    %3670 = vmatprep.subr.mxu0 0.0
    %3671 = vmatpush1.xpose.msra.mxu0 0.0
    %3672 = vmatprep.subr.mxu0 0.0
    %3673 = vmatpush1.xpose.msra.mxu0 0.0
    %3674 = vmatprep.subr.mxu0 0.0
    %3675 = vmatpush1.xpose.msra.mxu0 0.0
    %3676 = vmatprep.subr.mxu0 0.0
    %3677 = vmatpush1.xpose.msra.mxu0 0.0
    %3678 = vmatprep.subr.mxu0 0.0
    %3679 = vmatpush1.xpose.msra.mxu0 0.0
    %3680 = vmatprep.subr.mxu0 0.0
    %3681 = vmatpush1.xpose.msra.mxu0 0.0
    %3682 = vmatprep.subr.mxu0 0.0
    %3683 = vmatpush1.xpose.msra.mxu0 0.0
    %3684 = vmatprep.subr.mxu0 0.0
    %3685 = vmatpush1.xpose.msra.mxu0 0.0
    %3686 = vmatprep.subr.mxu0 0.0
    %3687 = vmatpush1.xpose.msra.mxu0 0.0
    %3688 = vmatprep.subr.mxu0 0.0
    %3689 = vmatpush1.xpose.msra.mxu0 0.0
    %3690 = vmatprep.subr.mxu0 0.0
    %3691 = vmatpush1.xpose.msra.mxu0 0.0
    %3692 = vmatprep.subr.mxu0 0.0
    %3693 = vmatpush1.xpose.msra.mxu0 0.0
    %3694 = vmatprep.subr.mxu0 0.0
    %3695 = vmatpush1.xpose.msra.mxu0 0.0
    %3696 = vmatprep.subr.mxu0 0.0
    %3697 = vmatpush1.xpose.msra.mxu0 0.0
    %3698 = vmatprep.subr.mxu0 0.0
    %3699 = vmatpush1.xpose.msra.mxu0 0.0
    %3700 = vmatprep.subr.mxu0 0.0
    %3701 = vmatpush1.xpose.msra.mxu0 %v3668
    %3702 = vmatprep.subr.mxu0 0.0
    %3703 = vmatpush2.xpose.msra.mxu0 0.0
    %3704 = vmatprep.subr.mxu0 0.0
    %3705 = vmatpush2.xpose.msra.mxu0 0.0
    %3706 = vmatprep.subr.mxu0 0.0
    %3707 = vmatpush2.xpose.msra.mxu0 0.0
    %3708 = vmatprep.subr.mxu0 0.0
    %3709 = vmatpush2.xpose.msra.mxu0 0.0
    %3710 = vmatprep.subr.mxu0 0.0
    %3711 = vmatpush2.xpose.msra.mxu0 0.0
    %3712 = vmatprep.subr.mxu0 0.0
    %3713 = vmatpush2.xpose.msra.mxu0 0.0
    %3714 = vmatprep.subr.mxu0 0.0
    %3715 = vmatpush2.xpose.msra.mxu0 0.0
    %3716 = vmatprep.subr.mxu0 0.0
    %3717 = vmatpush2.xpose.msra.mxu0 0.0
    %3718 = vmatprep.subr.mxu0 0.0
    %3719 = vmatpush2.xpose.msra.mxu0 0.0
    %3720 = vmatprep.subr.mxu0 0.0
    %3721 = vmatpush2.xpose.msra.mxu0 0.0
    %3722 = vmatprep.subr.mxu0 0.0
    %3723 = vmatpush2.xpose.msra.mxu0 0.0
    %3724 = vmatprep.subr.mxu0 0.0
    %3725 = vmatpush2.xpose.msra.mxu0 0.0
    %3726 = vmatprep.subr.mxu0 0.0
    %3727 = vmatpush2.xpose.msra.mxu0 0.0
    %3728 = vmatprep.subr.mxu0 0.0
    %3729 = vmatpush2.xpose.msra.mxu0 0.0
    %3730 = vmatprep.subr.mxu0 0.0
    %3731 = vmatpush2.xpose.msra.mxu0 0.0
    %3732 = vmatprep.subr.mxu0 0.0
    %3733 = vmatpush2.xpose.msra.mxu0 0.0
    %3734 = vmatprep.mubr.f32.mxu0 0.0
    %3735 = vmatmul.mubr.f32.gmra.mxu0 %v3666
    %v3736 = vpop.f32.mrf.mxu0
    %v3737 = vadd.f32 0.0, %v3736
    %v3738 = vpop.f32.mrf.mxu0
    %3739 = vdwg.mxu0
    %v3740 = vmul.f32 %v3515, 0.35355338
    %v3741 = vmul.f32 %v3589, 0.35355338
    %v3742 = vmul.f32 %v3663, 0.35355338
    %v3743 = vmul.f32 %v3737, 0.35355338
    %vm3744 = vcmp.eq.f32.partialorder %v114, 0.0
    %v3745 = vsel %vm3744, 1, 0
    %v3746 = vlaneseq
    %v3747 = vshrl.u32 %v3746, 7
    %v3748 = vsub.s32 0, %v3747
    %v3749 = vrot.slane %v3745, %v3748
    %vm3750 = vcmp.eq.s32.totalorder %v3749, 1
    %v3751 = vsel %vm3750, -1e+09, %v3740
    %v3752 = vsel %vm3750, -1e+09, %v3741
    %v3753 = vsel %vm3750, -1e+09, %v3742
    %v3754 = vsel %vm3750, -1e+09, %v3743
    %v3755 = vsel %vm289, %v3751, -inf
    %3756 = vmax.xlane.f32.xlu0 %v3755
    %v3757 = vpop.xlane.xlu0 %3756
    %v3758 = vsel %vm289, %v3752, -inf
    %3759 = vmax.xlane.f32.xlu0 %v3758
    %v3760 = vpop.xlane.xlu0 %3759
    %v3761 = vsel %vm289, %v3753, -inf
    %3762 = vmax.xlane.f32.xlu0 %v3761
    %v3763 = vpop.xlane.xlu0 %3762
    %v3764 = vsel %vm289, %v3754, -inf
    %3765 = vmax.xlane.f32.xlu0 %v3764
    %v3766 = vpop.xlane.xlu0 %3765
    %v3767 = vsub.f32 %v3751, %v3757
    %v3768 = vsub.f32 %v3752, %v3760
    %v3769 = vsub.f32 %v3753, %v3763
    %v3770 = vsub.f32 %v3754, %v3766
    %v3771 = vmul.f32 %v3767, 1.442695
    %v3772 = vpow.pop %v3771
    %v3773 = vmul.f32 %v3768, 1.442695
    %v3774 = vpow.pop %v3773
    %v3775 = vmul.f32 %v3769, 1.442695
    %v3776 = vpow.pop %v3775
    %v3777 = vmul.f32 %v3770, 1.442695
    %v3778 = vpow.pop %v3777
    %v3779 = vsel %vm289, %v3772, 0.0
    %3780 = vadd.xlane.f32.xlu0 %v3779
    %v3781 = vpop.xlane.xlu0 %3780
    %v3782 = vsel %vm289, %v3774, 0.0
    %3783 = vadd.xlane.f32.xlu0 %v3782
    %v3784 = vpop.xlane.xlu0 %3783
    %v3785 = vsel %vm289, %v3776, 0.0
    %3786 = vadd.xlane.f32.xlu0 %v3785
    %v3787 = vpop.xlane.xlu0 %3786
    %v3788 = vsel %vm289, %v3778, 0.0
    %3789 = vadd.xlane.f32.xlu0 %v3788
    %v3790 = vpop.xlane.xlu0 %3789
    %v3791 = vrcp.pop %v3781
    %v3792 = vmul.f32 %v3772, %v3791
    %v3793 = vrcp.pop %v3784
    %v3794 = vmul.f32 %v3774, %v3793
    %v3795 = vrcp.pop %v3787
    %v3796 = vmul.f32 %v3776, %v3795
    %v3797 = vrcp.pop %v3790
    %v3798 = vmul.f32 %v3778, %v3797
    %3799 = vrot.lane.b32.xlu0 %v2455, 96
    %v3800 = vpop.permute.xlu0 %3799
    %v3803 = vsel %vm289, %v3792, 0
    %3805 = vmatprep.subr.mxu0 0.0
    %3806 = vmatpush1.msra.mxu0 0.0
    %3807 = vmatprep.subr.mxu0 0.0
    %3808 = vmatpush1.msra.mxu0 0.0
    %3809 = vmatprep.subr.mxu0 0.0
    %3810 = vmatpush1.msra.mxu0 0.0
    %3811 = vmatprep.subr.mxu0 0.0
    %3812 = vmatpush1.msra.mxu0 0.0
    %3813 = vmatprep.subr.mxu0 0.0
    %3814 = vmatpush1.msra.mxu0 0.0
    %3815 = vmatprep.subr.mxu0 0.0
    %3816 = vmatpush1.msra.mxu0 0.0
    %3817 = vmatprep.subr.mxu0 0.0
    %3818 = vmatpush1.msra.mxu0 0.0
    %3819 = vmatprep.subr.mxu0 0.0
    %3820 = vmatpush1.msra.mxu0 0.0
    %3821 = vmatprep.subr.mxu0 0.0
    %3822 = vmatpush1.msra.mxu0 0.0
    %3823 = vmatprep.subr.mxu0 0.0
    %3824 = vmatpush1.msra.mxu0 0.0
    %3825 = vmatprep.subr.mxu0 0.0
    %3826 = vmatpush1.msra.mxu0 0.0
    %3827 = vmatprep.subr.mxu0 0.0
    %3828 = vmatpush1.msra.mxu0 0.0
    %3829 = vmatprep.subr.mxu0 0.0
    %3830 = vmatpush1.msra.mxu0 0.0
    %3831 = vmatprep.subr.mxu0 0.0
    %3832 = vmatpush1.msra.mxu0 0.0
    %3833 = vmatprep.subr.mxu0 0.0
    %3834 = vmatpush1.msra.mxu0 0.0
    %3835 = vmatprep.subr.mxu0 0.0
    %3836 = vmatpush1.msra.mxu0 %v3800
    %3837 = vmatprep.subr.mxu0 0.0
    %3838 = vmatpush2.msra.mxu0 0.0
    %3839 = vmatprep.subr.mxu0 0.0
    %3840 = vmatpush2.msra.mxu0 0.0
    %3841 = vmatprep.subr.mxu0 0.0
    %3842 = vmatpush2.msra.mxu0 0.0
    %3843 = vmatprep.subr.mxu0 0.0
    %3844 = vmatpush2.msra.mxu0 0.0
    %3845 = vmatprep.subr.mxu0 0.0
    %3846 = vmatpush2.msra.mxu0 0.0
    %3847 = vmatprep.subr.mxu0 0.0
    %3848 = vmatpush2.msra.mxu0 0.0
    %3849 = vmatprep.subr.mxu0 0.0
    %3850 = vmatpush2.msra.mxu0 0.0
    %3851 = vmatprep.subr.mxu0 0.0
    %3852 = vmatpush2.msra.mxu0 0.0
    %3853 = vmatprep.subr.mxu0 0.0
    %3854 = vmatpush2.msra.mxu0 0.0
    %3855 = vmatprep.subr.mxu0 0.0
    %3856 = vmatpush2.msra.mxu0 0.0
    %3857 = vmatprep.subr.mxu0 0.0
    %3858 = vmatpush2.msra.mxu0 0.0
    %3859 = vmatprep.subr.mxu0 0.0
    %3860 = vmatpush2.msra.mxu0 0.0
    %3861 = vmatprep.subr.mxu0 0.0
    %3862 = vmatpush2.msra.mxu0 0.0
    %3863 = vmatprep.subr.mxu0 0.0
    %3864 = vmatpush2.msra.mxu0 0.0
    %3865 = vmatprep.subr.mxu0 0.0
    %3866 = vmatpush2.msra.mxu0 0.0
    %3867 = vmatprep.subr.mxu0 0.0
    %3868 = vmatpush2.msra.mxu0 0.0
    %3869 = vmatprep.mubr.f32.mxu0 0.0
    %3870 = vmatmul.mubr.f32.gmra.mxu0 %v3803
    %v3871 = vpop.f32.mrf.mxu0
    %v3872 = vadd.f32 0.0, %v3871
    %v3873 = vpop.f32.mrf.mxu0
    %3874 = vdwg.mxu0
    %3875 = vrot.lane.b32.xlu0 %v2477, 96
    %v3876 = vpop.permute.xlu0 %3875
    %v3879 = vsel %vm289, %v3794, 0
    %3881 = vmatprep.subr.mxu0 0.0
    %3882 = vmatpush1.msra.mxu0 0.0
    %3883 = vmatprep.subr.mxu0 0.0
    %3884 = vmatpush1.msra.mxu0 0.0
    %3885 = vmatprep.subr.mxu0 0.0
    %3886 = vmatpush1.msra.mxu0 0.0
    %3887 = vmatprep.subr.mxu0 0.0
    %3888 = vmatpush1.msra.mxu0 0.0
    %3889 = vmatprep.subr.mxu0 0.0
    %3890 = vmatpush1.msra.mxu0 0.0
    %3891 = vmatprep.subr.mxu0 0.0
    %3892 = vmatpush1.msra.mxu0 0.0
    %3893 = vmatprep.subr.mxu0 0.0
    %3894 = vmatpush1.msra.mxu0 0.0
    %3895 = vmatprep.subr.mxu0 0.0
    %3896 = vmatpush1.msra.mxu0 0.0
    %3897 = vmatprep.subr.mxu0 0.0
    %3898 = vmatpush1.msra.mxu0 0.0
    %3899 = vmatprep.subr.mxu0 0.0
    %3900 = vmatpush1.msra.mxu0 0.0
    %3901 = vmatprep.subr.mxu0 0.0
    %3902 = vmatpush1.msra.mxu0 0.0
    %3903 = vmatprep.subr.mxu0 0.0
    %3904 = vmatpush1.msra.mxu0 0.0
    %3905 = vmatprep.subr.mxu0 0.0
    %3906 = vmatpush1.msra.mxu0 0.0
    %3907 = vmatprep.subr.mxu0 0.0
    %3908 = vmatpush1.msra.mxu0 0.0
    %3909 = vmatprep.subr.mxu0 0.0
    %3910 = vmatpush1.msra.mxu0 0.0
    %3911 = vmatprep.subr.mxu0 0.0
    %3912 = vmatpush1.msra.mxu0 %v3876
    %3913 = vmatprep.subr.mxu0 0.0
    %3914 = vmatpush2.msra.mxu0 0.0
    %3915 = vmatprep.subr.mxu0 0.0
    %3916 = vmatpush2.msra.mxu0 0.0
    %3917 = vmatprep.subr.mxu0 0.0
    %3918 = vmatpush2.msra.mxu0 0.0
    %3919 = vmatprep.subr.mxu0 0.0
    %3920 = vmatpush2.msra.mxu0 0.0
    %3921 = vmatprep.subr.mxu0 0.0
    %3922 = vmatpush2.msra.mxu0 0.0
    %3923 = vmatprep.subr.mxu0 0.0
    %3924 = vmatpush2.msra.mxu0 0.0
    %3925 = vmatprep.subr.mxu0 0.0
    %3926 = vmatpush2.msra.mxu0 0.0
    %3927 = vmatprep.subr.mxu0 0.0
    %3928 = vmatpush2.msra.mxu0 0.0
    %3929 = vmatprep.subr.mxu0 0.0
    %3930 = vmatpush2.msra.mxu0 0.0
    %3931 = vmatprep.subr.mxu0 0.0
    %3932 = vmatpush2.msra.mxu0 0.0
    %3933 = vmatprep.subr.mxu0 0.0
    %3934 = vmatpush2.msra.mxu0 0.0
    %3935 = vmatprep.subr.mxu0 0.0
    %3936 = vmatpush2.msra.mxu0 0.0
    %3937 = vmatprep.subr.mxu0 0.0
    %3938 = vmatpush2.msra.mxu0 0.0
    %3939 = vmatprep.subr.mxu0 0.0
    %3940 = vmatpush2.msra.mxu0 0.0
    %3941 = vmatprep.subr.mxu0 0.0
    %3942 = vmatpush2.msra.mxu0 0.0
    %3943 = vmatprep.subr.mxu0 0.0
    %3944 = vmatpush2.msra.mxu0 0.0
    %3945 = vmatprep.mubr.f32.mxu0 0.0
    %3946 = vmatmul.mubr.f32.gmra.mxu0 %v3879
    %v3947 = vpop.f32.mrf.mxu0
    %v3948 = vadd.f32 0.0, %v3947
    %v3949 = vpop.f32.mrf.mxu0
    %3950 = vdwg.mxu0
    %3951 = vrot.lane.b32.xlu0 %v2481, 96
    %v3952 = vpop.permute.xlu0 %3951
    %v3955 = vsel %vm289, %v3796, 0
    %3957 = vmatprep.subr.mxu0 0.0
    %3958 = vmatpush1.msra.mxu0 0.0
    %3959 = vmatprep.subr.mxu0 0.0
    %3960 = vmatpush1.msra.mxu0 0.0
    %3961 = vmatprep.subr.mxu0 0.0
    %3962 = vmatpush1.msra.mxu0 0.0
    %3963 = vmatprep.subr.mxu0 0.0
    %3964 = vmatpush1.msra.mxu0 0.0
    %3965 = vmatprep.subr.mxu0 0.0
    %3966 = vmatpush1.msra.mxu0 0.0
    %3967 = vmatprep.subr.mxu0 0.0
    %3968 = vmatpush1.msra.mxu0 0.0
    %3969 = vmatprep.subr.mxu0 0.0
    %3970 = vmatpush1.msra.mxu0 0.0
    %3971 = vmatprep.subr.mxu0 0.0
    %3972 = vmatpush1.msra.mxu0 0.0
    %3973 = vmatprep.subr.mxu0 0.0
    %3974 = vmatpush1.msra.mxu0 0.0
    %3975 = vmatprep.subr.mxu0 0.0
    %3976 = vmatpush1.msra.mxu0 0.0
    %3977 = vmatprep.subr.mxu0 0.0
    %3978 = vmatpush1.msra.mxu0 0.0
    %3979 = vmatprep.subr.mxu0 0.0
    %3980 = vmatpush1.msra.mxu0 0.0
    %3981 = vmatprep.subr.mxu0 0.0
    %3982 = vmatpush1.msra.mxu0 0.0
    %3983 = vmatprep.subr.mxu0 0.0
    %3984 = vmatpush1.msra.mxu0 0.0
    %3985 = vmatprep.subr.mxu0 0.0
    %3986 = vmatpush1.msra.mxu0 0.0
    %3987 = vmatprep.subr.mxu0 0.0
    %3988 = vmatpush1.msra.mxu0 %v3952
    %3989 = vmatprep.subr.mxu0 0.0
    %3990 = vmatpush2.msra.mxu0 0.0
    %3991 = vmatprep.subr.mxu0 0.0
    %3992 = vmatpush2.msra.mxu0 0.0
    %3993 = vmatprep.subr.mxu0 0.0
    %3994 = vmatpush2.msra.mxu0 0.0
    %3995 = vmatprep.subr.mxu0 0.0
    %3996 = vmatpush2.msra.mxu0 0.0
    %3997 = vmatprep.subr.mxu0 0.0
    %3998 = vmatpush2.msra.mxu0 0.0
    %3999 = vmatprep.subr.mxu0 0.0
    %4000 = vmatpush2.msra.mxu0 0.0
    %4001 = vmatprep.subr.mxu0 0.0
    %4002 = vmatpush2.msra.mxu0 0.0
    %4003 = vmatprep.subr.mxu0 0.0
    %4004 = vmatpush2.msra.mxu0 0.0
    %4005 = vmatprep.subr.mxu0 0.0
    %4006 = vmatpush2.msra.mxu0 0.0
    %4007 = vmatprep.subr.mxu0 0.0
    %4008 = vmatpush2.msra.mxu0 0.0
    %4009 = vmatprep.subr.mxu0 0.0
    %4010 = vmatpush2.msra.mxu0 0.0
    %4011 = vmatprep.subr.mxu0 0.0
    %4012 = vmatpush2.msra.mxu0 0.0
    %4013 = vmatprep.subr.mxu0 0.0
    %4014 = vmatpush2.msra.mxu0 0.0
    %4015 = vmatprep.subr.mxu0 0.0
    %4016 = vmatpush2.msra.mxu0 0.0
    %4017 = vmatprep.subr.mxu0 0.0
    %4018 = vmatpush2.msra.mxu0 0.0
    %4019 = vmatprep.subr.mxu0 0.0
    %4020 = vmatpush2.msra.mxu0 0.0
    %4021 = vmatprep.mubr.f32.mxu0 0.0
    %4022 = vmatmul.mubr.f32.gmra.mxu0 %v3955
    %v4023 = vpop.f32.mrf.mxu0
    %v4024 = vadd.f32 0.0, %v4023
    %v4025 = vpop.f32.mrf.mxu0
    %4026 = vdwg.mxu0
    %4027 = vrot.lane.b32.xlu0 %v2485, 96
    %v4028 = vpop.permute.xlu0 %4027
    %v4031 = vsel %vm289, %v3798, 0
    %4033 = vmatprep.subr.mxu0 0.0
    %4034 = vmatpush1.msra.mxu0 0.0
    %4035 = vmatprep.subr.mxu0 0.0
    %4036 = vmatpush1.msra.mxu0 0.0
    %4037 = vmatprep.subr.mxu0 0.0
    %4038 = vmatpush1.msra.mxu0 0.0
    %4039 = vmatprep.subr.mxu0 0.0
    %4040 = vmatpush1.msra.mxu0 0.0
    %4041 = vmatprep.subr.mxu0 0.0
    %4042 = vmatpush1.msra.mxu0 0.0
    %4043 = vmatprep.subr.mxu0 0.0
    %4044 = vmatpush1.msra.mxu0 0.0
    %4045 = vmatprep.subr.mxu0 0.0
    %4046 = vmatpush1.msra.mxu0 0.0
    %4047 = vmatprep.subr.mxu0 0.0
    %4048 = vmatpush1.msra.mxu0 0.0
    %4049 = vmatprep.subr.mxu0 0.0
    %4050 = vmatpush1.msra.mxu0 0.0
    %4051 = vmatprep.subr.mxu0 0.0
    %4052 = vmatpush1.msra.mxu0 0.0
    %4053 = vmatprep.subr.mxu0 0.0
    %4054 = vmatpush1.msra.mxu0 0.0
    %4055 = vmatprep.subr.mxu0 0.0
    %4056 = vmatpush1.msra.mxu0 0.0
    %4057 = vmatprep.subr.mxu0 0.0
    %4058 = vmatpush1.msra.mxu0 0.0
    %4059 = vmatprep.subr.mxu0 0.0
    %4060 = vmatpush1.msra.mxu0 0.0
    %4061 = vmatprep.subr.mxu0 0.0
    %4062 = vmatpush1.msra.mxu0 0.0
    %4063 = vmatprep.subr.mxu0 0.0
    %4064 = vmatpush1.msra.mxu0 %v4028
    %4065 = vmatprep.subr.mxu0 0.0
    %4066 = vmatpush2.msra.mxu0 0.0
    %4067 = vmatprep.subr.mxu0 0.0
    %4068 = vmatpush2.msra.mxu0 0.0
    %4069 = vmatprep.subr.mxu0 0.0
    %4070 = vmatpush2.msra.mxu0 0.0
    %4071 = vmatprep.subr.mxu0 0.0
    %4072 = vmatpush2.msra.mxu0 0.0
    %4073 = vmatprep.subr.mxu0 0.0
    %4074 = vmatpush2.msra.mxu0 0.0
    %4075 = vmatprep.subr.mxu0 0.0
    %4076 = vmatpush2.msra.mxu0 0.0
    %4077 = vmatprep.subr.mxu0 0.0
    %4078 = vmatpush2.msra.mxu0 0.0
    %4079 = vmatprep.subr.mxu0 0.0
    %4080 = vmatpush2.msra.mxu0 0.0
    %4081 = vmatprep.subr.mxu0 0.0
    %4082 = vmatpush2.msra.mxu0 0.0
    %4083 = vmatprep.subr.mxu0 0.0
    %4084 = vmatpush2.msra.mxu0 0.0
    %4085 = vmatprep.subr.mxu0 0.0
    %4086 = vmatpush2.msra.mxu0 0.0
    %4087 = vmatprep.subr.mxu0 0.0
    %4088 = vmatpush2.msra.mxu0 0.0
    %4089 = vmatprep.subr.mxu0 0.0
    %4090 = vmatpush2.msra.mxu0 0.0
    %4091 = vmatprep.subr.mxu0 0.0
    %4092 = vmatpush2.msra.mxu0 0.0
    %4093 = vmatprep.subr.mxu0 0.0
    %4094 = vmatpush2.msra.mxu0 0.0
    %4095 = vmatprep.subr.mxu0 0.0
    %4096 = vmatpush2.msra.mxu0 0.0
    %4097 = vmatprep.mubr.f32.mxu0 0.0
    %4098 = vmatmul.mubr.f32.gmra.mxu0 %v4031
    %v4099 = vpop.f32.mrf.mxu0
    %v4100 = vadd.f32 0.0, %v4099
    %v4101 = vpop.f32.mrf.mxu0
    %4102 = vdwg.mxu0
    %v4104 = vsel %vm289, %v3872, 0
    %4106 = vmatprep.subr.mxu0 0.0
    %4107 = vmatpush1.msra.mxu0 0.0
    %4108 = vmatprep.subr.mxu0 0.0
    %4109 = vmatpush1.msra.mxu0 0.0
    %4110 = vmatprep.subr.mxu0 0.0
    %4111 = vmatpush1.msra.mxu0 0.0
    %4112 = vmatprep.subr.mxu0 0.0
    %4113 = vmatpush1.msra.mxu0 0.0
    %4114 = vmatprep.subr.mxu0 0.0
    %4115 = vmatpush1.msra.mxu0 0.0
    %4116 = vmatprep.subr.mxu0 0.0
    %4117 = vmatpush1.msra.mxu0 0.0
    %4118 = vmatprep.subr.mxu0 0.0
    %4119 = vmatpush1.msra.mxu0 0.0
    %4120 = vmatprep.subr.mxu0 0.0
    %4121 = vmatpush1.msra.mxu0 0.0
    %4122 = vmatprep.subr.mxu0 0.0
    %4123 = vmatpush1.msra.mxu0 0.0
    %4124 = vmatprep.subr.mxu0 0.0
    %4125 = vmatpush1.msra.mxu0 0.0
    %4126 = vmatprep.subr.mxu0 0.0
    %4127 = vmatpush1.msra.mxu0 0.0
    %4128 = vmatprep.subr.mxu0 0.0
    %4129 = vmatpush1.msra.mxu0 0.0
    %4130 = vmatprep.subr.mxu0 0.0
    %4131 = vmatpush1.msra.mxu0 0.0
    %4132 = vmatprep.subr.mxu0 0.0
    %4133 = vmatpush1.msra.mxu0 0.0
    %4134 = vmatprep.subr.mxu0 0.0
    %4135 = vmatpush1.msra.mxu0 0.0
    %4136 = vmatprep.subr.mxu0 0.0
    %4137 = vmatpush1.msra.mxu0 %v128
    %4138 = vmatprep.subr.mxu0 0.0
    %4139 = vmatpush2.msra.mxu0 0.0
    %4140 = vmatprep.subr.mxu0 0.0
    %4141 = vmatpush2.msra.mxu0 0.0
    %4142 = vmatprep.subr.mxu0 0.0
    %4143 = vmatpush2.msra.mxu0 0.0
    %4144 = vmatprep.subr.mxu0 0.0
    %4145 = vmatpush2.msra.mxu0 0.0
    %4146 = vmatprep.subr.mxu0 0.0
    %4147 = vmatpush2.msra.mxu0 0.0
    %4148 = vmatprep.subr.mxu0 0.0
    %4149 = vmatpush2.msra.mxu0 0.0
    %4150 = vmatprep.subr.mxu0 0.0
    %4151 = vmatpush2.msra.mxu0 0.0
    %4152 = vmatprep.subr.mxu0 0.0
    %4153 = vmatpush2.msra.mxu0 0.0
    %4154 = vmatprep.subr.mxu0 0.0
    %4155 = vmatpush2.msra.mxu0 0.0
    %4156 = vmatprep.subr.mxu0 0.0
    %4157 = vmatpush2.msra.mxu0 0.0
    %4158 = vmatprep.subr.mxu0 0.0
    %4159 = vmatpush2.msra.mxu0 0.0
    %4160 = vmatprep.subr.mxu0 0.0
    %4161 = vmatpush2.msra.mxu0 0.0
    %4162 = vmatprep.subr.mxu0 0.0
    %4163 = vmatpush2.msra.mxu0 0.0
    %4164 = vmatprep.subr.mxu0 0.0
    %4165 = vmatpush2.msra.mxu0 0.0
    %4166 = vmatprep.subr.mxu0 0.0
    %4167 = vmatpush2.msra.mxu0 0.0
    %4168 = vmatprep.subr.mxu0 0.0
    %4169 = vmatpush2.msra.mxu0 0.0
    %4170 = vmatprep.mubr.f32.mxu0 0.0
    %4171 = vmatmul.mubr.f32.gmra.mxu0 %v4104
    %v4172 = vpop.f32.mrf.mxu0
    %v4173 = vadd.f32 0.0, %v4172
    %v4174 = vpop.f32.mrf.mxu0
    %4175 = vdwg.mxu0
    %v4177 = vsel %vm289, %v3948, 0
    %4179 = vmatprep.subr.mxu0 0.0
    %4180 = vmatpush1.msra.mxu0 0.0
    %4181 = vmatprep.subr.mxu0 0.0
    %4182 = vmatpush1.msra.mxu0 0.0
    %4183 = vmatprep.subr.mxu0 0.0
    %4184 = vmatpush1.msra.mxu0 0.0
    %4185 = vmatprep.subr.mxu0 0.0
    %4186 = vmatpush1.msra.mxu0 0.0
    %4187 = vmatprep.subr.mxu0 0.0
    %4188 = vmatpush1.msra.mxu0 0.0
    %4189 = vmatprep.subr.mxu0 0.0
    %4190 = vmatpush1.msra.mxu0 0.0
    %4191 = vmatprep.subr.mxu0 0.0
    %4192 = vmatpush1.msra.mxu0 0.0
    %4193 = vmatprep.subr.mxu0 0.0
    %4194 = vmatpush1.msra.mxu0 0.0
    %4195 = vmatprep.subr.mxu0 0.0
    %4196 = vmatpush1.msra.mxu0 0.0
    %4197 = vmatprep.subr.mxu0 0.0
    %4198 = vmatpush1.msra.mxu0 0.0
    %4199 = vmatprep.subr.mxu0 0.0
    %4200 = vmatpush1.msra.mxu0 0.0
    %4201 = vmatprep.subr.mxu0 0.0
    %4202 = vmatpush1.msra.mxu0 0.0
    %4203 = vmatprep.subr.mxu0 0.0
    %4204 = vmatpush1.msra.mxu0 0.0
    %4205 = vmatprep.subr.mxu0 0.0
    %4206 = vmatpush1.msra.mxu0 0.0
    %4207 = vmatprep.subr.mxu0 0.0
    %4208 = vmatpush1.msra.mxu0 0.0
    %4209 = vmatprep.subr.mxu0 0.0
    %4210 = vmatpush1.msra.mxu0 %v129
    %4211 = vmatprep.subr.mxu0 0.0
    %4212 = vmatpush2.msra.mxu0 0.0
    %4213 = vmatprep.subr.mxu0 0.0
    %4214 = vmatpush2.msra.mxu0 0.0
    %4215 = vmatprep.subr.mxu0 0.0
    %4216 = vmatpush2.msra.mxu0 0.0
    %4217 = vmatprep.subr.mxu0 0.0
    %4218 = vmatpush2.msra.mxu0 0.0
    %4219 = vmatprep.subr.mxu0 0.0
    %4220 = vmatpush2.msra.mxu0 0.0
    %4221 = vmatprep.subr.mxu0 0.0
    %4222 = vmatpush2.msra.mxu0 0.0
    %4223 = vmatprep.subr.mxu0 0.0
    %4224 = vmatpush2.msra.mxu0 0.0
    %4225 = vmatprep.subr.mxu0 0.0
    %4226 = vmatpush2.msra.mxu0 0.0
    %4227 = vmatprep.subr.mxu0 0.0
    %4228 = vmatpush2.msra.mxu0 0.0
    %4229 = vmatprep.subr.mxu0 0.0
    %4230 = vmatpush2.msra.mxu0 0.0
    %4231 = vmatprep.subr.mxu0 0.0
    %4232 = vmatpush2.msra.mxu0 0.0
    %4233 = vmatprep.subr.mxu0 0.0
    %4234 = vmatpush2.msra.mxu0 0.0
    %4235 = vmatprep.subr.mxu0 0.0
    %4236 = vmatpush2.msra.mxu0 0.0
    %4237 = vmatprep.subr.mxu0 0.0
    %4238 = vmatpush2.msra.mxu0 0.0
    %4239 = vmatprep.subr.mxu0 0.0
    %4240 = vmatpush2.msra.mxu0 0.0
    %4241 = vmatprep.subr.mxu0 0.0
    %4242 = vmatpush2.msra.mxu0 0.0
    %4243 = vmatprep.mubr.f32.mxu0 0.0
    %4244 = vmatmul.mubr.f32.gmra.mxu0 %v4177
    %v4245 = vpop.f32.mrf.mxu0
    %v4246 = vadd.f32 0.0, %v4245
    %v4247 = vpop.f32.mrf.mxu0
    %4248 = vdwg.mxu0
    %v4250 = vsel %vm289, %v4024, 0
    %4252 = vmatprep.subr.mxu0 0.0
    %4253 = vmatpush1.msra.mxu0 0.0
    %4254 = vmatprep.subr.mxu0 0.0
    %4255 = vmatpush1.msra.mxu0 0.0
    %4256 = vmatprep.subr.mxu0 0.0
    %4257 = vmatpush1.msra.mxu0 0.0
    %4258 = vmatprep.subr.mxu0 0.0
    %4259 = vmatpush1.msra.mxu0 0.0
    %4260 = vmatprep.subr.mxu0 0.0
    %4261 = vmatpush1.msra.mxu0 0.0
    %4262 = vmatprep.subr.mxu0 0.0
    %4263 = vmatpush1.msra.mxu0 0.0
    %4264 = vmatprep.subr.mxu0 0.0
    %4265 = vmatpush1.msra.mxu0 0.0
    %4266 = vmatprep.subr.mxu0 0.0
    %4267 = vmatpush1.msra.mxu0 0.0
    %4268 = vmatprep.subr.mxu0 0.0
    %4269 = vmatpush1.msra.mxu0 0.0
    %4270 = vmatprep.subr.mxu0 0.0
    %4271 = vmatpush1.msra.mxu0 0.0
    %4272 = vmatprep.subr.mxu0 0.0
    %4273 = vmatpush1.msra.mxu0 0.0
    %4274 = vmatprep.subr.mxu0 0.0
    %4275 = vmatpush1.msra.mxu0 0.0
    %4276 = vmatprep.subr.mxu0 0.0
    %4277 = vmatpush1.msra.mxu0 0.0
    %4278 = vmatprep.subr.mxu0 0.0
    %4279 = vmatpush1.msra.mxu0 0.0
    %4280 = vmatprep.subr.mxu0 0.0
    %4281 = vmatpush1.msra.mxu0 0.0
    %4282 = vmatprep.subr.mxu0 0.0
    %4283 = vmatpush1.msra.mxu0 %v130
    %4284 = vmatprep.subr.mxu0 0.0
    %4285 = vmatpush2.msra.mxu0 0.0
    %4286 = vmatprep.subr.mxu0 0.0
    %4287 = vmatpush2.msra.mxu0 0.0
    %4288 = vmatprep.subr.mxu0 0.0
    %4289 = vmatpush2.msra.mxu0 0.0
    %4290 = vmatprep.subr.mxu0 0.0
    %4291 = vmatpush2.msra.mxu0 0.0
    %4292 = vmatprep.subr.mxu0 0.0
    %4293 = vmatpush2.msra.mxu0 0.0
    %4294 = vmatprep.subr.mxu0 0.0
    %4295 = vmatpush2.msra.mxu0 0.0
    %4296 = vmatprep.subr.mxu0 0.0
    %4297 = vmatpush2.msra.mxu0 0.0
    %4298 = vmatprep.subr.mxu0 0.0
    %4299 = vmatpush2.msra.mxu0 0.0
    %4300 = vmatprep.subr.mxu0 0.0
    %4301 = vmatpush2.msra.mxu0 0.0
    %4302 = vmatprep.subr.mxu0 0.0
    %4303 = vmatpush2.msra.mxu0 0.0
    %4304 = vmatprep.subr.mxu0 0.0
    %4305 = vmatpush2.msra.mxu0 0.0
    %4306 = vmatprep.subr.mxu0 0.0
    %4307 = vmatpush2.msra.mxu0 0.0
    %4308 = vmatprep.subr.mxu0 0.0
    %4309 = vmatpush2.msra.mxu0 0.0
    %4310 = vmatprep.subr.mxu0 0.0
    %4311 = vmatpush2.msra.mxu0 0.0
    %4312 = vmatprep.subr.mxu0 0.0
    %4313 = vmatpush2.msra.mxu0 0.0
    %4314 = vmatprep.subr.mxu0 0.0
    %4315 = vmatpush2.msra.mxu0 0.0
    %4316 = vmatprep.mubr.f32.mxu0 0.0
    %4317 = vmatmul.mubr.f32.gmra.mxu0 %v4250
    %v4318 = vpop.f32.mrf.mxu0
    %v4319 = vadd.f32 0.0, %v4318
    %v4320 = vpop.f32.mrf.mxu0
    %4321 = vdwg.mxu0
    %v4323 = vsel %vm289, %v4100, 0
    %4325 = vmatprep.subr.mxu0 0.0
    %4326 = vmatpush1.msra.mxu0 0.0
    %4327 = vmatprep.subr.mxu0 0.0
    %4328 = vmatpush1.msra.mxu0 0.0
    %4329 = vmatprep.subr.mxu0 0.0
    %4330 = vmatpush1.msra.mxu0 0.0
    %4331 = vmatprep.subr.mxu0 0.0
    %4332 = vmatpush1.msra.mxu0 0.0
    %4333 = vmatprep.subr.mxu0 0.0
    %4334 = vmatpush1.msra.mxu0 0.0
    %4335 = vmatprep.subr.mxu0 0.0
    %4336 = vmatpush1.msra.mxu0 0.0
    %4337 = vmatprep.subr.mxu0 0.0
    %4338 = vmatpush1.msra.mxu0 0.0
    %4339 = vmatprep.subr.mxu0 0.0
    %4340 = vmatpush1.msra.mxu0 0.0
    %4341 = vmatprep.subr.mxu0 0.0
    %4342 = vmatpush1.msra.mxu0 0.0
    %4343 = vmatprep.subr.mxu0 0.0
    %4344 = vmatpush1.msra.mxu0 0.0
    %4345 = vmatprep.subr.mxu0 0.0
    %4346 = vmatpush1.msra.mxu0 0.0
    %4347 = vmatprep.subr.mxu0 0.0
    %4348 = vmatpush1.msra.mxu0 0.0
    %4349 = vmatprep.subr.mxu0 0.0
    %4350 = vmatpush1.msra.mxu0 0.0
    %4351 = vmatprep.subr.mxu0 0.0
    %4352 = vmatpush1.msra.mxu0 0.0
    %4353 = vmatprep.subr.mxu0 0.0
    %4354 = vmatpush1.msra.mxu0 0.0
    %4355 = vmatprep.subr.mxu0 0.0
    %4356 = vmatpush1.msra.mxu0 %v131
    %4357 = vmatprep.subr.mxu0 0.0
    %4358 = vmatpush2.msra.mxu0 0.0
    %4359 = vmatprep.subr.mxu0 0.0
    %4360 = vmatpush2.msra.mxu0 0.0
    %4361 = vmatprep.subr.mxu0 0.0
    %4362 = vmatpush2.msra.mxu0 0.0
    %4363 = vmatprep.subr.mxu0 0.0
    %4364 = vmatpush2.msra.mxu0 0.0
    %4365 = vmatprep.subr.mxu0 0.0
    %4366 = vmatpush2.msra.mxu0 0.0
    %4367 = vmatprep.subr.mxu0 0.0
    %4368 = vmatpush2.msra.mxu0 0.0
    %4369 = vmatprep.subr.mxu0 0.0
    %4370 = vmatpush2.msra.mxu0 0.0
    %4371 = vmatprep.subr.mxu0 0.0
    %4372 = vmatpush2.msra.mxu0 0.0
    %4373 = vmatprep.subr.mxu0 0.0
    %4374 = vmatpush2.msra.mxu0 0.0
    %4375 = vmatprep.subr.mxu0 0.0
    %4376 = vmatpush2.msra.mxu0 0.0
    %4377 = vmatprep.subr.mxu0 0.0
    %4378 = vmatpush2.msra.mxu0 0.0
    %4379 = vmatprep.subr.mxu0 0.0
    %4380 = vmatpush2.msra.mxu0 0.0
    %4381 = vmatprep.subr.mxu0 0.0
    %4382 = vmatpush2.msra.mxu0 0.0
    %4383 = vmatprep.subr.mxu0 0.0
    %4384 = vmatpush2.msra.mxu0 0.0
    %4385 = vmatprep.subr.mxu0 0.0
    %4386 = vmatpush2.msra.mxu0 0.0
    %4387 = vmatprep.subr.mxu0 0.0
    %4388 = vmatpush2.msra.mxu0 0.0
    %4389 = vmatprep.mubr.f32.mxu0 0.0
    %4390 = vmatmul.mubr.f32.gmra.mxu0 %v4323
    %v4391 = vpop.f32.mrf.mxu0
    %v4392 = vadd.f32 0.0, %v4391
    %v4393 = vpop.f32.mrf.mxu0
    %4394 = vdwg.mxu0
    %v4395 = vsel %vm133, %v4173, 0.0
    %v4396 = vsel %vm133, %v4246, 0.0
    %v4397 = vadd.f32 %v4395, %v4396
    %v4398 = vsel %vm133, %v4319, 0.0
    %v4399 = vadd.f32 %v4397, %v4398
    %v4400 = vsel %vm133, %v4392, 0.0
    %v4401 = vadd.f32 %v4399, %v4400
    %4402 = vrot.lane.b32.xlu0 %v2275, 32
    %v4403 = vpop.permute.xlu0 %4402
    %v4405 = vadd.f32 %v3443, %v4403
    %v4406 = vadd.f32 %v4401, %v4403
    %v4407 = vadd.f32 %v2218, %v4405
    %v4408 = vadd.f32 %v2219, %v4406
    %v4409 = vsel %vm133, %v4407, 0.0
    %4410 = vadd.xlane.f32.xlu0 %v4409
    %v4411 = vpop.xlane.xlu0 %4410
    %v4412 = vsel %vm133, %v4408, 0.0
    %4413 = vadd.xlane.f32.xlu0 %v4412
    %v4414 = vpop.xlane.xlu0 %4413
    %v4415 = vmul.f32 %v4411, %v140
    %v4416 = vmul.f32 %v4414, %v140
    %v4417 = vsub.f32 %v4407, %v4415
    %v4418 = vsub.f32 %v4408, %v4416
    %v4419 = vmul.f32 %v4417, %v4417
    %v4420 = vmul.f32 %v4418, %v4418
    %v4421 = vsel %vm133, %v4419, 0.0
    %4422 = vadd.xlane.f32.xlu0 %v4421
    %v4423 = vpop.xlane.xlu0 %4422
    %v4424 = vsel %vm133, %v4420, 0.0
    %4425 = vadd.xlane.f32.xlu0 %v4424
    %v4426 = vpop.xlane.xlu0 %4425
    %v4427 = vmul.f32 %v4423, %v153
    %v4428 = vmul.f32 %v4426, %v153
    %v4429 = vlaneseq
    %v4430 = vshrl.u32 %v4429, 7
    %v4431 = vsub.s32 4, %v4430
    %v4432 = vrot.slane %v115, %v4431
    %v4433 = vmul.f32 %v4432, %v4417
    %v4434 = vmul.f32 %v4432, %v4418
    %v4435 = vrsqrt.pop %v4427
    %v4436 = vmul.f32 %v4427, %v4435
    %vm4437 = vcmp.eq.f32.partialorder %v4427, inf
    %v4438 = vsel %vm4437, %v4427, %v4436
    %vm4439 = vcmp.eq.f32.partialorder %v4427, 0.0
    %v4440 = vand.u32 %v4427, 2147483648
    %v4441 = vsel %vm4439, %v4440, %v4438
    %v4442 = vrsqrt.pop %v4428
    %v4443 = vmul.f32 %v4428, %v4442
    %vm4444 = vcmp.eq.f32.partialorder %v4428, inf
    %v4445 = vsel %vm4444, %v4428, %v4443
    %vm4446 = vcmp.eq.f32.partialorder %v4428, 0.0
    %v4447 = vand.u32 %v4428, 2147483648
    %v4448 = vsel %vm4446, %v4447, %v4445
    %v4449 = vadd.f32 %v4441, 1e-06
    %v4450 = vadd.f32 %v4448, 1e-06
    %v4451 = vrcp.pop %v4449
    %v4452 = vmul.f32 %v4433, %v4451
    %v4453 = vrcp.pop %v4450
    %v4454 = vmul.f32 %v4434, %v4453
    %v4455 = vlaneseq
    %v4456 = vshrl.u32 %v4455, 7
    %v4457 = vsub.s32 5, %v4456
    %v4458 = vrot.slane %v115, %v4457
    %v4459 = vadd.f32 %v4452, %v4458
    %v4460 = vadd.f32 %v4454, %v4458
    %v4461 = vld [vmem:[%s8] sm:$0xff]
    %v4462 = vld [vmem:[%s8 + $0x8] sm:$0xff]
    %v4463 = vld [vmem:[%s8 + $0x10] sm:$0xff]
    %v4464 = vld [vmem:[%s8 + $0x18] sm:$0xff]
    %v4465 = vld [vmem:[%s10] sm:$0x1]
    %v4467 = vlaneseq
    %v4468 = vshrl.u32 %v4467, 7
    %v4469 = vsub.s32 0, %v4468
    %v4470 = vrot.slane %v4465, %v4469
    %v4473 = vsel %vm133, %v4459, 0
    %v4476 = vsel %vm133, %v4460, 0
    %4478 = vmatprep.subr.mxu0 0.0
    %4479 = vmatpush1.msra.mxu0 0.0
    %4480 = vmatprep.subr.mxu0 0.0
    %4481 = vmatpush1.msra.mxu0 0.0
    %4482 = vmatprep.subr.mxu0 0.0
    %4483 = vmatpush1.msra.mxu0 0.0
    %4484 = vmatprep.subr.mxu0 0.0
    %4485 = vmatpush1.msra.mxu0 0.0
    %4486 = vmatprep.subr.mxu0 0.0
    %4487 = vmatpush1.msra.mxu0 0.0
    %4488 = vmatprep.subr.mxu0 0.0
    %4489 = vmatpush1.msra.mxu0 0.0
    %4490 = vmatprep.subr.mxu0 0.0
    %4491 = vmatpush1.msra.mxu0 0.0
    %4492 = vmatprep.subr.mxu0 0.0
    %4493 = vmatpush1.msra.mxu0 0.0
    %4494 = vmatprep.subr.mxu0 0.0
    %4495 = vmatpush1.msra.mxu0 0.0
    %4496 = vmatprep.subr.mxu0 0.0
    %4497 = vmatpush1.msra.mxu0 0.0
    %4498 = vmatprep.subr.mxu0 0.0
    %4499 = vmatpush1.msra.mxu0 0.0
    %4500 = vmatprep.subr.mxu0 0.0
    %4501 = vmatpush1.msra.mxu0 0.0
    %4502 = vmatprep.subr.mxu0 0.0
    %4503 = vmatpush1.msra.mxu0 %v4464
    %4504 = vmatprep.subr.mxu0 0.0
    %4505 = vmatpush1.msra.mxu0 %v4463
    %4506 = vmatprep.subr.mxu0 0.0
    %4507 = vmatpush1.msra.mxu0 %v4462
    %4508 = vmatprep.subr.mxu0 0.0
    %4509 = vmatpush1.msra.mxu0 %v4461
    %4510 = vmatprep.subr.mxu0 0.0
    %4511 = vmatpush2.msra.mxu0 0.0
    %4512 = vmatprep.subr.mxu0 0.0
    %4513 = vmatpush2.msra.mxu0 0.0
    %4514 = vmatprep.subr.mxu0 0.0
    %4515 = vmatpush2.msra.mxu0 0.0
    %4516 = vmatprep.subr.mxu0 0.0
    %4517 = vmatpush2.msra.mxu0 0.0
    %4518 = vmatprep.subr.mxu0 0.0
    %4519 = vmatpush2.msra.mxu0 0.0
    %4520 = vmatprep.subr.mxu0 0.0
    %4521 = vmatpush2.msra.mxu0 0.0
    %4522 = vmatprep.subr.mxu0 0.0
    %4523 = vmatpush2.msra.mxu0 0.0
    %4524 = vmatprep.subr.mxu0 0.0
    %4525 = vmatpush2.msra.mxu0 0.0
    %4526 = vmatprep.subr.mxu0 0.0
    %4527 = vmatpush2.msra.mxu0 0.0
    %4528 = vmatprep.subr.mxu0 0.0
    %4529 = vmatpush2.msra.mxu0 0.0
    %4530 = vmatprep.subr.mxu0 0.0
    %4531 = vmatpush2.msra.mxu0 0.0
    %4532 = vmatprep.subr.mxu0 0.0
    %4533 = vmatpush2.msra.mxu0 0.0
    %4534 = vmatprep.subr.mxu0 0.0
    %4535 = vmatpush2.msra.mxu0 0.0
    %4536 = vmatprep.subr.mxu0 0.0
    %4537 = vmatpush2.msra.mxu0 0.0
    %4538 = vmatprep.subr.mxu0 0.0
    %4539 = vmatpush2.msra.mxu0 0.0
    %4540 = vmatprep.subr.mxu0 0.0
    %4541 = vmatpush2.msra.mxu0 0.0
    %4542 = vmatprep.mubr.f32.mxu0 0.0
    %4543 = vmatmul.mubr.f32.gmra.mxu0 %v4473
    %v4544 = vpop.f32.mrf.mxu0
    %v4545 = vadd.f32 %v4470, %v4544
    %v4546 = vpop.f32.mrf.mxu0
    %4547 = vmatprep.mubr.f32.mxu0 0.0
    %4548 = vmatmul.mubr.f32.gmra.mxu0 %v4476
    %v4549 = vpop.f32.mrf.mxu0
    %v4550 = vadd.f32 %v4470, %v4549
    %v4551 = vpop.f32.mrf.mxu0
    %4552 = vdwg.mxu0
    %v4553 = vmax.f32 %v4545, 0.0
    %v4554 = vmax.f32 %v4550, 0.0
    %v4555 = vld [vmem:[%s9] sm:$0xff]
    %v4556 = vld [vmem:[%s9 + $0x8] sm:$0xff]
    %v4557 = vld [vmem:[%s9 + $0x10] sm:$0xff]
    %v4558 = vld [vmem:[%s9 + $0x18] sm:$0xff]
    %v4559 = vld [vmem:[%s9 + $0x20] sm:$0xff]
    %v4560 = vld [vmem:[%s9 + $0x28] sm:$0xff]
    %v4561 = vld [vmem:[%s9 + $0x30] sm:$0xff]
    %v4562 = vld [vmem:[%s9 + $0x38] sm:$0xff]
    %vm4563 = vcmask 523264
    %v4565 = vsel %vm4563, %v4553, 0
    %v4568 = vsel %vm4563, %v4554, 0
    %4570 = vmatprep.subr.mxu0 0.0
    %4571 = vmatpush1.msra.mxu0 0.0
    %4572 = vmatprep.subr.mxu0 0.0
    %4573 = vmatpush1.msra.mxu0 0.0
    %4574 = vmatprep.subr.mxu0 0.0
    %4575 = vmatpush1.msra.mxu0 0.0
    %4576 = vmatprep.subr.mxu0 0.0
    %4577 = vmatpush1.msra.mxu0 0.0
    %4578 = vmatprep.subr.mxu0 0.0
    %4579 = vmatpush1.msra.mxu0 0.0
    %4580 = vmatprep.subr.mxu0 0.0
    %4581 = vmatpush1.msra.mxu0 0.0
    %4582 = vmatprep.subr.mxu0 0.0
    %4583 = vmatpush1.msra.mxu0 0.0
    %4584 = vmatprep.subr.mxu0 0.0
    %4585 = vmatpush1.msra.mxu0 0.0
    %4586 = vmatprep.subr.mxu0 0.0
    %4587 = vmatpush1.msra.mxu0 %v4562
    %4588 = vmatprep.subr.mxu0 0.0
    %4589 = vmatpush1.msra.mxu0 %v4561
    %4590 = vmatprep.subr.mxu0 0.0
    %4591 = vmatpush1.msra.mxu0 %v4560
    %4592 = vmatprep.subr.mxu0 0.0
    %4593 = vmatpush1.msra.mxu0 %v4559
    %4594 = vmatprep.subr.mxu0 0.0
    %4595 = vmatpush1.msra.mxu0 %v4558
    %4596 = vmatprep.subr.mxu0 0.0
    %4597 = vmatpush1.msra.mxu0 %v4557
    %4598 = vmatprep.subr.mxu0 0.0
    %4599 = vmatpush1.msra.mxu0 %v4556
    %4600 = vmatprep.subr.mxu0 0.0
    %4601 = vmatpush1.msra.mxu0 %v4555
    %4602 = vmatprep.subr.mxu0 0.0
    %4603 = vmatpush2.msra.mxu0 0.0
    %4604 = vmatprep.subr.mxu0 0.0
    %4605 = vmatpush2.msra.mxu0 0.0
    %4606 = vmatprep.subr.mxu0 0.0
    %4607 = vmatpush2.msra.mxu0 0.0
    %4608 = vmatprep.subr.mxu0 0.0
    %4609 = vmatpush2.msra.mxu0 0.0
    %4610 = vmatprep.subr.mxu0 0.0
    %4611 = vmatpush2.msra.mxu0 0.0
    %4612 = vmatprep.subr.mxu0 0.0
    %4613 = vmatpush2.msra.mxu0 0.0
    %4614 = vmatprep.subr.mxu0 0.0
    %4615 = vmatpush2.msra.mxu0 0.0
    %4616 = vmatprep.subr.mxu0 0.0
    %4617 = vmatpush2.msra.mxu0 0.0
    %4618 = vmatprep.subr.mxu0 0.0
    %4619 = vmatpush2.msra.mxu0 0.0
    %4620 = vmatprep.subr.mxu0 0.0
    %4621 = vmatpush2.msra.mxu0 0.0
    %4622 = vmatprep.subr.mxu0 0.0
    %4623 = vmatpush2.msra.mxu0 0.0
    %4624 = vmatprep.subr.mxu0 0.0
    %4625 = vmatpush2.msra.mxu0 0.0
    %4626 = vmatprep.subr.mxu0 0.0
    %4627 = vmatpush2.msra.mxu0 0.0
    %4628 = vmatprep.subr.mxu0 0.0
    %4629 = vmatpush2.msra.mxu0 0.0
    %4630 = vmatprep.subr.mxu0 0.0
    %4631 = vmatpush2.msra.mxu0 0.0
    %4632 = vmatprep.subr.mxu0 0.0
    %4633 = vmatpush2.msra.mxu0 0.0
    %4634 = vmatprep.mubr.f32.mxu0 0.0
    %4635 = vmatmul.mubr.f32.gmra.mxu0 %v4565
    %v4636 = vpop.f32.mrf.mxu0
    %v4637 = vadd.f32 0.0, %v4636
    %v4638 = vpop.f32.mrf.mxu0
    %4639 = vmatprep.mubr.f32.mxu0 0.0
    %4640 = vmatmul.mubr.f32.gmra.mxu0 %v4568
    %v4641 = vpop.f32.mrf.mxu0
    %v4642 = vadd.f32 0.0, %v4641
    %v4643 = vpop.f32.mrf.mxu0
    %4644 = vdwg.mxu0
    %v4645 = vadd.f32 %v4407, %v4637
    %v4646 = vadd.f32 %v4408, %v4642
    %4647 = vrot.lane.b32.xlu0 %v4470, 64
    %v4648 = vpop.permute.xlu0 %4647
    %v4650 = vadd.f32 %v4645, %v4648
    %v4651 = vadd.f32 %v4646, %v4648
    %4652 = vst.msk [vmem:[#allocation11] sm:$0xff] %vm133, %v4650
    %4653 = vst.msk [vmem:[#allocation11 + $0x8] sm:$0xff] %vm133, %v4651
    // Predicated region
    $region66: #{tpu_custom_call.1} parent=1 // pred_check
      _
    $region67: #{tpu_custom_call.1} parent=1 // pred_check_branch
      %4655 = sbr.rel (0) target = $region69
    $region68: #{tpu_custom_call.1} parent=1 // pred_region
      %s4657 = ssub.s32 256, 256
      %4658 = vsyncadd [#allocation4], %s4657
      %s4659 = sshll.u32 [#allocation11], 4
      %s4660 = int_to_ptr.vmem [resolvable:$true] %s4659
      %4665 = dma.vmem_to_hbm [thread:$0]  %s4660, 256, %s11, [#allocation4], 128, 128, 8
    $region69: #{tpu_custom_call.1} parent=1 // pred_fallthru
      _
    // Predicated region
    $region70: #{tpu_custom_call.1} parent=1 // pred_check
      _
    $region71: #{tpu_custom_call.1} parent=1 // pred_check_branch
      %4667 = sbr.rel (0) target = $region73
    $region72: #{tpu_custom_call.1} parent=1 // pred_region
      %4668 = dma.done [#allocation4], 256
    $region73: #{tpu_custom_call.1} parent=1 // pred_fallthru
      _
    %4669 = vsyncpa [#allocation3], 1
    %4670 = vsyncpa [#allocation6], 1
    %4671 = vsyncpa [#allocation9], 1
    %4672 = vsyncpa [#allocation4], 1

</llo_original>
